<compile_context>
chip_gen: v7x
topology: tpu7x:2x2x1
jax: 0.10.0
libtpu: 0.0.40
codegen_flags: <defaults>
</compile_context>

<pallas_src>
from functools import partial

import numpy as np
import jax
import jax.numpy as jnp
from jax import lax
from jax.experimental import pallas as pl
from jax.experimental.pallas import tpu as pltpu


# ----------------------------- Pallas kernel -------------------------------

def _make_cost_agg_kernel(W, HW, LPAD, TD, C):
    """Fused (ref * warp) matching cost + Conv3d(C->1, 3x3x3, pad=1).

    Per grid step (b, v, t):
      band_ref : (9, TD, (TD+2)*C) banded conv weights (one band per spatial
                 tap, contracting depth-neighbour plane and channel) [resident]
      mask_ref : (2, HW) f32 column-validity masks for the w-1 / w+1 taps
      ref_ref  : (C, HW)       reference feature, lane-dense H*W
      warp_ref : (TD*C, HW)    one depth tile of the warped source feature
      nhalo_ref: (HB, HW)      block holding depth plane t*TD+TD (clamped)
      out_ref  : (TD, HW) f32
      cost_scr : ((TD+2)*C, HW+2*LPAD) persistent slab; rows [0:TD*C] interior
                 planes, then d-1 halo rows, then d+TD halo rows; lane pads
                 stay zero so the 9 spatial taps are plain static lane slices.
      reftile_scr: (TD*C, HW)  ref feature tiled TD times (cached per (b, v))
    """
    ITC = TD * C                 # interior rows (plane-major, channel-minor)
    PC = (TD + 2) * C            # + d-1 halo rows + d+TD halo rows

    def kernel(band_ref, mask_ref, ref_ref, warp_ref, nhalo_ref, out_ref,
               cost_scr, reftile_scr):
        t = pl.program_id(2)
        n_t = pl.num_programs(2)

        # First depth tile of every (b, v): zero the slab (this also zeroes the
        # lane pads and the depth-0 zero-pad halo, which are never overwritten
        # afterwards) and cache the TD-times-tiled reference feature.
        @pl.when(t == 0)
        def _init():
            cost_scr[...] = jnp.zeros_like(cost_scr)
            r = ref_ref[...]
            for d in range(TD):
                reftile_scr[d * C:(d + 1) * C, :] = r

        # d-1 depth halo: carried from the last interior plane of the previous
        # depth tile (t is the innermost, sequential grid axis) -> no DMA.
        # Must be read before the interior is overwritten below.
        @pl.when(t > 0)
        def _carry():
            cost_scr[ITC:ITC + C, LPAD:LPAD + HW] = (
                cost_scr[ITC - C:ITC, LPAD:LPAD + HW])

        # Matching cost (ref * warp): one dense, sublane-aligned (TD*C, HW)
        # multiply + store in the compute dtype (bf16 VPU on v6e/v7x).
        cost_scr[0:ITC, LPAD:LPAD + HW] = (
            reftile_scr[...] * warp_ref[...]).astype(cost_scr.dtype)

        # d+TD depth halo (zeroed past the end of the volume == conv zero pad).
        nscale = jnp.where(t == n_t - 1, 0.0, 1.0)
        nhalo = (ref_ref[...].astype(jnp.float32) *
                 nhalo_ref[0:C, :].astype(jnp.float32) * nscale)
        cost_scr[ITC + C:PC, LPAD:LPAD + HW] = nhalo.astype(cost_scr.dtype)

        # Conv3d: 9 banded matmuls (TD, PC) @ (PC, HWp) -- one MXU touch per
        # cost plane -- then dense (TD, HW) adds and one unmasked store.
        slab = cost_scr[...]                                   # (PC, HWp)
        mask_l = jnp.broadcast_to(mask_ref[0:1, :], (TD, HW))  # hoisted
        mask_r = jnp.broadcast_to(mask_ref[1:2, :], (TD, HW))

        acc = None
        for kh in range(3):
            for kw in range(3):
                j = kh * 3 + kw
                g = jnp.dot(band_ref[j], slab,
                            preferred_element_type=jnp.float32)   # (TD, HWp)
                s = (kh - 1) * W + (kw - 1)
                seg = g[:, LPAD + s:LPAD + s + HW]                 # (TD, HW)
                if kw == 0:
                    seg = seg * mask_l
                elif kw == 2:
                    seg = seg * mask_r
                acc = seg if acc is None else acc + seg
        out_ref[...] = acc.astype(out_ref.dtype)

    return kernel


def _vmem_limit_bytes(C, HW, HWp, TD, HB, itemsize):
    """Footprint-derived VMEM limit, capped per TPU generation."""
    need = (2 * TD * C * HW * itemsize          # warp tile (double-buffered)
            + 2 * HB * HW * itemsize            # next-depth halo
            + 2 * C * HW * itemsize             # ref feature
            + 2 * 9 * TD * (TD + 2) * C * itemsize   # banded weights
            + 2 * 2 * HW * 4                    # column masks
            + 2 * TD * HW * 4                   # output tile (double-buffered)
            + (TD + 2) * C * HWp * itemsize     # cost slab scratch
            + TD * C * HW * itemsize)           # tiled ref scratch
    try:
        cap = int(getattr(pltpu.get_tpu_info(), "vmem_capacity_bytes",
                          64 * 1024 * 1024))
    except Exception:                            # best-effort hardware query
        cap = 64 * 1024 * 1024
    return int(min(max(4 * need, 32 * 1024 * 1024), int(0.75 * cap)))


def cost_agg_pallas(band, col_masks, ref_flat, warp2d, *, V, H, W, D, TD):
    """band: (9, TD, (TD+2)*C), col_masks: (2, HW) f32, ref_flat: (B, C, HW),
    warp2d: (B*V, D*C, HW) -> (B*V, D, HW) float32."""
    B, C, HW = ref_flat.shape
    BV, DC, HW2 = warp2d.shape
    assert BV == B * V and HW == H * W and HW2 == HW
    assert DC == D * C and D % TD == 0
    n_t = D // TD
    LPAD = ((W + 1 + 127) // 128) * 128          # lane pad >= max spatial shift
    HWp = HW + 2 * LPAD

    itemsize = jnp.dtype(warp2d.dtype).itemsize
    sub = 16 if itemsize == 2 else 8
    HB = max(C, sub)                             # halo DMA rows, sublane-aligned
    assert HB % sub == 0 and (TD * C) % HB == 0 and DC % HB == 0, (
        f"C={C}, TD={TD} do not pack into {sub}-row sublane blocks")
    step = (TD * C) // HB
    last_blk = DC // HB - 1

    kernel = _make_cost_agg_kernel(W, HW, LPAD, TD, C)

    return pl.pallas_call(
        kernel,
        out_shape=jax.ShapeDtypeStruct((BV, D, HW), jnp.float32),
        grid_spec=pltpu.PrefetchScalarGridSpec(
            num_scalar_prefetch=0,
            grid=(B, V, n_t),
            in_specs=[
                # banded conv weights + column masks: grid-constant (DMA once)
                pl.BlockSpec(band.shape, lambda b, v, t: (0, 0, 0)),
                pl.BlockSpec(col_masks.shape, lambda b, v, t: (0, 0)),
                # ref feature: depends only on b -> not re-fetched per view/tile
                pl.BlockSpec((None, C, HW), lambda b, v, t: (b, 0, 0)),
                # warped src feature: one depth tile, already (TD*C, HW) dense
                pl.BlockSpec((None, TD * C, HW),
                             lambda b, v, t: (b * V + v, t, 0)),
                # next-depth halo plane (clamped at the end; masked in-kernel)
                pl.BlockSpec((None, HB, HW),
                             lambda b, v, t: (b * V + v,
                                              jnp.minimum((t + 1) * step,
                                                          last_blk), 0)),
            ],
            out_specs=pl.BlockSpec((None, TD, HW),
                                   lambda b, v, t: (b * V + v, t, 0)),
            scratch_shapes=[
                pltpu.VMEM(((TD + 2) * C, HWp), warp2d.dtype),
                pltpu.VMEM((TD * C, HW), warp2d.dtype),
            ],
        ),
        compiler_params=pltpu.CompilerParams(
            # depth-tile axis must stay "arbitrary": the scratch carries the
            # d-1 halo across sequential t steps.
            dimension_semantics=("parallel", "parallel", "arbitrary"),
            vmem_limit_bytes=_vmem_limit_bytes(C, HW, HWp, TD, HB, itemsize),
        ),
    )(band, col_masks, ref_flat, warp2d, warp2d)


# ------------------------------ JAX glue ------------------------------------

def _combine_proj(proj):
    """proj: (B, 2, 4, 4); proj[:,0]=extrinsics, proj[:,1,:3,:3]=intrinsics."""
    new = proj[:, 0]
    upd = jnp.einsum("bij,bjk->bik", proj[:, 1, :3, :3], proj[:, 0, :3, :4])
    return new.at[:, :3, :4].set(upd)


def homo_warp(src_fea, src_proj, ref_proj, depth_values,
              out_dtype=jnp.float32):
    """MVSNet homo_warping: bilinear sample of src_fea at projected pixels,
    zero padding for out-of-bounds.  Returns depth-major (B, D, C, H*W) in
    `out_dtype` so the Pallas kernel consumes it with a free reshape.
    # TODO(synk): uses align_corners=True pixel mapping (direct pixel coords);
    # torch grid_sample default (align_corners=False) differs by a sub-pixel
    # rescale.
    """
    B, C, H, W = src_fea.shape
    D = depth_values.shape[1]
    HW = H * W

    proj = jnp.einsum("bij,bjk->bik", src_proj, jnp.linalg.inv(ref_proj))
    rot = proj[:, :3, :3]
    trans = proj[:, :3, 3]

    y, x = jnp.meshgrid(jnp.arange(H, dtype=jnp.float32),
                        jnp.arange(W, dtype=jnp.float32), indexing="ij")
    xyz = jnp.stack([x.ravel(), y.ravel(), jnp.ones(HW, jnp.float32)], 0)
    rot_xyz = jnp.einsum("bij,jk->bik", rot, xyz)                  # (B, 3, HW)
    rot_depth_xyz = rot_xyz[:, :, None, :] * depth_values.reshape(B, 1, D, HW)
    proj_xyz = rot_depth_xyz + trans[:, :, None, None]             # (B, 3, D, HW)
    px = proj_xyz[:, 0] / proj_xyz[:, 2]
    py = proj_xyz[:, 1] / proj_xyz[:, 2]

    fea_flat = src_fea.reshape(B, C, HW)

    def warp_one(fea, gx, gy):                   # fea (C, HW), gx/gy (D, HW)
        x0 = jnp.floor(gx)
        y0 = jnp.floor(gy)

        def tap(xi, yi, wgt):
            valid = (xi >= 0) & (xi <= W - 1) & (yi >= 0) & (yi <= H - 1)
            xc = jnp.clip(xi, 0, W - 1).astype(jnp.int32)
            yc = jnp.clip(yi, 0, H - 1).astype(jnp.int32)
            idx = yc * W + xc                                       # (D, HW)
            vals = jax.vmap(
                lambda i: jnp.take(fea, i, axis=1, mode="clip"))(idx)  # (D,C,HW)
            return vals * (wgt * valid.astype(jnp.float32))[:, None, :]

        wx1 = gx - x0
        wy1 = gy - y0
        out = (tap(x0,     y0,     (1 - wx1) * (1 - wy1))
               + tap(x0 + 1, y0,     wx1 * (1 - wy1))
               + tap(x0,     y0 + 1, (1 - wx1) * wy1)
               + tap(x0 + 1, y0 + 1, wx1 * wy1))
        return out.astype(out_dtype)                               # (D, C, HW)

    return jax.vmap(warp_one)(fea_flat, px, py)                    # (B, D, C, HW)


def _build_band(w, TD, dtype):
    """w: (C, 3, 3, 3) Conv3d weight[0], indexed [c, kd, kh, kw].
    Returns (9, TD, (TD+2)*C) banded matrices matching the cost-slab row layout
    (rows [0:TD*C] interior planes, then d-1 halo, then d+TD halo)."""
    C = w.shape[0]
    PC = (TD + 2) * C
    wt = jnp.transpose(w, (2, 3, 1, 0)).reshape(9, 3, C)   # [kh*3+kw, kd, c]
    band = jnp.zeros((9, TD, PC), jnp.float32)
    for d in range(TD):
        for kd in range(3):
            p = d + kd - 1
            if p < 0:
                r0 = TD * C              # d-1 halo rows
            elif p >= TD:
                r0 = TD * C + C          # d+TD halo rows
            else:
                r0 = p * C
            band = band.at[:, d, r0:r0 + C].set(wt[:, kd, :])
    return band.astype(dtype)


def _pick_depth_tile(D, target):
    """Largest depth tile <= target that divides D and keeps the (TD, HW)
    output block TPU-tileable; falls back to zero-padding D."""
    for td in range(min(D, max(1, target)), 0, -1):
        if D % td == 0 and (td == D or td % 8 == 0):
            return td, D
    td = max(8, (min(D, target) // 8) * 8)
    return td, ((D + td - 1) // td) * td


def cost_agg_forward(features, proj_matrices, depth_values, stage_idx,
                     prob_weights, *, compute_dtype=jnp.bfloat16,
                     depth_tile=16):
    """JAX/Pallas equivalent of CostAgg.forward.

    features: [ref_fea, src_fea1, ...], each (B, C, H, W)
    proj_matrices: (B, nview, 2, 4, 4)
    depth_values: (B, D, H, W)
    returns: (B, num_src_views, D, H, W) float32
    """
    ref_fea = features[0]
    B, C, H, W = ref_fea.shape
    D = depth_values.shape[1]
    V = len(features) - 1
    HW = H * W

    TD, Dp = _pick_depth_tile(D, depth_tile)

    ref_new = _combine_proj(proj_matrices[:, 0])
    ref_k = ref_fea.reshape(B, C, HW).astype(compute_dtype)
    w = prob_weights[stage_idx][0]                                  # (C, 3, 3, 3)
    band = _build_band(w, TD, compute_dtype)

    col = jnp.arange(HW, dtype=jnp.int32) % W
    col_masks = jnp.stack([col != 0, col != W - 1]).astype(jnp.float32)

    outs = []
    for i in range(1, len(features)):
        src_new = _combine_proj(proj_matrices[:, i])
        # depth-major (B, D, C, HW), emitted directly in the compute dtype ->
        # the kernel input is a free reshape, no transpose/stack HBM pass.
        wv = homo_warp(features[i], src_new, ref_new, depth_values,
                       out_dtype=compute_dtype)
        if Dp != D:
            # TODO(synk): ragged depth handled by zero-padding the warped
            # volume (extra HBM pass); a masked last tile would avoid it.
            wv = jnp.pad(wv, ((0, 0), (0, Dp - D), (0, 0), (0, 0)))
        warp2d = wv.reshape(B, Dp * C, HW)
        o = cost_agg_pallas(band, col_masks, ref_k, warp2d,
                            V=1, H=H, W=W, D=Dp, TD=TD)             # (B, Dp, HW)
        outs.append(o[:, :D] if Dp != D else o)
    out = jnp.stack(outs, axis=1)                                   # (B, V, D, HW)
    return out.reshape(B, V, D, H, W)


# --------------------------- pure-JAX reference ------------------------------

def _conv3d_ref(vol, w):
    return lax.conv_general_dilated(
        vol, w, window_strides=(1, 1, 1),
        padding=((1, 1), (1, 1), (1, 1)),
        dimension_numbers=("NCDHW", "OIDHW", "NCDHW"))


def cost_agg_ref(features, proj_matrices, depth_values, stage_idx, prob_weights,
                 *, compute_dtype=jnp.float32):
    """Pure-JAX reference; mirrors the kernel's input/weight/cost quantization
    (a no-op for compute_dtype=float32)."""
    def q(x):
        return x.astype(compute_dtype).astype(jnp.float32)

    ref_fea = q(features[0])
    B, C, H, W = features[0].shape
    D = depth_values.shape[1]
    w = q(prob_weights[stage_idx])
    ref_new = _combine_proj(proj_matrices[:, 0])
    outs = []
    for i in range(1, len(features)):
        src_new = _combine_proj(proj_matrices[:, i])
        wrp = homo_warp(features[i], src_new, ref_new, depth_values)  # (B,D,C,HW)
        wrp = q(jnp.transpose(wrp, (0, 2, 1, 3)).reshape(B, C, D, H, W))
        vol = q(ref_fea[:, :, None, :, :] * wrp)
        outs.append(_conv3d_ref(vol, w))
    return jnp.concatenate(outs, axis=1)


# --------------------------------- main --------------------------------------

if __name__ == "__main__":
    B, C, H, W, D = 2, 4, 16, 16, 16
    num_views = 3                       # 1 ref + 2 src views
    in_channels = [C, 2 * C]            # per-stage Conv3d input channels
    stage_idx = 0

    key = jax.random.PRNGKey(0)
    kf, kd, kt, kw = jax.random.split(key, 4)

    features = [jax.random.normal(k, (B, C, H, W), jnp.float32)
                for k in jax.random.split(kf, num_views)]

    base_depth = jnp.linspace(1.0, 2.0, D, dtype=jnp.float32)
    depth_values = (base_depth[None, :, None, None]
                    + 0.01 * jax.random.normal(kd, (B, D, H, W), jnp.float32))

    # camera matrices: (B, nview, 2, 4, 4); [:, :, 0]=extrinsics, [:, :, 1]=intrinsics
    f = 20.0
    K = jnp.array([[f, 0.0, W / 2.0, 0.0],
                   [0.0, f, H / 2.0, 0.0],
                   [0.0, 0.0, 1.0, 0.0],
                   [0.0, 0.0, 0.0, 1.0]], jnp.float32)
    trans = 0.05 * jax.random.normal(kt, (B, num_views, 3), jnp.float32)
    trans = trans.at[:, 0, :].set(0.0)            # reference camera at origin
    ext = jnp.broadcast_to(jnp.eye(4, dtype=jnp.float32), (B, num_views, 4, 4))
    ext = ext.at[:, :, :3, 3].set(trans)
    intr = jnp.broadcast_to(K, (B, num_views, 4, 4))
    proj_matrices = jnp.stack([ext, intr], axis=2)   # (B, nview, 2, 4, 4)

    # deterministic Conv3d(in_ch, 1, 3, stride=1, pad=1, bias=False) weights
    prob_weights = [0.1 * jax.random.normal(k, (1, c, 3, 3, 3), jnp.float32)
                    for k, c in zip(jax.random.split(kw, len(in_channels)),
                                    in_channels)]

    @partial(jax.jit, static_argnums=(4,))
    def run(feats, projs, dvals, pws, dt):
        return cost_agg_forward(feats, projs, dvals, stage_idx, pws,
                                compute_dtype=dt)

    # float32 path (module semantics).  Looser tolerance: TPU f32 matmul/conv
    # default precision uses bf16 passes on both sides of the comparison.
    out32 = jax.block_until_ready(
        run(features, proj_matrices, depth_values, prob_weights, jnp.float32))
    assert out32.shape == (B, num_views - 1, D, H, W)
    ref32 = cost_agg_ref(features, proj_matrices, depth_values, stage_idx,
                         prob_weights, compute_dtype=jnp.float32)
    np.testing.assert_allclose(np.asarray(out32), np.asarray(ref32),
                               rtol=2e-2, atol=2e-2)

    # bf16-input path (default; halves HBM traffic, f32 MXU accumulation).
    outbf = jax.block_until_ready(
        run(features, proj_matrices, depth_values, prob_weights, jnp.bfloat16))
    refbf = cost_agg_ref(features, proj_matrices, depth_values, stage_idx,
                         prob_weights, compute_dtype=jnp.bfloat16)
    np.testing.assert_allclose(np.asarray(outbf), np.asarray(refbf),
                               rtol=2e-3, atol=2e-3)

    print("KERNEL_OK")
</pallas_src>

<mosaic_0001>
module attributes {stable_mosaic.version = 11 : i64} {
  func.func @kernel(%arg0: i32, %arg1: i32, %arg2: i32, %arg3: memref<9x16x72xf32, #tpu.memory_space<vmem>>, %arg4: memref<2x256xf32, #tpu.memory_space<vmem>>, %arg5: memref<1x4x256xf32, #tpu.memory_space<vmem>>, %arg6: memref<1x64x256xf32, #tpu.memory_space<vmem>>, %arg7: memref<1x8x256xf32, #tpu.memory_space<vmem>>, %arg8: memref<1x16x256xf32, #tpu.memory_space<vmem>>, %arg9: memref<72x512xf32, #tpu.memory_space<vmem>>, %arg10: memref<64x256xf32, #tpu.memory_space<vmem>>) attributes {dimension_semantics = [#tpu.dimension_semantics<parallel>, #tpu.dimension_semantics<parallel>, #tpu.dimension_semantics<arbitrary>], iteration_bounds = array<i64: 2, 1, 1>, scalar_prefetch = 0 : i64, scratch_operands = 2 : i64, tpu.core_type = #tpu.core_type<tc>, window_params = [{pipeline_mode = #tpu.pipeline_mode<synchronous>, transform_indices = @transform_0, window_bounds = array<i64: 9, 16, 72>}, {pipeline_mode = #tpu.pipeline_mode<synchronous>, transform_indices = @transform_1, window_bounds = array<i64: 2, 256>}, {transform_indices = @transform_2, window_bounds = array<i64: 1, 4, 256>}, {transform_indices = @transform_3, window_bounds = array<i64: 1, 64, 256>}, {transform_indices = @transform_4, window_bounds = array<i64: 1, 8, 256>}, {transform_indices = @transform_5, window_bounds = array<i64: 1, 16, 256>}]} {
    %c0_i32 = arith.constant 0 : i32
    %0 = arith.cmpi eq, %arg2, %c0_i32 : i32
    %1 = arith.extui %0 : i1 to i32
    %c0_i32_0 = arith.constant 0 : i32
    %2 = arith.cmpi ne, %1, %c0_i32_0 : i32
    scf.if %2 {
      %cst_54 = arith.constant 0.000000e+00 : f32
      %81 = vector.broadcast %cst_54 : f32 to vector<72x512xf32>
      %c0_55 = arith.constant 0 : index
      %c0_56 = arith.constant 0 : index
      %82 = vector.load %arg9[%c0_55, %c0_56] : memref<72x512xf32, #tpu.memory_space<vmem>>, vector<72x512xf32>
      tpu.vector_store %arg9[%c0_55, %c0_56], %81 {strides = array<i32>} : memref<72x512xf32, #tpu.memory_space<vmem>>, vector<72x512xf32>,
      %c0_57 = arith.constant 0 : index
      %c0_58 = arith.constant 0 : index
      %c0_59 = arith.constant 0 : index
      %83 = vector.load %arg5[%c0_57, %c0_58, %c0_59] : memref<1x4x256xf32, #tpu.memory_space<vmem>>, vector<1x4x256xf32>
      %84 = vector.shape_cast %83 : vector<1x4x256xf32> to vector<4x256xf32>
      %c0_60 = arith.constant 0 : index
      %c0_61 = arith.constant 0 : index
      %85 = vector.load %arg10[%c0_60, %c0_61] : memref<64x256xf32, #tpu.memory_space<vmem>>, vector<4x256xf32>
      tpu.vector_store %arg10[%c0_60, %c0_61], %84 {strides = array<i32>} : memref<64x256xf32, #tpu.memory_space<vmem>>, vector<4x256xf32>,
      %c4_62 = arith.constant 4 : index
      %c0_63 = arith.constant 0 : index
      %86 = vector.load %arg10[%c4_62, %c0_63] : memref<64x256xf32, #tpu.memory_space<vmem>>, vector<4x256xf32>
      tpu.vector_store %arg10[%c4_62, %c0_63], %84 {strides = array<i32>} : memref<64x256xf32, #tpu.memory_space<vmem>>, vector<4x256xf32>,
      %c8_64 = arith.constant 8 : index
      %c0_65 = arith.constant 0 : index
      %87 = vector.load %arg10[%c8_64, %c0_65] : memref<64x256xf32, #tpu.memory_space<vmem>>, vector<4x256xf32>
      tpu.vector_store %arg10[%c8_64, %c0_65], %84 {strides = array<i32>} : memref<64x256xf32, #tpu.memory_space<vmem>>, vector<4x256xf32>,
      %c12 = arith.constant 12 : index
      %c0_66 = arith.constant 0 : index
      %88 = vector.load %arg10[%c12, %c0_66] : memref<64x256xf32, #tpu.memory_space<vmem>>, vector<4x256xf32>
      tpu.vector_store %arg10[%c12, %c0_66], %84 {strides = array<i32>} : memref<64x256xf32, #tpu.memory_space<vmem>>, vector<4x256xf32>,
      %c16 = arith.constant 16 : index
      %c0_67 = arith.constant 0 : index
      %89 = vector.load %arg10[%c16, %c0_67] : memref<64x256xf32, #tpu.memory_space<vmem>>, vector<4x256xf32>
      tpu.vector_store %arg10[%c16, %c0_67], %84 {strides = array<i32>} : memref<64x256xf32, #tpu.memory_space<vmem>>, vector<4x256xf32>,
      %c20 = arith.constant 20 : index
      %c0_68 = arith.constant 0 : index
      %90 = vector.load %arg10[%c20, %c0_68] : memref<64x256xf32, #tpu.memory_space<vmem>>, vector<4x256xf32>
      tpu.vector_store %arg10[%c20, %c0_68], %84 {strides = array<i32>} : memref<64x256xf32, #tpu.memory_space<vmem>>, vector<4x256xf32>,
      %c24 = arith.constant 24 : index
      %c0_69 = arith.constant 0 : index
      %91 = vector.load %arg10[%c24, %c0_69] : memref<64x256xf32, #tpu.memory_space<vmem>>, vector<4x256xf32>
      tpu.vector_store %arg10[%c24, %c0_69], %84 {strides = array<i32>} : memref<64x256xf32, #tpu.memory_space<vmem>>, vector<4x256xf32>,
      %c28 = arith.constant 28 : index
      %c0_70 = arith.constant 0 : index
      %92 = vector.load %arg10[%c28, %c0_70] : memref<64x256xf32, #tpu.memory_space<vmem>>, vector<4x256xf32>
      tpu.vector_store %arg10[%c28, %c0_70], %84 {strides = array<i32>} : memref<64x256xf32, #tpu.memory_space<vmem>>, vector<4x256xf32>,
      %c32 = arith.constant 32 : index
      %c0_71 = arith.constant 0 : index
      %93 = vector.load %arg10[%c32, %c0_71] : memref<64x256xf32, #tpu.memory_space<vmem>>, vector<4x256xf32>
      tpu.vector_store %arg10[%c32, %c0_71], %84 {strides = array<i32>} : memref<64x256xf32, #tpu.memory_space<vmem>>, vector<4x256xf32>,
      %c36 = arith.constant 36 : index
      %c0_72 = arith.constant 0 : index
      %94 = vector.load %arg10[%c36, %c0_72] : memref<64x256xf32, #tpu.memory_space<vmem>>, vector<4x256xf32>
      tpu.vector_store %arg10[%c36, %c0_72], %84 {strides = array<i32>} : memref<64x256xf32, #tpu.memory_space<vmem>>, vector<4x256xf32>,
      %c40 = arith.constant 40 : index
      %c0_73 = arith.constant 0 : index
      %95 = vector.load %arg10[%c40, %c0_73] : memref<64x256xf32, #tpu.memory_space<vmem>>, vector<4x256xf32>
      tpu.vector_store %arg10[%c40, %c0_73], %84 {strides = array<i32>} : memref<64x256xf32, #tpu.memory_space<vmem>>, vector<4x256xf32>,
      %c44 = arith.constant 44 : index
      %c0_74 = arith.constant 0 : index
      %96 = vector.load %arg10[%c44, %c0_74] : memref<64x256xf32, #tpu.memory_space<vmem>>, vector<4x256xf32>
      tpu.vector_store %arg10[%c44, %c0_74], %84 {strides = array<i32>} : memref<64x256xf32, #tpu.memory_space<vmem>>, vector<4x256xf32>,
      %c48 = arith.constant 48 : index
      %c0_75 = arith.constant 0 : index
      %97 = vector.load %arg10[%c48, %c0_75] : memref<64x256xf32, #tpu.memory_space<vmem>>, vector<4x256xf32>
      tpu.vector_store %arg10[%c48, %c0_75], %84 {strides = array<i32>} : memref<64x256xf32, #tpu.memory_space<vmem>>, vector<4x256xf32>,
      %c52 = arith.constant 52 : index
      %c0_76 = arith.constant 0 : index
      %98 = vector.load %arg10[%c52, %c0_76] : memref<64x256xf32, #tpu.memory_space<vmem>>, vector<4x256xf32>
      tpu.vector_store %arg10[%c52, %c0_76], %84 {strides = array<i32>} : memref<64x256xf32, #tpu.memory_space<vmem>>, vector<4x256xf32>,
      %c56 = arith.constant 56 : index
      %c0_77 = arith.constant 0 : index
      %99 = vector.load %arg10[%c56, %c0_77] : memref<64x256xf32, #tpu.memory_space<vmem>>, vector<4x256xf32>
      tpu.vector_store %arg10[%c56, %c0_77], %84 {strides = array<i32>} : memref<64x256xf32, #tpu.memory_space<vmem>>, vector<4x256xf32>,
      %c60 = arith.constant 60 : index
      %c0_78 = arith.constant 0 : index
      %100 = vector.load %arg10[%c60, %c0_78] : memref<64x256xf32, #tpu.memory_space<vmem>>, vector<4x256xf32>
      tpu.vector_store %arg10[%c60, %c0_78], %84 {strides = array<i32>} : memref<64x256xf32, #tpu.memory_space<vmem>>, vector<4x256xf32>,
    } else {
    }
    %c0_i32_1 = arith.constant 0 : i32
    %3 = arith.cmpi sgt, %arg2, %c0_i32_1 : i32
    %4 = arith.extui %3 : i1 to i32
    %c0_i32_2 = arith.constant 0 : i32
    %5 = arith.cmpi ne, %4, %c0_i32_2 : i32
    scf.if %5 {
      %c60 = arith.constant 60 : index
      %c128_54 = arith.constant 128 : index
      %81 = vector.load %arg9[%c60, %c128_54] : memref<72x512xf32, #tpu.memory_space<vmem>>, vector<4x256xf32>
      %c64 = arith.constant 64 : index
      %c128_55 = arith.constant 128 : index
      %82 = vector.load %arg9[%c64, %c128_55] : memref<72x512xf32, #tpu.memory_space<vmem>>, vector<4x256xf32>
      tpu.vector_store %arg9[%c64, %c128_55], %81 {strides = array<i32>} : memref<72x512xf32, #tpu.memory_space<vmem>>, vector<4x256xf32>,
    } else {
    }
    %c0 = arith.constant 0 : index
    %c0_3 = arith.constant 0 : index
    %6 = vector.load %arg10[%c0, %c0_3] : memref<64x256xf32, #tpu.memory_space<vmem>>, vector<64x256xf32>
    %c0_4 = arith.constant 0 : index
    %c0_5 = arith.constant 0 : index
    %c0_6 = arith.constant 0 : index
    %7 = vector.load %arg6[%c0_4, %c0_5, %c0_6] : memref<1x64x256xf32, #tpu.memory_space<vmem>>, vector<1x64x256xf32>
    %8 = vector.shape_cast %7 : vector<1x64x256xf32> to vector<64x256xf32>
    %9 = arith.mulf %6, %8 : vector<64x256xf32>
    %c0_7 = arith.constant 0 : index
    %c128 = arith.constant 128 : index
    %10 = vector.load %arg9[%c0_7, %c128] : memref<72x512xf32, #tpu.memory_space<vmem>>, vector<64x256xf32>
    tpu.vector_store %arg9[%c0_7, %c128], %9 {strides = array<i32>} : memref<72x512xf32, #tpu.memory_space<vmem>>, vector<64x256xf32>,
    %c0_i32_8 = arith.constant 0 : i32
    %11 = arith.cmpi eq, %arg2, %c0_i32_8 : i32
    %cst = arith.constant 0.000000e+00 : f32
    %cst_9 = arith.constant 1.000000e+00 : f32
    %12 = arith.select %11, %cst, %cst_9 : f32
    %c0_10 = arith.constant 0 : index
    %c0_11 = arith.constant 0 : index
    %c0_12 = arith.constant 0 : index
    %13 = vector.load %arg5[%c0_10, %c0_11, %c0_12] : memref<1x4x256xf32, #tpu.memory_space<vmem>>, vector<1x4x256xf32>
    %14 = vector.shape_cast %13 : vector<1x4x256xf32> to vector<4x256xf32>
    %c0_13 = arith.constant 0 : index
    %c0_14 = arith.constant 0 : index
    %c0_15 = arith.constant 0 : index
    %15 = vector.load %arg7[%c0_13, %c0_14, %c0_15] : memref<1x8x256xf32, #tpu.memory_space<vmem>>, vector<1x4x256xf32>
    %16 = vector.shape_cast %15 : vector<1x4x256xf32> to vector<4x256xf32>
    %17 = arith.mulf %14, %16 : vector<4x256xf32>
    %18 = vector.broadcast %12 : f32 to vector<4x256xf32>
    %19 = arith.mulf %17, %18 : vector<4x256xf32>
    %c68 = arith.constant 68 : index
    %c128_16 = arith.constant 128 : index
    %20 = vector.load %arg9[%c68, %c128_16] : memref<72x512xf32, #tpu.memory_space<vmem>>, vector<4x256xf32>
    tpu.vector_store %arg9[%c68, %c128_16], %19 {strides = array<i32>} : memref<72x512xf32, #tpu.memory_space<vmem>>, vector<4x256xf32>,
    %c0_17 = arith.constant 0 : index
    %c0_18 = arith.constant 0 : index
    %21 = vector.load %arg9[%c0_17, %c0_18] : memref<72x512xf32, #tpu.memory_space<vmem>>, vector<72x512xf32>
    %c0_19 = arith.constant 0 : index
    %c0_20 = arith.constant 0 : index
    %22 = vector.load %arg4[%c0_19, %c0_20] : memref<2x256xf32, #tpu.memory_space<vmem>>, vector<1x256xf32>
    %23 = vector.shape_cast %22 : vector<1x256xf32> to vector<1x256xf32>
    %24 = vector.broadcast %23 : vector<1x256xf32> to vector<16x256xf32>
    %c1 = arith.constant 1 : index
    %c0_21 = arith.constant 0 : index
    %25 = vector.load %arg4[%c1, %c0_21] : memref<2x256xf32, #tpu.memory_space<vmem>>, vector<1x256xf32>
    %26 = vector.shape_cast %25 : vector<1x256xf32> to vector<1x256xf32>
    %27 = vector.broadcast %26 : vector<1x256xf32> to vector<16x256xf32>
    %c0_22 = arith.constant 0 : index
    %c0_23 = arith.constant 0 : index
    %c0_24 = arith.constant 0 : index
    %28 = vector.load %arg3[%c0_22, %c0_23, %c0_24] : memref<9x16x72xf32, #tpu.memory_space<vmem>>, vector<1x16x72xf32>
    %29 = vector.shape_cast %28 : vector<1x16x72xf32> to vector<16x72xf32>
    %cst_25 = arith.constant dense<0.000000e+00> : vector<16x512xf32>
    %30 = tpu.matmul %29, %21, %cst_25 {dimension_numbers = #tpu.dot_dimension_numbers<[1], [0], [0], [1], [0, 0, 1, 1], [], []>} : vector<16x72xf32>, vector<72x512xf32>, vector<16x512xf32> -> vector<16x512xf32>
    %31 = vector.extract_strided_slice %30 {offsets = [0, 111], sizes = [16, 256], strides = [1, 1]} : vector<16x512xf32> to vector<16x256xf32>
    %32 = arith.mulf %31, %24 : vector<16x256xf32>
    %c1_26 = arith.constant 1 : index
    %c0_27 = arith.constant 0 : index
    %c0_28 = arith.constant 0 : index
    %33 = vector.load %arg3[%c1_26, %c0_27, %c0_28] : memref<9x16x72xf32, #tpu.memory_space<vmem>>, vector<1x16x72xf32>
    %34 = vector.shape_cast %33 : vector<1x16x72xf32> to vector<16x72xf32>
    %cst_29 = arith.constant dense<0.000000e+00> : vector<16x512xf32>
    %35 = tpu.matmul %34, %21, %cst_29 {dimension_numbers = #tpu.dot_dimension_numbers<[1], [0], [0], [1], [0, 0, 1, 1], [], []>} : vector<16x72xf32>, vector<72x512xf32>, vector<16x512xf32> -> vector<16x512xf32>
    %36 = vector.extract_strided_slice %35 {offsets = [0, 112], sizes = [16, 256], strides = [1, 1]} : vector<16x512xf32> to vector<16x256xf32>
    %37 = arith.addf %32, %36 : vector<16x256xf32>
    %c2 = arith.constant 2 : index
    %c0_30 = arith.constant 0 : index
    %c0_31 = arith.constant 0 : index
    %38 = vector.load %arg3[%c2, %c0_30, %c0_31] : memref<9x16x72xf32, #tpu.memory_space<vmem>>, vector<1x16x72xf32>
    %39 = vector.shape_cast %38 : vector<1x16x72xf32> to vector<16x72xf32>
    %cst_32 = arith.constant dense<0.000000e+00> : vector<16x512xf32>
    %40 = tpu.matmul %39, %21, %cst_32 {dimension_numbers = #tpu.dot_dimension_numbers<[1], [0], [0], [1], [0, 0, 1, 1], [], []>} : vector<16x72xf32>, vector<72x512xf32>, vector<16x512xf32> -> vector<16x512xf32>
    %41 = vector.extract_strided_slice %40 {offsets = [0, 113], sizes = [16, 256], strides = [1, 1]} : vector<16x512xf32> to vector<16x256xf32>
    %42 = arith.mulf %41, %27 : vector<16x256xf32>
    %43 = arith.addf %37, %42 : vector<16x256xf32>
    %c3 = arith.constant 3 : index
    %c0_33 = arith.constant 0 : index
    %c0_34 = arith.constant 0 : index
    %44 = vector.load %arg3[%c3, %c0_33, %c0_34] : memref<9x16x72xf32, #tpu.memory_space<vmem>>, vector<1x16x72xf32>
    %45 = vector.shape_cast %44 : vector<1x16x72xf32> to vector<16x72xf32>
    %cst_35 = arith.constant dense<0.000000e+00> : vector<16x512xf32>
    %46 = tpu.matmul %45, %21, %cst_35 {dimension_numbers = #tpu.dot_dimension_numbers<[1], [0], [0], [1], [0, 0, 1, 1], [], []>} : vector<16x72xf32>, vector<72x512xf32>, vector<16x512xf32> -> vector<16x512xf32>
    %47 = vector.extract_strided_slice %46 {offsets = [0, 127], sizes = [16, 256], strides = [1, 1]} : vector<16x512xf32> to vector<16x256xf32>
    %48 = arith.mulf %47, %24 : vector<16x256xf32>
    %49 = arith.addf %43, %48 : vector<16x256xf32>
    %c4 = arith.constant 4 : index
    %c0_36 = arith.constant 0 : index
    %c0_37 = arith.constant 0 : index
    %50 = vector.load %arg3[%c4, %c0_36, %c0_37] : memref<9x16x72xf32, #tpu.memory_space<vmem>>, vector<1x16x72xf32>
    %51 = vector.shape_cast %50 : vector<1x16x72xf32> to vector<16x72xf32>
    %cst_38 = arith.constant dense<0.000000e+00> : vector<16x512xf32>
    %52 = tpu.matmul %51, %21, %cst_38 {dimension_numbers = #tpu.dot_dimension_numbers<[1], [0], [0], [1], [0, 0, 1, 1], [], []>} : vector<16x72xf32>, vector<72x512xf32>, vector<16x512xf32> -> vector<16x512xf32>
    %53 = vector.extract_strided_slice %52 {offsets = [0, 128], sizes = [16, 256], strides = [1, 1]} : vector<16x512xf32> to vector<16x256xf32>
    %54 = arith.addf %49, %53 : vector<16x256xf32>
    %c5 = arith.constant 5 : index
    %c0_39 = arith.constant 0 : index
    %c0_40 = arith.constant 0 : index
    %55 = vector.load %arg3[%c5, %c0_39, %c0_40] : memref<9x16x72xf32, #tpu.memory_space<vmem>>, vector<1x16x72xf32>
    %56 = vector.shape_cast %55 : vector<1x16x72xf32> to vector<16x72xf32>
    %cst_41 = arith.constant dense<0.000000e+00> : vector<16x512xf32>
    %57 = tpu.matmul %56, %21, %cst_41 {dimension_numbers = #tpu.dot_dimension_numbers<[1], [0], [0], [1], [0, 0, 1, 1], [], []>} : vector<16x72xf32>, vector<72x512xf32>, vector<16x512xf32> -> vector<16x512xf32>
    %58 = vector.extract_strided_slice %57 {offsets = [0, 129], sizes = [16, 256], strides = [1, 1]} : vector<16x512xf32> to vector<16x256xf32>
    %59 = arith.mulf %58, %27 : vector<16x256xf32>
    %60 = arith.addf %54, %59 : vector<16x256xf32>
    %c6 = arith.constant 6 : index
    %c0_42 = arith.constant 0 : index
    %c0_43 = arith.constant 0 : index
    %61 = vector.load %arg3[%c6, %c0_42, %c0_43] : memref<9x16x72xf32, #tpu.memory_space<vmem>>, vector<1x16x72xf32>
    %62 = vector.shape_cast %61 : vector<1x16x72xf32> to vector<16x72xf32>
    %cst_44 = arith.constant dense<0.000000e+00> : vector<16x512xf32>
    %63 = tpu.matmul %62, %21, %cst_44 {dimension_numbers = #tpu.dot_dimension_numbers<[1], [0], [0], [1], [0, 0, 1, 1], [], []>} : vector<16x72xf32>, vector<72x512xf32>, vector<16x512xf32> -> vector<16x512xf32>
    %64 = vector.extract_strided_slice %63 {offsets = [0, 143], sizes = [16, 256], strides = [1, 1]} : vector<16x512xf32> to vector<16x256xf32>
    %65 = arith.mulf %64, %24 : vector<16x256xf32>
    %66 = arith.addf %60, %65 : vector<16x256xf32>
    %c7 = arith.constant 7 : index
    %c0_45 = arith.constant 0 : index
    %c0_46 = arith.constant 0 : index
    %67 = vector.load %arg3[%c7, %c0_45, %c0_46] : memref<9x16x72xf32, #tpu.memory_space<vmem>>, vector<1x16x72xf32>
    %68 = vector.shape_cast %67 : vector<1x16x72xf32> to vector<16x72xf32>
    %cst_47 = arith.constant dense<0.000000e+00> : vector<16x512xf32>
    %69 = tpu.matmul %68, %21, %cst_47 {dimension_numbers = #tpu.dot_dimension_numbers<[1], [0], [0], [1], [0, 0, 1, 1], [], []>} : vector<16x72xf32>, vector<72x512xf32>, vector<16x512xf32> -> vector<16x512xf32>
    %70 = vector.extract_strided_slice %69 {offsets = [0, 144], sizes = [16, 256], strides = [1, 1]} : vector<16x512xf32> to vector<16x256xf32>
    %71 = arith.addf %66, %70 : vector<16x256xf32>
    %c8 = arith.constant 8 : index
    %c0_48 = arith.constant 0 : index
    %c0_49 = arith.constant 0 : index
    %72 = vector.load %arg3[%c8, %c0_48, %c0_49] : memref<9x16x72xf32, #tpu.memory_space<vmem>>, vector<1x16x72xf32>
    %73 = vector.shape_cast %72 : vector<1x16x72xf32> to vector<16x72xf32>
    %cst_50 = arith.constant dense<0.000000e+00> : vector<16x512xf32>
    %74 = tpu.matmul %73, %21, %cst_50 {dimension_numbers = #tpu.dot_dimension_numbers<[1], [0], [0], [1], [0, 0, 1, 1], [], []>} : vector<16x72xf32>, vector<72x512xf32>, vector<16x512xf32> -> vector<16x512xf32>
    %75 = vector.extract_strided_slice %74 {offsets = [0, 145], sizes = [16, 256], strides = [1, 1]} : vector<16x512xf32> to vector<16x256xf32>
    %76 = arith.mulf %75, %27 : vector<16x256xf32>
    %77 = arith.addf %71, %76 : vector<16x256xf32>
    %c0_51 = arith.constant 0 : index
    %c0_52 = arith.constant 0 : index
    %c0_53 = arith.constant 0 : index
    %78 = vector.load %arg8[%c0_51, %c0_52, %c0_53] : memref<1x16x256xf32, #tpu.memory_space<vmem>>, vector<1x16x256xf32>
    %79 = vector.shape_cast %78 : vector<1x16x256xf32> to vector<16x256xf32>
    %80 = vector.shape_cast %77 : vector<16x256xf32> to vector<1x16x256xf32>
    tpu.vector_store %arg8[%c0_51, %c0_52, %c0_53], %80 {strides = array<i32>} : memref<1x16x256xf32, #tpu.memory_space<vmem>>, vector<1x16x256xf32>,
    return
  }
  func.func @transform_0(%arg0: i32, %arg1: i32, %arg2: i32) -> (i32, i32, i32) {
    %c0_i32 = arith.constant 0 : i32
    %c0_i32_0 = arith.constant 0 : i32
    %c0_i32_1 = arith.constant 0 : i32
    %c0_i32_2 = arith.constant 0 : i32
    return %c0_i32, %c0_i32_0, %c0_i32_1 : i32, i32, i32
  }
  func.func @transform_1(%arg0: i32, %arg1: i32, %arg2: i32) -> (i32, i32) {
    %c0_i32 = arith.constant 0 : i32
    %c0_i32_0 = arith.constant 0 : i32
    %c0_i32_1 = arith.constant 0 : i32
    return %c0_i32, %c0_i32_0 : i32, i32
  }
  func.func @transform_2(%arg0: i32, %arg1: i32, %arg2: i32) -> (i32, i32, i32) {
    %c0_i32 = arith.constant 0 : i32
    %c0_i32_0 = arith.constant 0 : i32
    %c0_i32_1 = arith.constant 0 : i32
    return %arg0, %c0_i32, %c0_i32_0 : i32, i32, i32
  }
  func.func @transform_3(%arg0: i32, %arg1: i32, %arg2: i32) -> (i32, i32, i32) {
    %c1_i32 = arith.constant 1 : i32
    %0 = arith.muli %arg0, %c1_i32 : i32
    %1 = arith.addi %0, %arg1 : i32
    %c0_i32 = arith.constant 0 : i32
    %c0_i32_0 = arith.constant 0 : i32
    return %1, %arg2, %c0_i32 : i32, i32, i32
  }
  func.func @transform_4(%arg0: i32, %arg1: i32, %arg2: i32) -> (i32, i32, i32) {
    %c1_i32 = arith.constant 1 : i32
    %0 = arith.muli %arg0, %c1_i32 : i32
    %1 = arith.addi %0, %arg1 : i32
    %c1_i32_0 = arith.constant 1 : i32
    %2 = arith.addi %arg2, %c1_i32_0 : i32
    %c8_i32 = arith.constant 8 : i32
    %3 = arith.muli %2, %c8_i32 : i32
    %c7_i32 = arith.constant 7 : i32
    %4 = arith.minsi %3, %c7_i32 : i32
    %c0_i32 = arith.constant 0 : i32
    %c0_i32_1 = arith.constant 0 : i32
    return %1, %4, %c0_i32 : i32, i32, i32
  }
  func.func @transform_5(%arg0: i32, %arg1: i32, %arg2: i32) -> (i32, i32, i32) {
    %c1_i32 = arith.constant 1 : i32
    %0 = arith.muli %arg0, %c1_i32 : i32
    %1 = arith.addi %0, %arg1 : i32
    %c0_i32 = arith.constant 0 : i32
    %c0_i32_0 = arith.constant 0 : i32
    return %1, %arg2, %c0_i32 : i32, i32, i32
  }
}

</mosaic_0001>

<llo_original>
// kernel: custom-call.31
$region0: #{custom-call.31}
  %s0 = inlined_call_operand.vmem [shape: f32[2,4,4], index: 0, kind: input, shape index: {}]
  %s1 = inlined_call_operand.vmem [shape: f32[2,4,4], index: 1, kind: output, shape index: {0}]
  %s2 = inlined_call_operand.hbm [shape: s32[2,4], index: 2, kind: output, shape index: {1}]
  %s3 = inlined_call_operand.vmem [shape: s32[2,4], index: 3, kind: output, shape index: {2}]
  %4 = xla_tuple %s1, %s2, %s3
  $region1: #{custom-call.31} parent=0
    #allocation0 [shape = 'u8[4096]{0}', space=vmem, size = 0x1000, scoped, tag = 'operand span for operand 0']
    #allocation1 [shape = 'u8[4096]{0}', space=vmem, size = 0x1000, scoped, tag = 'packed  for operand 0']
    #allocation2 [shape = 'u8[4096]{0}', space=vmem, size = 0x1000, scoped, tag = 'operand span for operand 1']
    #allocation3 [shape = 'u8[4096]{0}', space=vmem, size = 0x1000, scoped, tag = 'packed  for operand 1']
    #allocation4 [shape = 'u8[4096]{0}', space=vmem, size = 0x1000, scoped, tag = 'operand span for operand 2']
    #allocation5 [shape = 'u8[2048]{0}', space=vmem, size = 0x800, scoped, tag = 'packed  for operand 2']
    #allocation6 [shape = 's32[2]{0}', space=sflag, size = 0x8, scoped, tag = 'scoped memory for custom-call.31']
    #allocation7 [shape = 'u8[4096]{0}', space=vmem, size = 0x1000, scoped, tag = 'operand span for operand 3']
    #allocation8 [shape = 'u8[2048]{0}', space=vmem, size = 0x800, scoped, tag = 'packed  for operand 3']
    %5 = vsyncpa [#allocation6], 0
    %s6 = scalar_lea.sflag [#allocation6], 1
    %7 = vsyncpa %s6, 0
    loop: start=0, step=1, limit=4
    $region2: #{custom-call.31} parent=1 // loop_pre_header
      _
    $region3: #{custom-call.31} parent=1 // loop_header
      %s9 = sphi 0, %s13
      %p10 = scmp.ge.s32.totalorder %s9, 4
      %s21 = sphi 0, %s23
      %s24 = sphi 0, %s21
      %s25 = sphi 0, %s24
      %s41 = sphi 0, %s25
      %s49 = sphi 0, %s51
      %s52 = sphi 0, %s49
      %s53 = sphi 0, %s52
      %s69 = sphi 0, %s53
    $region4: #{custom-call.31} parent=1 // loop_header_branch
      %12 = sbr.rel (%p10) target = $region8
    $region5: #{custom-call.31} parent=1 // loop_body
      %s14 = ssub.s32 %s9, 1
      %s15 = ssub.s32 %s9, 2
      %s16 = sadd.s32 %s9, 1
      %s17 = sshrl.u32 %s9, 3
      %s18 = sshrl.u32 %s16, 3
      %s19 = ssub.s32 %s17, %s18
      %p20 = scmp.eq.s32.totalorder %s19, 0
      %s22 = sadd.s32 %s21, 1
      %s23 = scalar_select %p20, %s21, %s22
      %p26 = pneg %p20
      %p27 = scmp.eq.s32.totalorder %s9, 1
      %p28 = por %p26, %p27
      %p29 = scmp.ne.s32.totalorder %s21, %s24
      %p30 = scmp.eq.s32.totalorder %s9, 0
      %p31 = por %p29, %p30
      %p32 = scmp.ne.s32.totalorder %s21, %s24
      %p33 = scmp.eq.s32.totalorder %s14, 1
      %p34 = por %p32, %p33
      %p35 = scmp.ne.s32.totalorder %s24, %s25
      %p36 = scmp.eq.s32.totalorder %s14, 0
      %p37 = por %p35, %p36
      %p38 = scmp.ne.s32.totalorder %s24, %s25
      %p39 = scmp.eq.s32.totalorder %s15, 1
      %p40 = por %p38, %p39
      %p42 = scmp.ne.s32.totalorder %s25, %s41
      %p43 = scmp.eq.s32.totalorder %s15, 0
      %p44 = por %p42, %p43
      %s45 = sshrl.u32 %s9, 3
      %s46 = sshrl.u32 %s16, 3
      %s47 = ssub.s32 %s45, %s46
      %p48 = scmp.eq.s32.totalorder %s47, 0
      %s50 = sadd.s32 %s49, 1
      %s51 = scalar_select %p48, %s49, %s50
      %p54 = pneg %p48
      %p55 = scmp.eq.s32.totalorder %s9, 1
      %p56 = por %p54, %p55
      %p57 = scmp.ne.s32.totalorder %s49, %s52
      %p58 = scmp.eq.s32.totalorder %s9, 0
      %p59 = por %p57, %p58
      %p60 = scmp.ne.s32.totalorder %s49, %s52
      %p61 = scmp.eq.s32.totalorder %s14, 1
      %p62 = por %p60, %p61
      %p63 = scmp.ne.s32.totalorder %s52, %s53
      %p64 = scmp.eq.s32.totalorder %s14, 0
      %p65 = por %p63, %p64
      %p66 = scmp.ne.s32.totalorder %s52, %s53
      %p67 = scmp.eq.s32.totalorder %s15, 1
      %p68 = por %p66, %p67
      %p70 = scmp.ne.s32.totalorder %s53, %s69
      %p71 = scmp.eq.s32.totalorder %s15, 0
      %p72 = por %p70, %p71
      %p73 = scmp.le.s32.totalorder 1, %s9
      %p74 = scmp.lt.s32.totalorder %s9, 3
      %p75 = pnand %p73, %p74
      %p76 = pneg %p75
      // Predicated region
      $region9: #{custom-call.31} parent=5 // pred_check
        _
      $region10: #{custom-call.31} parent=5 // pred_check_branch
        %78 = sbr.rel (%p75) target = $region12
      $region11: #{custom-call.31} parent=5 // pred_region
        %s79 = ssub.s32 %s9, 1
      $region12: #{custom-call.31} parent=5 // pred_fallthru
        _
      %p80 = scmp.lt.s32.totalorder %s9, 2
      // Predicated region
      $region13: #{custom-call.31} parent=5 // pred_check
        %p81 = pneg %p80
      $region14: #{custom-call.31} parent=5 // pred_check_branch
        %83 = sbr.rel (%p81) target = $region16
      $region15: #{custom-call.31} parent=5 // pred_region
        %s84 = sand.u32 %s9, 1
        %s85 = sand.u32 %s9, 1
        %s86 = smul.addr %s85, 4
        %s87 = scalar_lea.vmem [#allocation1], %s86
        %s88 = smul.addr %s9, 4
        %s89 = scalar_lea.vmem %s0, %s88
        // Predicated region
        $region17: #{custom-call.31} parent=15 // pred_check
          _
        $region18: #{custom-call.31} parent=15 // pred_check_branch
          %91 = sbr.rel (0) target = $region20
        $region19: #{custom-call.31} parent=15 // pred_region
          // Predicated region
          $region21: #{custom-call.31} parent=19 // pred_check
            _
          $region22: #{custom-call.31} parent=19 // pred_check_branch
            %93 = sbr.rel target = $region24
          $region23: #{custom-call.31} parent=19 // pred_region
            // Predicated region
            $region36: #{custom-call.31} parent=23 // pred_check
              _
            $region37: #{custom-call.31} parent=23 // pred_check_branch
              %108 = sbr.rel (0) target = $region39
            $region38: #{custom-call.31} parent=23 // pred_region
              loop: start=0, step=1, limit=1
              $region40: #{custom-call.31} parent=38 // loop_pre_header
                _
              $region41: #{custom-call.31} parent=38 // loop_header
                %s111 = sphi 0, %s115
                %p112 = scmp.ge.s32.totalorder %s111, 1
                %s116 = sphi %s89, %s89
                %s117 = sphi %s87, %s87
              $region42: #{custom-call.31} parent=38 // loop_header_branch
                %114 = sbr.rel (%p112) target = $region46
              $region43: #{custom-call.31} parent=38 // loop_body
                %v118 = vld [vmem:[%s116] sm:$0xf]
                %119 = vst [vmem:[%s117] sm:$0xf] %v118
              $region44: #{custom-call.31} parent=38 // loop_footer
                %s115 = sadd.s32 1, %s111
              $region45: #{custom-call.31} parent=38 // loop_footer_branch
                %110 = sbr.rel target = $region41
              $region46: #{custom-call.31} parent=38 // loop_exit
                _
            $region39: #{custom-call.31} parent=23 // pred_fallthru
              _
          $region24: #{custom-call.31} parent=19 // pred_fallthru
            _
          // Predicated region
          $region25: #{custom-call.31} parent=19 // pred_check
            _
          $region26: #{custom-call.31} parent=19 // pred_check_branch
            %95 = sbr.rel (0) target = $region28
          $region27: #{custom-call.31} parent=19 // pred_region
            loop: start=0, step=1, limit=1
            $region29: #{custom-call.31} parent=27 // loop_pre_header
              _
            $region30: #{custom-call.31} parent=27 // loop_header
              %s98 = sphi 0, %s102
              %p99 = scmp.ge.s32.totalorder %s98, 1
              %s103 = sphi %s89, %s89
              %s104 = sphi %s87, %s87
            $region31: #{custom-call.31} parent=27 // loop_header_branch
              %101 = sbr.rel (%p99) target = $region35
            $region32: #{custom-call.31} parent=27 // loop_body
              %v105 = vld [vmem:[%s103] sm:$0xf]
              %106 = vst [vmem:[%s104] sm:$0xf] %v105
            $region33: #{custom-call.31} parent=27 // loop_footer
              %s102 = sadd.s32 1, %s98
            $region34: #{custom-call.31} parent=27 // loop_footer_branch
              %97 = sbr.rel target = $region30
            $region35: #{custom-call.31} parent=27 // loop_exit
              _
          $region28: #{custom-call.31} parent=19 // pred_fallthru
            _
        $region20: #{custom-call.31} parent=15 // pred_fallthru
          _
        %120 = vnop
      $region16: #{custom-call.31} parent=5 // pred_fallthru
        _
      %p121 = scmp.le.s32.totalorder 1, %s9
      %p122 = scmp.lt.s32.totalorder %s9, 3
      %p123 = pnand %p121, %p122
      %p124 = pneg %p123
      // Predicated region
      $region47: #{custom-call.31} parent=5 // pred_check
        _
      $region48: #{custom-call.31} parent=5 // pred_check_branch
        %126 = sbr.rel (%p123) target = $region50
      $region49: #{custom-call.31} parent=5 // pred_region
        #allocation9 [shape = 's32[4,128]{1,0}', space=vmem, size = 0x1000, scoped, tag = 'scratch for permutations']
        %s127 = ssub.s32 %s9, 1
        %s128 = sand.u32 %s14, 1
        %s129 = sand.u32 %s14, 1
        %s130 = smul.addr %s129, 4
        %s131 = scalar_lea.vmem [#allocation1], %s130
        %s132 = sand.u32 %s14, 1
        %s133 = sand.u32 %s14, 1
        %s134 = smul.addr %s133, 4
        %s135 = scalar_lea.vmem [#allocation1], %s134
        %s136 = sand.u32 %s14, 1
        %s137 = sand.u32 %s14, 1
        %s138 = smul.addr %s137, 4
        %s139 = scalar_lea.vmem [#allocation3], %s138
        %p140 = pneg %p37
        %p141 = pneg %p34
        %s142 = sand.u32 %s24, 1
        %s143 = scalar_lea.sflag [#allocation6], %s142
        %s144 = sand.u32 %s24, 1
        %s145 = smul.addr %s144, 2
        %s146 = scalar_lea.vmem [#allocation5], %s145
        %p147 = pneg %p65
        %p148 = pneg %p62
        %s149 = sand.u32 %s52, 1
        %s150 = sand.u32 %s52, 1
        %s151 = smul.addr %s150, 2
        %s152 = scalar_lea.vmem [#allocation8], %s151
        %s154 = sshllo.u32 0, 4
        %v155 = vld [vmem:[%s135] sm:%s154]
        %156 = vst [vmem:[#allocation0] sm:%s154] %v155
        %s157 = sshrl.u32 %s14, 3
        %s158 = sshrl.u32 %s14, 3
        %v159 = vld [vmem:[#allocation0] sm:$0xff]
        %160 = vst [vmem:[#allocation2] sm:$0xff] %v159
        %s161 = sand.u32 %s14, 7
        %s162 = scalar_lea.vmem [#allocation4], %s161
        %s163 = sand.u32 %s14, 7
        %s164 = scalar_lea.vmem [#allocation7], %s163
        %165 = vst [vmem:[%s162] sm:$0x1] 0
        %v166 = vlaneseq
        %v167 = vshrl.u32 %v166, 7
        %v168 = vmov %v167
        %170 = vst [vmem:[#allocation9] sm:$0xff] %v168
        loop: start=0, step=1, limit=4
        $region52: #{custom-call.31} parent=49 // loop_pre_header
          _
        $region53: #{custom-call.31} parent=49 // loop_header
          %s172 = sphi 0, %s176
          %p173 = scmp.ge.s32.totalorder %s172, 4
        $region54: #{custom-call.31} parent=49 // loop_header_branch
          %175 = sbr.rel (%p173) target = $region58
        $region55: #{custom-call.31} parent=49 // loop_body
          %v177 = vstv %s172
          %v178 = vlaneseq
          %v179 = vshrl.u32 %v178, 7
          %v180 = vmov %v179
          %v181 = vld [vmem:[#allocation2] sm:$0xff]
          %v182 = vand.u32 2147483647, %v181
          %v184 = vstv %s172
          %vm185 = vcmp.ge.s32.totalorder %v180, %v184
          %vm186 = vcmp.lt.s32.totalorder %v180, 4
          %vm187 = vmand %vm185, %vm186
          %vm188 = vcmp.lt.f32.partialorder -inf, %v182
          %vm189 = vmand %vm187, %vm188
          %v190 = vsel %vm189, %v180, %v177
          %v191 = vsel %vm189, %v182, -inf
          %v192 = vrot.slane %v191, 1
          %v193 = vrot.slane %v190, 1
          %vm194 = vcmp.ge.f32.partialorder %v192, %v191
          %v195 = vsel %vm194, %v192, %v191
          %v196 = vsel %vm194, %v193, %v190
          %v197 = vrot.slane %v192, 1
          %v198 = vrot.slane %v193, 1
          %vm199 = vcmp.ge.f32.partialorder %v197, %v195
          %v200 = vsel %vm199, %v197, %v195
          %v201 = vsel %vm199, %v198, %v196
          %v202 = vrot.slane %v197, 1
          %v203 = vrot.slane %v198, 1
          %vm204 = vcmp.ge.f32.partialorder %v202, %v200
          %v205 = vsel %vm204, %v202, %v200
          %v206 = vsel %vm204, %v203, %v201
          %v207 = vrot.slane %v202, 1
          %v208 = vrot.slane %v203, 1
          %vm209 = vcmp.ge.f32.partialorder %v207, %v205
          %v210 = vsel %vm209, %v207, %v205
          %v211 = vsel %vm209, %v208, %v206
          %v212 = vrot.slane %v207, 1
          %v213 = vrot.slane %v208, 1
          %vm214 = vcmp.ge.f32.partialorder %v212, %v210
          %v215 = vsel %vm214, %v212, %v210
          %v216 = vsel %vm214, %v213, %v211
          %v217 = vrot.slane %v212, 1
          %v218 = vrot.slane %v213, 1
          %vm219 = vcmp.ge.f32.partialorder %v217, %v215
          %v220 = vsel %vm219, %v217, %v215
          %v221 = vsel %vm219, %v218, %v216
          %v222 = vrot.slane %v217, 1
          %v223 = vrot.slane %v218, 1
          %vm224 = vcmp.ge.f32.partialorder %v222, %v220
          %v225 = vsel %vm224, %v222, %v220
          %v226 = vsel %vm224, %v223, %v221
          %s227 = ssub.s32 128, %s172
          %228 = vrot.lane.b32.xlu0 %v226, %s227
          %v229 = vpop.permute.xlu0 %228
          %s230 = vtos %v229
          %v231 = vstv %s172
          %v232 = vlaneseq
          %v233 = vand.u32 %v232, 127
          %vm234 = vcmp.eq.s32.totalorder %v233, %v231
          %v235 = vstv %s230
          %v236 = vld [vmem:[%s162] ss:$0 sm:$0xff]
          %v237 = vsel %vm234, %v235, %v236
          %238 = vst [vmem:[%s162] sm:$0x1] %v237
          %s239 = scalar_lea.vmem [#allocation2], %s172
          %s240 = scalar_lea.vmem [#allocation2], %s230
          %v241 = vld [vmem:[%s239] ss:$0 sm:$0xff]
          %v242 = vld [vmem:[%s240] ss:$0 sm:$0xff]
          %243 = vst [vmem:[%s240] sm:$0x1] %v241
          %244 = vst [vmem:[%s239] sm:$0x1] %v242
          %s245 = scalar_lea.vmem [#allocation9], %s172
          %s246 = scalar_lea.vmem [#allocation9], %s230
          %v247 = vld [vmem:[%s245] ss:$0 sm:$0xff]
          %v248 = vld [vmem:[%s246] ss:$0 sm:$0xff]
          %249 = vst [vmem:[%s246] sm:$0x1] %v247
          %250 = vst [vmem:[%s245] sm:$0x1] %v248
          %vm251 = vcmp.ne.f32.partialorder %v242, 0.0
          %vm252 = vmand %vm234, %vm251
          %v253 = vsel %vm252, %v242, 1.0
          %v254 = vlaneseq
          %v255 = vand.u32 %v254, 127
          %v256 = vstv %s172
          %vm257 = vcmp.gt.s32.totalorder %v255, %v256
          %v258 = vsel %vm257, %v242, 0.0
          %v259 = vlaneseq
          %v260 = vshrl.u32 %v259, 7
          %v261 = vmov %v260
          %v262 = vld [vmem:[#allocation2] sm:$0xff]
          %v264 = vstv %s172
          %vm265 = vcmp.gt.s32.totalorder %v261, %v264
          %v266 = vsel %vm265, %v253, 1.0
          %v267 = vrcp.pop %v266
          %v268 = vmul.f32 %v262, %v267
          %vm269 = vmand %vm265, %vm234
          %v270 = vsel %vm269, %v268, 0.0
          %271 = vadd.xlane.f32.xlu0 %v270
          %v272 = vpop.xlane.xlu0 %271
          %v273 = vmul.f32 %v272, %v258
          %v274 = vsub.f32 %v268, %v273
          %275 = vst [vmem:[#allocation2] sm:$0xff] %v274
        $region56: #{custom-call.31} parent=49 // loop_footer
          %s176 = sadd.s32 1, %s172
        $region57: #{custom-call.31} parent=49 // loop_footer_branch
          %171 = sbr.rel target = $region53
        $region58: #{custom-call.31} parent=49 // loop_exit
          _
        %v276 = vld [vmem:[#allocation9] sm:$0xff]
        %s277 = scalar_lea.vmem [#allocation9], 8
        %s278 = scalar_lea.vmem [#allocation9], 16
        %s279 = scalar_lea.vmem [#allocation9], 24
        %s280 = scalar_lea.vmem [#allocation9], 32
        %s281 = scalar_lea.vmem [#allocation9], 40
        %s282 = scalar_lea.vmem [#allocation9], 48
        %s283 = scalar_lea.vmem [#allocation9], 56
        %s284 = scalar_lea.vmem [#allocation9], 64
        %s285 = scalar_lea.vmem [#allocation9], 72
        %s286 = scalar_lea.vmem [#allocation9], 80
        %s287 = scalar_lea.vmem [#allocation9], 88
        %s288 = scalar_lea.vmem [#allocation9], 96
        %s289 = scalar_lea.vmem [#allocation9], 104
        %s290 = scalar_lea.vmem [#allocation9], 112
        %s291 = scalar_lea.vmem [#allocation9], 120
        %292 = vxpose.xlu0.b32.start [1/16] %v276, 128
        %293 = vxpose.xlu0.b32.cont [2/16] 0, 128
        %294 = vxpose.xlu0.b32.cont [3/16] 0, 128
        %295 = vxpose.xlu0.b32.cont [4/16] 0, 128
        %296 = vxpose.xlu0.b32.cont [5/16] 0, 128
        %297 = vxpose.xlu0.b32.cont [6/16] 0, 128
        %298 = vxpose.xlu0.b32.cont [7/16] 0, 128
        %299 = vxpose.xlu0.b32.cont [8/16] 0, 128
        %300 = vxpose.xlu0.b32.cont [9/16] 0, 128
        %301 = vxpose.xlu0.b32.cont [10/16] 0, 128
        %302 = vxpose.xlu0.b32.cont [11/16] 0, 128
        %303 = vxpose.xlu0.b32.cont [12/16] 0, 128
        %304 = vxpose.xlu0.b32.cont [13/16] 0, 128
        %305 = vxpose.xlu0.b32.cont [14/16] 0, 128
        %306 = vxpose.xlu0.b32.cont [15/16] 0, 128
        %307 = vxpose.xlu0.b32.end [16/16] 0, 128
        %v308 = vpop.trf.xlu0
        %v309 = vpop.trf.xlu0
        %v310 = vpop.trf.xlu0
        %v311 = vpop.trf.xlu0
        %v312 = vpop.trf.xlu0
        %v313 = vpop.trf.xlu0
        %v314 = vpop.trf.xlu0
        %v315 = vpop.trf.xlu0
        %v316 = vpop.trf.xlu0
        %v317 = vpop.trf.xlu0
        %v318 = vpop.trf.xlu0
        %v319 = vpop.trf.xlu0
        %v320 = vpop.trf.xlu0
        %v321 = vpop.trf.xlu0
        %v322 = vpop.trf.xlu0
        %v323 = vpop.trf.xlu0
        %324 = vst [vmem:[%s164] sm:$0x1] %v308
        %s326 = sshllo.u32 0, 4
        %v328 = vld [vmem:[#allocation2] sm:%s326]
        %s329 = sshllo.u32 0, 4
        %330 = vst [vmem:[%s139] sm:%s329] %v328
        %s332 = sshllo.u32 0, 2
        %v334 = vld [vmem:[#allocation4] sm:%s332]
        %s335 = sshllo.u32 0, 2
        %336 = vst [vmem:[%s146] sm:%s335] %v334
        %s338 = sshllo.u32 0, 2
        %v340 = vld [vmem:[#allocation7] sm:%s338]
        %s341 = sshllo.u32 0, 2
        %342 = vst [vmem:[%s152] sm:%s341] %v340
        %s343 = sand.u32 %s14, 1
        %s344 = sand.u32 %s14, 1
        %s345 = smul.addr %s344, 4
        %s346 = scalar_lea.vmem [#allocation3], %s345
        %s347 = sand.u32 %s24, 1
        %s348 = scalar_lea.sflag [#allocation6], %s347
        %s349 = sand.u32 %s24, 1
        %s350 = smul.addr %s349, 2
        %s351 = scalar_lea.vmem [#allocation5], %s350
        %s352 = sand.u32 %s52, 1
        %s353 = sand.u32 %s52, 1
        %s354 = smul.addr %s353, 2
        %s355 = scalar_lea.vmem [#allocation8], %s354
        %s356 = smul.addr %s14, 4
        %s357 = scalar_lea.vmem %s1, %s356
        // Predicated region
        $region59: #{custom-call.31} parent=49 // pred_check
          _
        $region60: #{custom-call.31} parent=49 // pred_check_branch
          %359 = sbr.rel (0) target = $region62
        $region61: #{custom-call.31} parent=49 // pred_region
          // Predicated region
          $region63: #{custom-call.31} parent=61 // pred_check
            _
          $region64: #{custom-call.31} parent=61 // pred_check_branch
            %361 = sbr.rel target = $region66
          $region65: #{custom-call.31} parent=61 // pred_region
            // Predicated region
            $region78: #{custom-call.31} parent=65 // pred_check
              _
            $region79: #{custom-call.31} parent=65 // pred_check_branch
              %376 = sbr.rel (0) target = $region81
            $region80: #{custom-call.31} parent=65 // pred_region
              loop: start=0, step=1, limit=1
              $region82: #{custom-call.31} parent=80 // loop_pre_header
                _
              $region83: #{custom-call.31} parent=80 // loop_header
                %s379 = sphi 0, %s383
                %p380 = scmp.ge.s32.totalorder %s379, 1
                %s384 = sphi %s346, %s346
                %s385 = sphi %s357, %s357
              $region84: #{custom-call.31} parent=80 // loop_header_branch
                %382 = sbr.rel (%p380) target = $region88
              $region85: #{custom-call.31} parent=80 // loop_body
                %v386 = vld [vmem:[%s384] sm:$0xf]
                %387 = vst [vmem:[%s385] sm:$0xf] %v386
              $region86: #{custom-call.31} parent=80 // loop_footer
                %s383 = sadd.s32 1, %s379
              $region87: #{custom-call.31} parent=80 // loop_footer_branch
                %378 = sbr.rel target = $region83
              $region88: #{custom-call.31} parent=80 // loop_exit
                _
            $region81: #{custom-call.31} parent=65 // pred_fallthru
              _
          $region66: #{custom-call.31} parent=61 // pred_fallthru
            _
          // Predicated region
          $region67: #{custom-call.31} parent=61 // pred_check
            _
          $region68: #{custom-call.31} parent=61 // pred_check_branch
            %363 = sbr.rel (0) target = $region70
          $region69: #{custom-call.31} parent=61 // pred_region
            loop: start=0, step=1, limit=1
            $region71: #{custom-call.31} parent=69 // loop_pre_header
              _
            $region72: #{custom-call.31} parent=69 // loop_header
              %s366 = sphi 0, %s370
              %p367 = scmp.ge.s32.totalorder %s366, 1
              %s371 = sphi %s346, %s346
              %s372 = sphi %s357, %s357
            $region73: #{custom-call.31} parent=69 // loop_header_branch
              %369 = sbr.rel (%p367) target = $region77
            $region74: #{custom-call.31} parent=69 // loop_body
              %v373 = vld [vmem:[%s371] sm:$0xf]
              %374 = vst [vmem:[%s372] sm:$0xf] %v373
            $region75: #{custom-call.31} parent=69 // loop_footer
              %s370 = sadd.s32 1, %s366
            $region76: #{custom-call.31} parent=69 // loop_footer_branch
              %365 = sbr.rel target = $region72
            $region77: #{custom-call.31} parent=69 // loop_exit
              _
          $region70: #{custom-call.31} parent=61 // pred_fallthru
            _
        $region62: #{custom-call.31} parent=49 // pred_fallthru
          _
        %388 = vnop
        // Predicated region
        $region89: #{custom-call.31} parent=49 // pred_check
          %p389 = pneg %p34
        $region90: #{custom-call.31} parent=49 // pred_check_branch
          %391 = sbr.rel (%p389) target = $region92
        $region91: #{custom-call.31} parent=49 // pred_region
          %s392 = sshrl.u32 %s14, 3
          %s394 = ssub.s32 32, 32
          %395 = vsyncadd %s348, %s394
          %s396 = smul.addr %s392, 32
          %s397 = scalar_lea.hbm %s2, %s396
          %s399 = sshll.u32 %s351, 4
          %s400 = int_to_ptr.vmem [resolvable:$true] %s399
          %402 = dma.vmem_to_hbm [thread:$0]  %s400, 32, %s397, %s348
        $region92: #{custom-call.31} parent=49 // pred_fallthru
          _
        // Predicated region
        $region93: #{custom-call.31} parent=49 // pred_check
          %p403 = pneg %p62
        $region94: #{custom-call.31} parent=49 // pred_check_branch
          %405 = sbr.rel (%p403) target = $region96
        $region95: #{custom-call.31} parent=49 // pred_region
          %s406 = sshrl.u32 %s14, 3
          %s407 = smul.addr %s406, 2
          %s408 = scalar_lea.vmem %s3, %s407
          // Predicated region
          $region97: #{custom-call.31} parent=95 // pred_check
            _
          $region98: #{custom-call.31} parent=95 // pred_check_branch
            %410 = sbr.rel (0) target = $region100
          $region99: #{custom-call.31} parent=95 // pred_region
            // Predicated region
            $region101: #{custom-call.31} parent=99 // pred_check
              _
            $region102: #{custom-call.31} parent=99 // pred_check_branch
              %412 = sbr.rel target = $region104
            $region103: #{custom-call.31} parent=99 // pred_region
              // Predicated region
              $region116: #{custom-call.31} parent=103 // pred_check
                _
              $region117: #{custom-call.31} parent=103 // pred_check_branch
                %427 = sbr.rel (0) target = $region119
              $region118: #{custom-call.31} parent=103 // pred_region
                loop: start=0, step=1, limit=1
                $region120: #{custom-call.31} parent=118 // loop_pre_header
                  _
                $region121: #{custom-call.31} parent=118 // loop_header
                  %s430 = sphi 0, %s434
                  %p431 = scmp.ge.s32.totalorder %s430, 1
                  %s435 = sphi %s355, %s355
                  %s436 = sphi %s408, %s408
                $region122: #{custom-call.31} parent=118 // loop_header_branch
                  %433 = sbr.rel (%p431) target = $region126
                $region123: #{custom-call.31} parent=118 // loop_body
                  %v437 = vld [vmem:[%s435] sm:$0x3]
                  %438 = vst [vmem:[%s436] sm:$0x3] %v437
                $region124: #{custom-call.31} parent=118 // loop_footer
                  %s434 = sadd.s32 1, %s430
                $region125: #{custom-call.31} parent=118 // loop_footer_branch
                  %429 = sbr.rel target = $region121
                $region126: #{custom-call.31} parent=118 // loop_exit
                  _
              $region119: #{custom-call.31} parent=103 // pred_fallthru
                _
            $region104: #{custom-call.31} parent=99 // pred_fallthru
              _
            // Predicated region
            $region105: #{custom-call.31} parent=99 // pred_check
              _
            $region106: #{custom-call.31} parent=99 // pred_check_branch
              %414 = sbr.rel (0) target = $region108
            $region107: #{custom-call.31} parent=99 // pred_region
              loop: start=0, step=1, limit=1
              $region109: #{custom-call.31} parent=107 // loop_pre_header
                _
              $region110: #{custom-call.31} parent=107 // loop_header
                %s417 = sphi 0, %s421
                %p418 = scmp.ge.s32.totalorder %s417, 1
                %s422 = sphi %s355, %s355
                %s423 = sphi %s408, %s408
              $region111: #{custom-call.31} parent=107 // loop_header_branch
                %420 = sbr.rel (%p418) target = $region115
              $region112: #{custom-call.31} parent=107 // loop_body
                %v424 = vld [vmem:[%s422] sm:$0x3]
                %425 = vst [vmem:[%s423] sm:$0x3] %v424
              $region113: #{custom-call.31} parent=107 // loop_footer
                %s421 = sadd.s32 1, %s417
              $region114: #{custom-call.31} parent=107 // loop_footer_branch
                %416 = sbr.rel target = $region110
              $region115: #{custom-call.31} parent=107 // loop_exit
                _
            $region108: #{custom-call.31} parent=99 // pred_fallthru
              _
          $region100: #{custom-call.31} parent=95 // pred_fallthru
            _
          %439 = vnop
        $region96: #{custom-call.31} parent=49 // pred_fallthru
          _
      $region50: #{custom-call.31} parent=5 // pred_fallthru
        _
      %p440 = scmp.le.s32.totalorder 2, %s9
      // Predicated region
      $region127: #{custom-call.31} parent=5 // pred_check
        %p441 = pneg %p440
      $region128: #{custom-call.31} parent=5 // pred_check_branch
        %443 = sbr.rel (%p441) target = $region130
      $region129: #{custom-call.31} parent=5 // pred_region
        %s444 = ssub.s32 %s9, 2
        %s445 = sand.u32 %s15, 1
        %s446 = sand.u32 %s15, 1
        %s447 = smul.addr %s446, 4
        %s448 = scalar_lea.vmem [#allocation3], %s447
        // Predicated region
        $region131: #{custom-call.31} parent=129 // pred_check
          %p449 = pneg %p40
        $region132: #{custom-call.31} parent=129 // pred_check_branch
          %451 = sbr.rel (%p449) target = $region134
        $region133: #{custom-call.31} parent=129 // pred_region
          %s452 = sand.u32 %s25, 1
          %s453 = scalar_lea.sflag [#allocation6], %s452
          %s454 = sand.u32 %s25, 1
          %s455 = smul.addr %s454, 2
          %s456 = scalar_lea.vmem [#allocation5], %s455
          %457 = dma.done %s453, 32
        $region134: #{custom-call.31} parent=129 // pred_fallthru
          _
        // Predicated region
        $region135: #{custom-call.31} parent=129 // pred_check
          %p458 = pneg %p68
        $region136: #{custom-call.31} parent=129 // pred_check_branch
          %460 = sbr.rel (%p458) target = $region138
        $region137: #{custom-call.31} parent=129 // pred_region
          %s461 = sand.u32 %s53, 1
          %s462 = sand.u32 %s53, 1
          %s463 = smul.addr %s462, 2
          %s464 = scalar_lea.vmem [#allocation8], %s463
        $region138: #{custom-call.31} parent=129 // pred_fallthru
          _
      $region130: #{custom-call.31} parent=5 // pred_fallthru
        _
    $region6: #{custom-call.31} parent=1 // loop_footer
      %s13 = sadd.s32 1, %s9
    $region7: #{custom-call.31} parent=1 // loop_footer_branch
      %8 = sbr.rel target = $region3
    $region8: #{custom-call.31} parent=1 // loop_exit
      _
    %465 = vsyncpa [#allocation6], 1
    %s466 = scalar_lea.sflag [#allocation6], 1
    %467 = vsyncpa %s466, 1

// kernel: custom-call.33
$region0: #{custom-call.33}
  %s0 = inlined_call_operand.vmem [shape: f32[2,1,4,4], index: 0, kind: input, shape index: {}]
  %s1 = inlined_call_operand.vmem [shape: f32[2,1,4,4], index: 1, kind: output, shape index: {}]
  $region1: #{custom-call.33} parent=0
    #allocation0 [shape = 'u8[4096]{0}', space=vmem, size = 0x1000, scoped, tag = 'operand span for operand 0']
    #allocation1 [shape = 'u8[4096]{0}', space=vmem, size = 0x1000, scoped, tag = 'packed  for operand 0']
    #allocation2 [shape = 'u8[4096]{0}', space=vmem, size = 0x1000, scoped, tag = 'operand span for operand 1']
    #allocation3 [shape = 'u8[4096]{0}', space=vmem, size = 0x1000, scoped, tag = 'packed  for operand 1']
    loop: start=0, step=1, limit=4
    $region2: #{custom-call.33} parent=1 // loop_pre_header
      _
    $region3: #{custom-call.33} parent=1 // loop_header
      %s3 = sphi 0, %s7
      %p4 = scmp.ge.s32.totalorder %s3, 4
      %s10 = sphi 0, %s36
      %s11 = sphi 0, %s32
      %s12 = sphi 0, %s28
      %s13 = sphi 0, %s24
      %s14 = sphi 0, %s10
      %s15 = sphi 0, %s11
      %s16 = sphi 0, %s12
      %s17 = sphi 0, %s13
      %s18 = sphi 0, %s14
      %s19 = sphi 0, %s15
      %s20 = sphi 0, %s16
      %s21 = sphi 0, %s17
    $region4: #{custom-call.33} parent=1 // loop_header_branch
      %6 = sbr.rel (%p4) target = $region8
    $region5: #{custom-call.33} parent=1 // loop_body
      %s8 = ssub.s32 %s3, 1
      %s9 = ssub.s32 %s3, 2
      %s22 = sadd.s32 1, %s13
      %p23 = scmp.ge.s32.totalorder %s22, 1
      %s24 = scalar_select %p23, 0, %s22
      %s25 = sadd.s32 1, %s12
      %s26 = scalar_select %p23, %s25, %s12
      %p27 = scmp.ge.s32.totalorder %s26, 1
      %s28 = scalar_select %p27, 0, %s26
      %s29 = sadd.s32 1, %s11
      %s30 = scalar_select %p27, %s29, %s11
      %p31 = scmp.ge.s32.totalorder %s30, 1
      %s32 = scalar_select %p31, 0, %s30
      %s33 = sadd.s32 1, %s10
      %s34 = scalar_select %p31, %s33, %s10
      %p35 = scmp.ge.s32.totalorder %s34, 2
      %s36 = scalar_select %p35, 0, %s34
      %p37 = scmp.le.s32.totalorder 1, %s3
      %p38 = scmp.lt.s32.totalorder %s3, 3
      %p39 = pnand %p37, %p38
      %p40 = pneg %p39
      // Predicated region
      $region9: #{custom-call.33} parent=5 // pred_check
        _
      $region10: #{custom-call.33} parent=5 // pred_check_branch
        %42 = sbr.rel (%p39) target = $region12
      $region11: #{custom-call.33} parent=5 // pred_region
        %s43 = ssub.s32 %s3, 1
      $region12: #{custom-call.33} parent=5 // pred_fallthru
        _
      %p44 = scmp.lt.s32.totalorder %s3, 2
      // Predicated region
      $region13: #{custom-call.33} parent=5 // pred_check
        %p45 = pneg %p44
      $region14: #{custom-call.33} parent=5 // pred_check_branch
        %47 = sbr.rel (%p45) target = $region16
      $region15: #{custom-call.33} parent=5 // pred_region
        %s48 = sand.u32 %s3, 1
        %s49 = sand.u32 %s3, 1
        %s50 = smul.addr %s49, 4
        %s51 = scalar_lea.vmem [#allocation1], %s50
        %s52 = sadd.s32 %s13, %s12
        %s53 = sadd.s32 %s52, %s11
        %s54 = sadd.s32 %s53, %s10
        %s55 = smul.addr %s54, 4
        %s56 = scalar_lea.vmem %s0, %s55
        // Predicated region
        $region17: #{custom-call.33} parent=15 // pred_check
          _
        $region18: #{custom-call.33} parent=15 // pred_check_branch
          %58 = sbr.rel (0) target = $region20
        $region19: #{custom-call.33} parent=15 // pred_region
          // Predicated region
          $region21: #{custom-call.33} parent=19 // pred_check
            _
          $region22: #{custom-call.33} parent=19 // pred_check_branch
            %60 = sbr.rel target = $region24
          $region23: #{custom-call.33} parent=19 // pred_region
            // Predicated region
            $region36: #{custom-call.33} parent=23 // pred_check
              _
            $region37: #{custom-call.33} parent=23 // pred_check_branch
              %75 = sbr.rel (0) target = $region39
            $region38: #{custom-call.33} parent=23 // pred_region
              loop: start=0, step=1, limit=1
              $region40: #{custom-call.33} parent=38 // loop_pre_header
                _
              $region41: #{custom-call.33} parent=38 // loop_header
                %s78 = sphi 0, %s82
                %p79 = scmp.ge.s32.totalorder %s78, 1
                %s83 = sphi %s56, %s56
                %s84 = sphi %s51, %s51
              $region42: #{custom-call.33} parent=38 // loop_header_branch
                %81 = sbr.rel (%p79) target = $region46
              $region43: #{custom-call.33} parent=38 // loop_body
                %v85 = vld [vmem:[%s83] sm:$0xf]
                %86 = vst [vmem:[%s84] sm:$0xf] %v85
              $region44: #{custom-call.33} parent=38 // loop_footer
                %s82 = sadd.s32 1, %s78
              $region45: #{custom-call.33} parent=38 // loop_footer_branch
                %77 = sbr.rel target = $region41
              $region46: #{custom-call.33} parent=38 // loop_exit
                _
            $region39: #{custom-call.33} parent=23 // pred_fallthru
              _
          $region24: #{custom-call.33} parent=19 // pred_fallthru
            _
          // Predicated region
          $region25: #{custom-call.33} parent=19 // pred_check
            _
          $region26: #{custom-call.33} parent=19 // pred_check_branch
            %62 = sbr.rel (0) target = $region28
          $region27: #{custom-call.33} parent=19 // pred_region
            loop: start=0, step=1, limit=1
            $region29: #{custom-call.33} parent=27 // loop_pre_header
              _
            $region30: #{custom-call.33} parent=27 // loop_header
              %s65 = sphi 0, %s69
              %p66 = scmp.ge.s32.totalorder %s65, 1
              %s70 = sphi %s56, %s56
              %s71 = sphi %s51, %s51
            $region31: #{custom-call.33} parent=27 // loop_header_branch
              %68 = sbr.rel (%p66) target = $region35
            $region32: #{custom-call.33} parent=27 // loop_body
              %v72 = vld [vmem:[%s70] sm:$0xf]
              %73 = vst [vmem:[%s71] sm:$0xf] %v72
            $region33: #{custom-call.33} parent=27 // loop_footer
              %s69 = sadd.s32 1, %s65
            $region34: #{custom-call.33} parent=27 // loop_footer_branch
              %64 = sbr.rel target = $region30
            $region35: #{custom-call.33} parent=27 // loop_exit
              _
          $region28: #{custom-call.33} parent=19 // pred_fallthru
            _
        $region20: #{custom-call.33} parent=15 // pred_fallthru
          _
        %87 = vnop
      $region16: #{custom-call.33} parent=5 // pred_fallthru
        _
      %p88 = scmp.le.s32.totalorder 1, %s3
      %p89 = scmp.lt.s32.totalorder %s3, 3
      %p90 = pnand %p88, %p89
      %p91 = pneg %p90
      // Predicated region
      $region47: #{custom-call.33} parent=5 // pred_check
        _
      $region48: #{custom-call.33} parent=5 // pred_check_branch
        %93 = sbr.rel (%p90) target = $region50
      $region49: #{custom-call.33} parent=5 // pred_region
        #allocation4 [shape = 'f32[4,4]{1,0}', space=vmem, size = 0x1000, scoped, tag = 'rescaled input a']
        %s94 = ssub.s32 %s3, 1
        %s95 = sand.u32 %s8, 1
        %s96 = sand.u32 %s8, 1
        %s97 = smul.addr %s96, 4
        %s98 = scalar_lea.vmem [#allocation1], %s97
        %s99 = sand.u32 %s8, 1
        %s100 = sand.u32 %s8, 1
        %s101 = smul.addr %s100, 4
        %s102 = scalar_lea.vmem [#allocation1], %s101
        %s103 = sand.u32 %s8, 1
        %s104 = sand.u32 %s8, 1
        %s105 = smul.addr %s104, 4
        %s106 = scalar_lea.vmem [#allocation3], %s105
        %s108 = sshllo.u32 0, 4
        %v109 = vld [vmem:[%s102] sm:%s108]
        %110 = vst [vmem:[#allocation0] sm:%s108] %v109
        %v111 = vlaneseq
        %v112 = vand.u32 %v111, 127
        %vm113 = vcmp.lt.s32.totalorder %v112, 4
        %v114 = vlaneseq
        %v115 = vshrl.u32 %v114, 7
        %vm117 = vcmp.eq.s32.totalorder %v115, %v112
        %v118 = vld [vmem:[#allocation0] sm:$0xff]
        %v119 = vsel %vm117, %v118, 0.0
        %120 = vadd.xlane.f32.xlu0 %v119
        %v121 = vpop.xlane.xlu0 %120
        %vm122 = vcmp.ge.s32.totalorder %v115, %v112
        %vm123 = vmand %vm122, %vm113
        %v124 = vsel %vm123, %v118, 0.0
        %v125 = vrcp.pop %v121
        %v126 = vmul.f32 %v124, %v125
        %127 = vst [vmem:[#allocation4] sm:$0xff] %v126
        %v128 = vlaneseq
        %v129 = vand.u32 %v128, 127
        %v130 = vlaneseq
        %v131 = vshrl.u32 %v130, 7
        %vm133 = vcmp.eq.s32.totalorder %v129, %v131
        %v134 = vlaneseq
        %v135 = vand.u32 %v134, 127
        %vm136 = vcmp.eq.s32.totalorder %v135, 0
        %v137 = vsel %vm136, 1.0, -1.0
        %v138 = vsel %vm133, %v137, 0.0
        %s139 = scalar_lea.vmem [#allocation4], 1
        %v140 = vld [vmem:[%s139] ss:$0 sm:$0xff]
        %v141 = vxor.u32 %v140, 2147483648
        %v142 = vlaneseq
        %v143 = vand.u32 %v142, 127
        %vm144 = vcmp.eq.s32.totalorder %v143, 1
        %v145 = vmul.f32 %v141, %v138
        %146 = vadd.xlane.f32.xlu0 %v145
        %v147 = vpop.xlane.xlu0 %146
        %v148 = vsel %vm144, %v147, %v138
        %s149 = scalar_lea.vmem [#allocation4], 2
        %v150 = vld [vmem:[%s149] ss:$0 sm:$0xff]
        %v151 = vxor.u32 %v150, 2147483648
        %v152 = vlaneseq
        %v153 = vand.u32 %v152, 127
        %vm154 = vcmp.eq.s32.totalorder %v153, 2
        %v155 = vmul.f32 %v151, %v148
        %156 = vadd.xlane.f32.xlu0 %v155
        %v157 = vpop.xlane.xlu0 %156
        %v158 = vsel %vm154, %v157, %v148
        %s159 = scalar_lea.vmem [#allocation4], 3
        %v160 = vld [vmem:[%s159] ss:$0 sm:$0xff]
        %v161 = vxor.u32 %v160, 2147483648
        %v162 = vlaneseq
        %v163 = vand.u32 %v162, 127
        %vm164 = vcmp.eq.s32.totalorder %v163, 3
        %v165 = vmul.f32 %v161, %v158
        %166 = vadd.xlane.f32.xlu0 %v165
        %v167 = vpop.xlane.xlu0 %166
        %v168 = vsel %vm164, %v167, %v158
        %v169 = vrcp.pop %v121
        %v170 = vmul.f32 %v168, %v169
        %vm171 = vweird.f32 %v121
        %v172 = vsel %vm171, %v168, %v170
        %173 = vst [vmem:[#allocation2] sm:$0xff] %v172
        %s175 = sshllo.u32 0, 4
        %v177 = vld [vmem:[#allocation2] sm:%s175]
        %s178 = sshllo.u32 0, 4
        %179 = vst [vmem:[%s106] sm:%s178] %v177
        %s180 = sand.u32 %s8, 1
        %s181 = sand.u32 %s8, 1
        %s182 = smul.addr %s181, 4
        %s183 = scalar_lea.vmem [#allocation3], %s182
        %s184 = sadd.s32 %s17, %s16
        %s185 = sadd.s32 %s184, %s15
        %s186 = sadd.s32 %s185, %s14
        %s187 = smul.addr %s186, 4
        %s188 = scalar_lea.vmem %s1, %s187
        // Predicated region
        $region51: #{custom-call.33} parent=49 // pred_check
          _
        $region52: #{custom-call.33} parent=49 // pred_check_branch
          %190 = sbr.rel (0) target = $region54
        $region53: #{custom-call.33} parent=49 // pred_region
          // Predicated region
          $region55: #{custom-call.33} parent=53 // pred_check
            _
          $region56: #{custom-call.33} parent=53 // pred_check_branch
            %192 = sbr.rel target = $region58
          $region57: #{custom-call.33} parent=53 // pred_region
            // Predicated region
            $region70: #{custom-call.33} parent=57 // pred_check
              _
            $region71: #{custom-call.33} parent=57 // pred_check_branch
              %207 = sbr.rel (0) target = $region73
            $region72: #{custom-call.33} parent=57 // pred_region
              loop: start=0, step=1, limit=1
              $region74: #{custom-call.33} parent=72 // loop_pre_header
                _
              $region75: #{custom-call.33} parent=72 // loop_header
                %s210 = sphi 0, %s214
                %p211 = scmp.ge.s32.totalorder %s210, 1
                %s215 = sphi %s183, %s183
                %s216 = sphi %s188, %s188
              $region76: #{custom-call.33} parent=72 // loop_header_branch
                %213 = sbr.rel (%p211) target = $region80
              $region77: #{custom-call.33} parent=72 // loop_body
                %v217 = vld [vmem:[%s215] sm:$0xf]
                %218 = vst [vmem:[%s216] sm:$0xf] %v217
              $region78: #{custom-call.33} parent=72 // loop_footer
                %s214 = sadd.s32 1, %s210
              $region79: #{custom-call.33} parent=72 // loop_footer_branch
                %209 = sbr.rel target = $region75
              $region80: #{custom-call.33} parent=72 // loop_exit
                _
            $region73: #{custom-call.33} parent=57 // pred_fallthru
              _
          $region58: #{custom-call.33} parent=53 // pred_fallthru
            _
          // Predicated region
          $region59: #{custom-call.33} parent=53 // pred_check
            _
          $region60: #{custom-call.33} parent=53 // pred_check_branch
            %194 = sbr.rel (0) target = $region62
          $region61: #{custom-call.33} parent=53 // pred_region
            loop: start=0, step=1, limit=1
            $region63: #{custom-call.33} parent=61 // loop_pre_header
              _
            $region64: #{custom-call.33} parent=61 // loop_header
              %s197 = sphi 0, %s201
              %p198 = scmp.ge.s32.totalorder %s197, 1
              %s202 = sphi %s183, %s183
              %s203 = sphi %s188, %s188
            $region65: #{custom-call.33} parent=61 // loop_header_branch
              %200 = sbr.rel (%p198) target = $region69
            $region66: #{custom-call.33} parent=61 // loop_body
              %v204 = vld [vmem:[%s202] sm:$0xf]
              %205 = vst [vmem:[%s203] sm:$0xf] %v204
            $region67: #{custom-call.33} parent=61 // loop_footer
              %s201 = sadd.s32 1, %s197
            $region68: #{custom-call.33} parent=61 // loop_footer_branch
              %196 = sbr.rel target = $region64
            $region69: #{custom-call.33} parent=61 // loop_exit
              _
          $region62: #{custom-call.33} parent=53 // pred_fallthru
            _
        $region54: #{custom-call.33} parent=49 // pred_fallthru
          _
        %219 = vnop
      $region50: #{custom-call.33} parent=5 // pred_fallthru
        _
      %p220 = scmp.le.s32.totalorder 2, %s3
      // Predicated region
      $region81: #{custom-call.33} parent=5 // pred_check
        %p221 = pneg %p220
      $region82: #{custom-call.33} parent=5 // pred_check_branch
        %223 = sbr.rel (%p221) target = $region84
      $region83: #{custom-call.33} parent=5 // pred_region
        %s224 = ssub.s32 %s3, 2
        %s225 = sand.u32 %s9, 1
        %s226 = sand.u32 %s9, 1
        %s227 = smul.addr %s226, 4
        %s228 = scalar_lea.vmem [#allocation3], %s227
      $region84: #{custom-call.33} parent=5 // pred_fallthru
        _
    $region6: #{custom-call.33} parent=1 // loop_footer
      %s7 = sadd.s32 1, %s3
    $region7: #{custom-call.33} parent=1 // loop_footer_branch
      %2 = sbr.rel target = $region3
    $region8: #{custom-call.33} parent=1 // loop_exit
      _

// kernel: custom-call.32
$region0: #{custom-call.32}
  %s0 = inlined_call_operand.vmem [shape: f32[2,1,4,4], index: 0, kind: input, shape index: {}]
  %s1 = inlined_call_operand.vmem [shape: f32[2,1,4,4], index: 1, kind: output, shape index: {}]
  $region1: #{custom-call.32} parent=0
    #allocation0 [shape = 'u8[4096]{0}', space=vmem, size = 0x1000, scoped, tag = 'operand span for operand 0']
    #allocation1 [shape = 'u8[4096]{0}', space=vmem, size = 0x1000, scoped, tag = 'packed  for operand 0']
    #allocation2 [shape = 'u8[4096]{0}', space=vmem, size = 0x1000, scoped, tag = 'operand span for operand 1']
    #allocation3 [shape = 'u8[4096]{0}', space=vmem, size = 0x1000, scoped, tag = 'packed  for operand 1']
    loop: start=0, step=1, limit=4
    $region2: #{custom-call.32} parent=1 // loop_pre_header
      _
    $region3: #{custom-call.32} parent=1 // loop_header
      %s3 = sphi 0, %s7
      %p4 = scmp.ge.s32.totalorder %s3, 4
      %s10 = sphi 0, %s36
      %s11 = sphi 0, %s32
      %s12 = sphi 0, %s28
      %s13 = sphi 0, %s24
      %s14 = sphi 0, %s10
      %s15 = sphi 0, %s11
      %s16 = sphi 0, %s12
      %s17 = sphi 0, %s13
      %s18 = sphi 0, %s14
      %s19 = sphi 0, %s15
      %s20 = sphi 0, %s16
      %s21 = sphi 0, %s17
    $region4: #{custom-call.32} parent=1 // loop_header_branch
      %6 = sbr.rel (%p4) target = $region8
    $region5: #{custom-call.32} parent=1 // loop_body
      %s8 = ssub.s32 %s3, 1
      %s9 = ssub.s32 %s3, 2
      %s22 = sadd.s32 1, %s13
      %p23 = scmp.ge.s32.totalorder %s22, 1
      %s24 = scalar_select %p23, 0, %s22
      %s25 = sadd.s32 1, %s12
      %s26 = scalar_select %p23, %s25, %s12
      %p27 = scmp.ge.s32.totalorder %s26, 1
      %s28 = scalar_select %p27, 0, %s26
      %s29 = sadd.s32 1, %s11
      %s30 = scalar_select %p27, %s29, %s11
      %p31 = scmp.ge.s32.totalorder %s30, 1
      %s32 = scalar_select %p31, 0, %s30
      %s33 = sadd.s32 1, %s10
      %s34 = scalar_select %p31, %s33, %s10
      %p35 = scmp.ge.s32.totalorder %s34, 2
      %s36 = scalar_select %p35, 0, %s34
      %p37 = scmp.le.s32.totalorder 1, %s3
      %p38 = scmp.lt.s32.totalorder %s3, 3
      %p39 = pnand %p37, %p38
      %p40 = pneg %p39
      // Predicated region
      $region9: #{custom-call.32} parent=5 // pred_check
        _
      $region10: #{custom-call.32} parent=5 // pred_check_branch
        %42 = sbr.rel (%p39) target = $region12
      $region11: #{custom-call.32} parent=5 // pred_region
        %s43 = ssub.s32 %s3, 1
      $region12: #{custom-call.32} parent=5 // pred_fallthru
        _
      %p44 = scmp.lt.s32.totalorder %s3, 2
      // Predicated region
      $region13: #{custom-call.32} parent=5 // pred_check
        %p45 = pneg %p44
      $region14: #{custom-call.32} parent=5 // pred_check_branch
        %47 = sbr.rel (%p45) target = $region16
      $region15: #{custom-call.32} parent=5 // pred_region
        %s48 = sand.u32 %s3, 1
        %s49 = sand.u32 %s3, 1
        %s50 = smul.addr %s49, 4
        %s51 = scalar_lea.vmem [#allocation1], %s50
        %s52 = sadd.s32 %s13, %s12
        %s53 = sadd.s32 %s52, %s11
        %s54 = sadd.s32 %s53, %s10
        %s55 = smul.addr %s54, 4
        %s56 = scalar_lea.vmem %s0, %s55
        // Predicated region
        $region17: #{custom-call.32} parent=15 // pred_check
          _
        $region18: #{custom-call.32} parent=15 // pred_check_branch
          %58 = sbr.rel (0) target = $region20
        $region19: #{custom-call.32} parent=15 // pred_region
          // Predicated region
          $region21: #{custom-call.32} parent=19 // pred_check
            _
          $region22: #{custom-call.32} parent=19 // pred_check_branch
            %60 = sbr.rel target = $region24
          $region23: #{custom-call.32} parent=19 // pred_region
            // Predicated region
            $region36: #{custom-call.32} parent=23 // pred_check
              _
            $region37: #{custom-call.32} parent=23 // pred_check_branch
              %75 = sbr.rel (0) target = $region39
            $region38: #{custom-call.32} parent=23 // pred_region
              loop: start=0, step=1, limit=1
              $region40: #{custom-call.32} parent=38 // loop_pre_header
                _
              $region41: #{custom-call.32} parent=38 // loop_header
                %s78 = sphi 0, %s82
                %p79 = scmp.ge.s32.totalorder %s78, 1
                %s83 = sphi %s56, %s56
                %s84 = sphi %s51, %s51
              $region42: #{custom-call.32} parent=38 // loop_header_branch
                %81 = sbr.rel (%p79) target = $region46
              $region43: #{custom-call.32} parent=38 // loop_body
                %v85 = vld [vmem:[%s83] sm:$0xf]
                %86 = vst [vmem:[%s84] sm:$0xf] %v85
              $region44: #{custom-call.32} parent=38 // loop_footer
                %s82 = sadd.s32 1, %s78
              $region45: #{custom-call.32} parent=38 // loop_footer_branch
                %77 = sbr.rel target = $region41
              $region46: #{custom-call.32} parent=38 // loop_exit
                _
            $region39: #{custom-call.32} parent=23 // pred_fallthru
              _
          $region24: #{custom-call.32} parent=19 // pred_fallthru
            _
          // Predicated region
          $region25: #{custom-call.32} parent=19 // pred_check
            _
          $region26: #{custom-call.32} parent=19 // pred_check_branch
            %62 = sbr.rel (0) target = $region28
          $region27: #{custom-call.32} parent=19 // pred_region
            loop: start=0, step=1, limit=1
            $region29: #{custom-call.32} parent=27 // loop_pre_header
              _
            $region30: #{custom-call.32} parent=27 // loop_header
              %s65 = sphi 0, %s69
              %p66 = scmp.ge.s32.totalorder %s65, 1
              %s70 = sphi %s56, %s56
              %s71 = sphi %s51, %s51
            $region31: #{custom-call.32} parent=27 // loop_header_branch
              %68 = sbr.rel (%p66) target = $region35
            $region32: #{custom-call.32} parent=27 // loop_body
              %v72 = vld [vmem:[%s70] sm:$0xf]
              %73 = vst [vmem:[%s71] sm:$0xf] %v72
            $region33: #{custom-call.32} parent=27 // loop_footer
              %s69 = sadd.s32 1, %s65
            $region34: #{custom-call.32} parent=27 // loop_footer_branch
              %64 = sbr.rel target = $region30
            $region35: #{custom-call.32} parent=27 // loop_exit
              _
          $region28: #{custom-call.32} parent=19 // pred_fallthru
            _
        $region20: #{custom-call.32} parent=15 // pred_fallthru
          _
        %87 = vnop
      $region16: #{custom-call.32} parent=5 // pred_fallthru
        _
      %p88 = scmp.le.s32.totalorder 1, %s3
      %p89 = scmp.lt.s32.totalorder %s3, 3
      %p90 = pnand %p88, %p89
      %p91 = pneg %p90
      // Predicated region
      $region47: #{custom-call.32} parent=5 // pred_check
        _
      $region48: #{custom-call.32} parent=5 // pred_check_branch
        %93 = sbr.rel (%p90) target = $region50
      $region49: #{custom-call.32} parent=5 // pred_region
        #allocation4 [shape = 'f32[4,4]{1,0}', space=vmem, size = 0x1000, scoped, tag = 'rescaled input a']
        %s94 = ssub.s32 %s3, 1
        %s95 = sand.u32 %s8, 1
        %s96 = sand.u32 %s8, 1
        %s97 = smul.addr %s96, 4
        %s98 = scalar_lea.vmem [#allocation1], %s97
        %s99 = sand.u32 %s8, 1
        %s100 = sand.u32 %s8, 1
        %s101 = smul.addr %s100, 4
        %s102 = scalar_lea.vmem [#allocation1], %s101
        %s103 = sand.u32 %s8, 1
        %s104 = sand.u32 %s8, 1
        %s105 = smul.addr %s104, 4
        %s106 = scalar_lea.vmem [#allocation3], %s105
        %s108 = sshllo.u32 0, 4
        %v109 = vld [vmem:[%s102] sm:%s108]
        %110 = vst [vmem:[#allocation0] sm:%s108] %v109
        %v111 = vlaneseq
        %v112 = vand.u32 %v111, 127
        %vm113 = vcmp.lt.s32.totalorder %v112, 4
        %v114 = vlaneseq
        %v115 = vshrl.u32 %v114, 7
        %vm117 = vcmp.eq.s32.totalorder %v115, %v112
        %v118 = vld [vmem:[#allocation0] sm:$0xff]
        %v119 = vsel %vm117, %v118, 0.0
        %120 = vadd.xlane.f32.xlu0 %v119
        %v121 = vpop.xlane.xlu0 %120
        %vm122 = vcmp.le.s32.totalorder %v115, %v112
        %vm123 = vmand %vm122, %vm113
        %v124 = vsel %vm123, %v118, 0.0
        %v125 = vrcp.pop %v121
        %v126 = vmul.f32 %v124, %v125
        %127 = vst [vmem:[#allocation4] sm:$0xff] %v126
        %v128 = vlaneseq
        %v129 = vand.u32 %v128, 127
        %v130 = vlaneseq
        %v131 = vshrl.u32 %v130, 7
        %vm133 = vcmp.eq.s32.totalorder %v129, %v131
        %v134 = vlaneseq
        %v135 = vand.u32 %v134, 127
        %vm136 = vcmp.eq.s32.totalorder %v135, 3
        %v137 = vsel %vm136, 1.0, -1.0
        %v138 = vsel %vm133, %v137, 0.0
        %s139 = scalar_lea.vmem [#allocation4], 2
        %v140 = vld [vmem:[%s139] ss:$0 sm:$0xff]
        %v141 = vxor.u32 %v140, 2147483648
        %v142 = vlaneseq
        %v143 = vand.u32 %v142, 127
        %vm144 = vcmp.eq.s32.totalorder %v143, 2
        %v145 = vmul.f32 %v141, %v138
        %146 = vadd.xlane.f32.xlu0 %v145
        %v147 = vpop.xlane.xlu0 %146
        %v148 = vsel %vm144, %v147, %v138
        %s149 = scalar_lea.vmem [#allocation4], 1
        %v150 = vld [vmem:[%s149] ss:$0 sm:$0xff]
        %v151 = vxor.u32 %v150, 2147483648
        %v152 = vlaneseq
        %v153 = vand.u32 %v152, 127
        %vm154 = vcmp.eq.s32.totalorder %v153, 1
        %v155 = vmul.f32 %v151, %v148
        %156 = vadd.xlane.f32.xlu0 %v155
        %v157 = vpop.xlane.xlu0 %156
        %v158 = vsel %vm154, %v157, %v148
        %v159 = vld [vmem:[#allocation4] ss:$0 sm:$0xff]
        %v160 = vxor.u32 %v159, 2147483648
        %v161 = vlaneseq
        %v162 = vand.u32 %v161, 127
        %vm163 = vcmp.eq.s32.totalorder %v162, 0
        %v164 = vmul.f32 %v160, %v158
        %165 = vadd.xlane.f32.xlu0 %v164
        %v166 = vpop.xlane.xlu0 %165
        %v167 = vsel %vm163, %v166, %v158
        %v168 = vrcp.pop %v121
        %v169 = vmul.f32 %v167, %v168
        %vm170 = vweird.f32 %v121
        %v171 = vsel %vm170, %v167, %v169
        %172 = vst [vmem:[#allocation2] sm:$0xff] %v171
        %s174 = sshllo.u32 0, 4
        %v176 = vld [vmem:[#allocation2] sm:%s174]
        %s177 = sshllo.u32 0, 4
        %178 = vst [vmem:[%s106] sm:%s177] %v176
        %s179 = sand.u32 %s8, 1
        %s180 = sand.u32 %s8, 1
        %s181 = smul.addr %s180, 4
        %s182 = scalar_lea.vmem [#allocation3], %s181
        %s183 = sadd.s32 %s17, %s16
        %s184 = sadd.s32 %s183, %s15
        %s185 = sadd.s32 %s184, %s14
        %s186 = smul.addr %s185, 4
        %s187 = scalar_lea.vmem %s1, %s186
        // Predicated region
        $region51: #{custom-call.32} parent=49 // pred_check
          _
        $region52: #{custom-call.32} parent=49 // pred_check_branch
          %189 = sbr.rel (0) target = $region54
        $region53: #{custom-call.32} parent=49 // pred_region
          // Predicated region
          $region55: #{custom-call.32} parent=53 // pred_check
            _
          $region56: #{custom-call.32} parent=53 // pred_check_branch
            %191 = sbr.rel target = $region58
          $region57: #{custom-call.32} parent=53 // pred_region
            // Predicated region
            $region70: #{custom-call.32} parent=57 // pred_check
              _
            $region71: #{custom-call.32} parent=57 // pred_check_branch
              %206 = sbr.rel (0) target = $region73
            $region72: #{custom-call.32} parent=57 // pred_region
              loop: start=0, step=1, limit=1
              $region74: #{custom-call.32} parent=72 // loop_pre_header
                _
              $region75: #{custom-call.32} parent=72 // loop_header
                %s209 = sphi 0, %s213
                %p210 = scmp.ge.s32.totalorder %s209, 1
                %s214 = sphi %s182, %s182
                %s215 = sphi %s187, %s187
              $region76: #{custom-call.32} parent=72 // loop_header_branch
                %212 = sbr.rel (%p210) target = $region80
              $region77: #{custom-call.32} parent=72 // loop_body
                %v216 = vld [vmem:[%s214] sm:$0xf]
                %217 = vst [vmem:[%s215] sm:$0xf] %v216
              $region78: #{custom-call.32} parent=72 // loop_footer
                %s213 = sadd.s32 1, %s209
              $region79: #{custom-call.32} parent=72 // loop_footer_branch
                %208 = sbr.rel target = $region75
              $region80: #{custom-call.32} parent=72 // loop_exit
                _
            $region73: #{custom-call.32} parent=57 // pred_fallthru
              _
          $region58: #{custom-call.32} parent=53 // pred_fallthru
            _
          // Predicated region
          $region59: #{custom-call.32} parent=53 // pred_check
            _
          $region60: #{custom-call.32} parent=53 // pred_check_branch
            %193 = sbr.rel (0) target = $region62
          $region61: #{custom-call.32} parent=53 // pred_region
            loop: start=0, step=1, limit=1
            $region63: #{custom-call.32} parent=61 // loop_pre_header
              _
            $region64: #{custom-call.32} parent=61 // loop_header
              %s196 = sphi 0, %s200
              %p197 = scmp.ge.s32.totalorder %s196, 1
              %s201 = sphi %s182, %s182
              %s202 = sphi %s187, %s187
            $region65: #{custom-call.32} parent=61 // loop_header_branch
              %199 = sbr.rel (%p197) target = $region69
            $region66: #{custom-call.32} parent=61 // loop_body
              %v203 = vld [vmem:[%s201] sm:$0xf]
              %204 = vst [vmem:[%s202] sm:$0xf] %v203
            $region67: #{custom-call.32} parent=61 // loop_footer
              %s200 = sadd.s32 1, %s196
            $region68: #{custom-call.32} parent=61 // loop_footer_branch
              %195 = sbr.rel target = $region64
            $region69: #{custom-call.32} parent=61 // loop_exit
              _
          $region62: #{custom-call.32} parent=53 // pred_fallthru
            _
        $region54: #{custom-call.32} parent=49 // pred_fallthru
          _
        %218 = vnop
      $region50: #{custom-call.32} parent=5 // pred_fallthru
        _
      %p219 = scmp.le.s32.totalorder 2, %s3
      // Predicated region
      $region81: #{custom-call.32} parent=5 // pred_check
        %p220 = pneg %p219
      $region82: #{custom-call.32} parent=5 // pred_check_branch
        %222 = sbr.rel (%p220) target = $region84
      $region83: #{custom-call.32} parent=5 // pred_region
        %s223 = ssub.s32 %s3, 2
        %s224 = sand.u32 %s9, 1
        %s225 = sand.u32 %s9, 1
        %s226 = smul.addr %s225, 4
        %s227 = scalar_lea.vmem [#allocation3], %s226
      $region84: #{custom-call.32} parent=5 // pred_fallthru
        _
    $region6: #{custom-call.32} parent=1 // loop_footer
      %s7 = sadd.s32 1, %s3
    $region7: #{custom-call.32} parent=1 // loop_footer_branch
      %2 = sbr.rel target = $region3
    $region8: #{custom-call.32} parent=1 // loop_exit
      _

// kernel: mul.74
$region0: #{mul.74}
  %s0 = inlined_call_operand.hbm [shape: f32[2,16,16,16], index: 0, kind: input, shape index: {}]
  %s1 = inlined_call_operand.vmem [shape: f32[2,16,256], index: 1, kind: output, shape index: {}]
  $region1: #{mul.74} parent=0
    #allocation0 [shape = 'u8[262144]{0}', space=vmem, size = 0x40000, scoped, tag = 'operand span for operand 0']
    #allocation1 [shape = 's32[1]{0}', space=sflag, size = 0x4, scoped, tag = 'scoped memory for mul.74']
    %2 = vsyncpa [#allocation1], 0
    %s4 = ssub.s32 8192, 8192
    %5 = vsyncadd [#allocation1], %s4
    %s7 = sshll.u32 [#allocation0], 4
    %s8 = int_to_ptr.vmem [resolvable:$true] %s7
    %10 = dma.hbm_to_vmem [thread:$0]  %s0, 8192, %s8, [#allocation1]
    %11 = dma.done [#allocation1], 8192
    %v12 = vld [vmem:[#allocation0] ss:$8 sm:$0xf]
    %v13 = vld [vmem:[#allocation0] ss:$8 sm:$0xf0]
    %vm14 = vcmask 1047556
    %v15 = vsel %vm14, %v13, %v12
    %vm16 = vcmask 130048
    %17 = vst.msk [vmem:[%s1] ss:$8 sm:$0x3] %vm16, %v15
    %s18 = scalar_lea.vmem %s1, 4294967281
    %19 = vst.msk [vmem:[%s18] ss:$8 sm:$0xc] %vm16, %v15
    %s20 = scalar_lea.vmem %s1, 4294967266
    %21 = vst.msk [vmem:[%s20] ss:$8 sm:$0x30] %vm16, %v15
    %s22 = scalar_lea.vmem %s1, 4294967251
    %23 = vst.msk [vmem:[%s22] ss:$8 sm:$0xc0] %vm16, %v15
    %s24 = scalar_lea.vmem [#allocation0], 64
    %v25 = vld [vmem:[%s24] ss:$8 sm:$0xf]
    %s26 = scalar_lea.vmem [#allocation0], 64
    %v27 = vld [vmem:[%s26] ss:$8 sm:$0xf0]
    %vm28 = vcmask 1047556
    %v29 = vsel %vm28, %v27, %v25
    %vm30 = vcmask 130048
    %s31 = scalar_lea.vmem %s1, 4
    %32 = vst.msk [vmem:[%s31] ss:$8 sm:$0x3] %vm30, %v29
    %s33 = scalar_lea.vmem %s1, 4294967285
    %34 = vst.msk [vmem:[%s33] ss:$8 sm:$0xc] %vm30, %v29
    %s35 = scalar_lea.vmem %s1, 4294967270
    %36 = vst.msk [vmem:[%s35] ss:$8 sm:$0x30] %vm30, %v29
    %s37 = scalar_lea.vmem %s1, 4294967255
    %38 = vst.msk [vmem:[%s37] ss:$8 sm:$0xc0] %vm30, %v29
    %s39 = scalar_lea.vmem [#allocation0], 128
    %v40 = vld [vmem:[%s39] ss:$8 sm:$0xf]
    %s41 = scalar_lea.vmem [#allocation0], 128
    %v42 = vld [vmem:[%s41] ss:$8 sm:$0xf0]
    %vm43 = vcmask 1047556
    %v44 = vsel %vm43, %v42, %v40
    %vm45 = vcmask 130048
    %s46 = scalar_lea.vmem %s1, 16
    %47 = vst.msk [vmem:[%s46] ss:$8 sm:$0x3] %vm45, %v44
    %s48 = scalar_lea.vmem %s1, 1
    %49 = vst.msk [vmem:[%s48] ss:$8 sm:$0xc] %vm45, %v44
    %s50 = scalar_lea.vmem %s1, 4294967282
    %51 = vst.msk [vmem:[%s50] ss:$8 sm:$0x30] %vm45, %v44
    %s52 = scalar_lea.vmem %s1, 4294967267
    %53 = vst.msk [vmem:[%s52] ss:$8 sm:$0xc0] %vm45, %v44
    %s54 = scalar_lea.vmem [#allocation0], 192
    %v55 = vld [vmem:[%s54] ss:$8 sm:$0xf]
    %s56 = scalar_lea.vmem [#allocation0], 192
    %v57 = vld [vmem:[%s56] ss:$8 sm:$0xf0]
    %vm58 = vcmask 1047556
    %v59 = vsel %vm58, %v57, %v55
    %vm60 = vcmask 130048
    %s61 = scalar_lea.vmem %s1, 20
    %62 = vst.msk [vmem:[%s61] ss:$8 sm:$0x3] %vm60, %v59
    %s63 = scalar_lea.vmem %s1, 5
    %64 = vst.msk [vmem:[%s63] ss:$8 sm:$0xc] %vm60, %v59
    %s65 = scalar_lea.vmem %s1, 4294967286
    %66 = vst.msk [vmem:[%s65] ss:$8 sm:$0x30] %vm60, %v59
    %s67 = scalar_lea.vmem %s1, 4294967271
    %68 = vst.msk [vmem:[%s67] ss:$8 sm:$0xc0] %vm60, %v59
    %s69 = scalar_lea.vmem [#allocation0], 256
    %v70 = vld [vmem:[%s69] ss:$8 sm:$0xf]
    %s71 = scalar_lea.vmem [#allocation0], 256
    %v72 = vld [vmem:[%s71] ss:$8 sm:$0xf0]
    %vm73 = vcmask 1047556
    %v74 = vsel %vm73, %v72, %v70
    %vm75 = vcmask 130048
    %s76 = scalar_lea.vmem %s1, 32
    %77 = vst.msk [vmem:[%s76] ss:$8 sm:$0x3] %vm75, %v74
    %s78 = scalar_lea.vmem %s1, 17
    %79 = vst.msk [vmem:[%s78] ss:$8 sm:$0xc] %vm75, %v74
    %s80 = scalar_lea.vmem %s1, 2
    %81 = vst.msk [vmem:[%s80] ss:$8 sm:$0x30] %vm75, %v74
    %s82 = scalar_lea.vmem %s1, 4294967283
    %83 = vst.msk [vmem:[%s82] ss:$8 sm:$0xc0] %vm75, %v74
    %s84 = scalar_lea.vmem [#allocation0], 320
    %v85 = vld [vmem:[%s84] ss:$8 sm:$0xf]
    %s86 = scalar_lea.vmem [#allocation0], 320
    %v87 = vld [vmem:[%s86] ss:$8 sm:$0xf0]
    %vm88 = vcmask 1047556
    %v89 = vsel %vm88, %v87, %v85
    %vm90 = vcmask 130048
    %s91 = scalar_lea.vmem %s1, 36
    %92 = vst.msk [vmem:[%s91] ss:$8 sm:$0x3] %vm90, %v89
    %s93 = scalar_lea.vmem %s1, 21
    %94 = vst.msk [vmem:[%s93] ss:$8 sm:$0xc] %vm90, %v89
    %s95 = scalar_lea.vmem %s1, 6
    %96 = vst.msk [vmem:[%s95] ss:$8 sm:$0x30] %vm90, %v89
    %s97 = scalar_lea.vmem %s1, 4294967287
    %98 = vst.msk [vmem:[%s97] ss:$8 sm:$0xc0] %vm90, %v89
    %s99 = scalar_lea.vmem [#allocation0], 384
    %v100 = vld [vmem:[%s99] ss:$8 sm:$0xf]
    %s101 = scalar_lea.vmem [#allocation0], 384
    %v102 = vld [vmem:[%s101] ss:$8 sm:$0xf0]
    %vm103 = vcmask 1047556
    %v104 = vsel %vm103, %v102, %v100
    %vm105 = vcmask 130048
    %s106 = scalar_lea.vmem %s1, 48
    %107 = vst.msk [vmem:[%s106] ss:$8 sm:$0x3] %vm105, %v104
    %s108 = scalar_lea.vmem %s1, 33
    %109 = vst.msk [vmem:[%s108] ss:$8 sm:$0xc] %vm105, %v104
    %s110 = scalar_lea.vmem %s1, 18
    %111 = vst.msk [vmem:[%s110] ss:$8 sm:$0x30] %vm105, %v104
    %s112 = scalar_lea.vmem %s1, 3
    %113 = vst.msk [vmem:[%s112] ss:$8 sm:$0xc0] %vm105, %v104
    %s114 = scalar_lea.vmem [#allocation0], 448
    %v115 = vld [vmem:[%s114] ss:$8 sm:$0xf]
    %s116 = scalar_lea.vmem [#allocation0], 448
    %v117 = vld [vmem:[%s116] ss:$8 sm:$0xf0]
    %vm118 = vcmask 1047556
    %v119 = vsel %vm118, %v117, %v115
    %vm120 = vcmask 130048
    %s121 = scalar_lea.vmem %s1, 52
    %122 = vst.msk [vmem:[%s121] ss:$8 sm:$0x3] %vm120, %v119
    %s123 = scalar_lea.vmem %s1, 37
    %124 = vst.msk [vmem:[%s123] ss:$8 sm:$0xc] %vm120, %v119
    %s125 = scalar_lea.vmem %s1, 22
    %126 = vst.msk [vmem:[%s125] ss:$8 sm:$0x30] %vm120, %v119
    %s127 = scalar_lea.vmem %s1, 7
    %128 = vst.msk [vmem:[%s127] ss:$8 sm:$0xc0] %vm120, %v119
    %s129 = scalar_lea.vmem [#allocation0], 7
    %s130 = smov 3
    %v131 = vld [vmem:[%s129] ss:$16 sm:%s130]
    %s132 = scalar_lea.vmem [#allocation0], 7
    %s133 = smov 12
    %v134 = vld [vmem:[%s132] ss:$16 sm:%s133]
    %vm135 = vcmask 1043458
    %v136 = vsel %vm135, %v134, %v131
    %s137 = scalar_lea.vmem [#allocation0], 7
    %s138 = smov 48
    %v139 = vld [vmem:[%s137] ss:$16 sm:%s138]
    %vm140 = vcmask 1045508
    %v141 = vsel %vm140, %v139, %v136
    %s142 = scalar_lea.vmem [#allocation0], 7
    %s143 = smov 192
    %v144 = vld [vmem:[%s142] ss:$16 sm:%s143]
    %vm145 = vcmask 1047558
    %v146 = vsel %vm145, %v144, %v141
    %147 = vrot.lane.b32.xlu0 %v146, 112
    %v148 = vpop.permute.xlu0 %147
    %vm149 = vcmask 1048448
    %150 = vst.msk [vmem:[%s1] sm:$0xff] %vm149, %v148
    %s151 = scalar_lea.vmem [#allocation0], 263
    %s152 = smov 3
    %v153 = vld [vmem:[%s151] ss:$16 sm:%s152]
    %s154 = scalar_lea.vmem [#allocation0], 263
    %s155 = smov 12
    %v156 = vld [vmem:[%s154] ss:$16 sm:%s155]
    %vm157 = vcmask 1043458
    %v158 = vsel %vm157, %v156, %v153
    %s159 = scalar_lea.vmem [#allocation0], 263
    %s160 = smov 48
    %v161 = vld [vmem:[%s159] ss:$16 sm:%s160]
    %vm162 = vcmask 1045508
    %v163 = vsel %vm162, %v161, %v158
    %s164 = scalar_lea.vmem [#allocation0], 263
    %s165 = smov 192
    %v166 = vld [vmem:[%s164] ss:$16 sm:%s165]
    %vm167 = vcmask 1047558
    %v168 = vsel %vm167, %v166, %v163
    %169 = vrot.lane.b32.xlu0 %v168, 112
    %v170 = vpop.permute.xlu0 %169
    %vm171 = vcmask 1048448
    %s172 = scalar_lea.vmem %s1, 32
    %173 = vst.msk [vmem:[%s172] sm:$0xff] %vm171, %v170
    %s174 = scalar_lea.vmem [#allocation0], 15
    %s175 = smov 3
    %v176 = vld [vmem:[%s174] ss:$16 sm:%s175]
    %s177 = scalar_lea.vmem [#allocation0], 15
    %s178 = smov 12
    %v179 = vld [vmem:[%s177] ss:$16 sm:%s178]
    %vm180 = vcmask 1043458
    %v181 = vsel %vm180, %v179, %v176
    %s182 = scalar_lea.vmem [#allocation0], 15
    %s183 = smov 48
    %v184 = vld [vmem:[%s182] ss:$16 sm:%s183]
    %vm185 = vcmask 1045508
    %v186 = vsel %vm185, %v184, %v181
    %s187 = scalar_lea.vmem [#allocation0], 15
    %s188 = smov 192
    %v189 = vld [vmem:[%s187] ss:$16 sm:%s188]
    %vm190 = vcmask 1047558
    %v191 = vsel %vm190, %v189, %v186
    %192 = vrot.lane.b32.xlu0 %v191, 112
    %v193 = vpop.permute.xlu0 %192
    %vm194 = vcmask 1048448
    %s195 = scalar_lea.vmem %s1, 8
    %196 = vst.msk [vmem:[%s195] sm:$0xff] %vm194, %v193
    %s197 = scalar_lea.vmem [#allocation0], 271
    %s198 = smov 3
    %v199 = vld [vmem:[%s197] ss:$16 sm:%s198]
    %s200 = scalar_lea.vmem [#allocation0], 271
    %s201 = smov 12
    %v202 = vld [vmem:[%s200] ss:$16 sm:%s201]
    %vm203 = vcmask 1043458
    %v204 = vsel %vm203, %v202, %v199
    %s205 = scalar_lea.vmem [#allocation0], 271
    %s206 = smov 48
    %v207 = vld [vmem:[%s205] ss:$16 sm:%s206]
    %vm208 = vcmask 1045508
    %v209 = vsel %vm208, %v207, %v204
    %s210 = scalar_lea.vmem [#allocation0], 271
    %s211 = smov 192
    %v212 = vld [vmem:[%s210] ss:$16 sm:%s211]
    %vm213 = vcmask 1047558
    %v214 = vsel %vm213, %v212, %v209
    %215 = vrot.lane.b32.xlu0 %v214, 112
    %v216 = vpop.permute.xlu0 %215
    %vm217 = vcmask 1048448
    %s218 = scalar_lea.vmem %s1, 40
    %219 = vst.msk [vmem:[%s218] sm:$0xff] %vm217, %v216
    %s220 = scalar_lea.vmem [#allocation0], 135
    %s221 = smov 3
    %v222 = vld [vmem:[%s220] ss:$16 sm:%s221]
    %s223 = scalar_lea.vmem [#allocation0], 135
    %s224 = smov 12
    %v225 = vld [vmem:[%s223] ss:$16 sm:%s224]
    %vm226 = vcmask 1043458
    %v227 = vsel %vm226, %v225, %v222
    %s228 = scalar_lea.vmem [#allocation0], 135
    %s229 = smov 48
    %v230 = vld [vmem:[%s228] ss:$16 sm:%s229]
    %vm231 = vcmask 1045508
    %v232 = vsel %vm231, %v230, %v227
    %s233 = scalar_lea.vmem [#allocation0], 135
    %s234 = smov 192
    %v235 = vld [vmem:[%s233] ss:$16 sm:%s234]
    %vm236 = vcmask 1047558
    %v237 = vsel %vm236, %v235, %v232
    %238 = vrot.lane.b32.xlu0 %v237, 112
    %v239 = vpop.permute.xlu0 %238
    %vm240 = vcmask 1048448
    %s241 = scalar_lea.vmem %s1, 16
    %242 = vst.msk [vmem:[%s241] sm:$0xff] %vm240, %v239
    %s243 = scalar_lea.vmem [#allocation0], 391
    %s244 = smov 3
    %v245 = vld [vmem:[%s243] ss:$16 sm:%s244]
    %s246 = scalar_lea.vmem [#allocation0], 391
    %s247 = smov 12
    %v248 = vld [vmem:[%s246] ss:$16 sm:%s247]
    %vm249 = vcmask 1043458
    %v250 = vsel %vm249, %v248, %v245
    %s251 = scalar_lea.vmem [#allocation0], 391
    %s252 = smov 48
    %v253 = vld [vmem:[%s251] ss:$16 sm:%s252]
    %vm254 = vcmask 1045508
    %v255 = vsel %vm254, %v253, %v250
    %s256 = scalar_lea.vmem [#allocation0], 391
    %s257 = smov 192
    %v258 = vld [vmem:[%s256] ss:$16 sm:%s257]
    %vm259 = vcmask 1047558
    %v260 = vsel %vm259, %v258, %v255
    %261 = vrot.lane.b32.xlu0 %v260, 112
    %v262 = vpop.permute.xlu0 %261
    %vm263 = vcmask 1048448
    %s264 = scalar_lea.vmem %s1, 48
    %265 = vst.msk [vmem:[%s264] sm:$0xff] %vm263, %v262
    %s266 = scalar_lea.vmem [#allocation0], 143
    %s267 = smov 3
    %v268 = vld [vmem:[%s266] ss:$16 sm:%s267]
    %s269 = scalar_lea.vmem [#allocation0], 143
    %s270 = smov 12
    %v271 = vld [vmem:[%s269] ss:$16 sm:%s270]
    %vm272 = vcmask 1043458
    %v273 = vsel %vm272, %v271, %v268
    %s274 = scalar_lea.vmem [#allocation0], 143
    %s275 = smov 48
    %v276 = vld [vmem:[%s274] ss:$16 sm:%s275]
    %vm277 = vcmask 1045508
    %v278 = vsel %vm277, %v276, %v273
    %s279 = scalar_lea.vmem [#allocation0], 143
    %s280 = smov 192
    %v281 = vld [vmem:[%s279] ss:$16 sm:%s280]
    %vm282 = vcmask 1047558
    %v283 = vsel %vm282, %v281, %v278
    %284 = vrot.lane.b32.xlu0 %v283, 112
    %v285 = vpop.permute.xlu0 %284
    %vm286 = vcmask 1048448
    %s287 = scalar_lea.vmem %s1, 24
    %288 = vst.msk [vmem:[%s287] sm:$0xff] %vm286, %v285
    %s289 = scalar_lea.vmem [#allocation0], 399
    %s290 = smov 3
    %v291 = vld [vmem:[%s289] ss:$16 sm:%s290]
    %s292 = scalar_lea.vmem [#allocation0], 399
    %s293 = smov 12
    %v294 = vld [vmem:[%s292] ss:$16 sm:%s293]
    %vm295 = vcmask 1043458
    %v296 = vsel %vm295, %v294, %v291
    %s297 = scalar_lea.vmem [#allocation0], 399
    %s298 = smov 48
    %v299 = vld [vmem:[%s297] ss:$16 sm:%s298]
    %vm300 = vcmask 1045508
    %v301 = vsel %vm300, %v299, %v296
    %s302 = scalar_lea.vmem [#allocation0], 399
    %s303 = smov 192
    %v304 = vld [vmem:[%s302] ss:$16 sm:%s303]
    %vm305 = vcmask 1047558
    %v306 = vsel %vm305, %v304, %v301
    %307 = vrot.lane.b32.xlu0 %v306, 112
    %v308 = vpop.permute.xlu0 %307
    %vm309 = vcmask 1048448
    %s310 = scalar_lea.vmem %s1, 56
    %311 = vst.msk [vmem:[%s310] sm:$0xff] %vm309, %v308
    %s312 = scalar_lea.vmem [#allocation0], 6
    %s313 = smov 3
    %v314 = vld [vmem:[%s312] ss:$16 sm:%s313]
    %s315 = scalar_lea.vmem [#allocation0], 6
    %s316 = smov 12
    %v317 = vld [vmem:[%s315] ss:$16 sm:%s316]
    %vm318 = vcmask 1043458
    %v319 = vsel %vm318, %v317, %v314
    %s320 = scalar_lea.vmem [#allocation0], 6
    %s321 = smov 48
    %v322 = vld [vmem:[%s320] ss:$16 sm:%s321]
    %vm323 = vcmask 1045508
    %v324 = vsel %vm323, %v322, %v319
    %s325 = scalar_lea.vmem [#allocation0], 6
    %s326 = smov 192
    %v327 = vld [vmem:[%s325] ss:$16 sm:%s326]
    %vm328 = vcmask 1047558
    %v329 = vsel %vm328, %v327, %v324
    %330 = vrot.lane.b32.xlu0 %v329, 96
    %v331 = vpop.permute.xlu0 %330
    %vm332 = vcmask 917248
    %333 = vst.msk [vmem:[%s1] sm:$0xff] %vm332, %v331
    %s334 = scalar_lea.vmem [#allocation0], 262
    %s335 = smov 3
    %v336 = vld [vmem:[%s334] ss:$16 sm:%s335]
    %s337 = scalar_lea.vmem [#allocation0], 262
    %s338 = smov 12
    %v339 = vld [vmem:[%s337] ss:$16 sm:%s338]
    %vm340 = vcmask 1043458
    %v341 = vsel %vm340, %v339, %v336
    %s342 = scalar_lea.vmem [#allocation0], 262
    %s343 = smov 48
    %v344 = vld [vmem:[%s342] ss:$16 sm:%s343]
    %vm345 = vcmask 1045508
    %v346 = vsel %vm345, %v344, %v341
    %s347 = scalar_lea.vmem [#allocation0], 262
    %s348 = smov 192
    %v349 = vld [vmem:[%s347] ss:$16 sm:%s348]
    %vm350 = vcmask 1047558
    %v351 = vsel %vm350, %v349, %v346
    %352 = vrot.lane.b32.xlu0 %v351, 96
    %v353 = vpop.permute.xlu0 %352
    %vm354 = vcmask 917248
    %s355 = scalar_lea.vmem %s1, 32
    %356 = vst.msk [vmem:[%s355] sm:$0xff] %vm354, %v353
    %s357 = scalar_lea.vmem [#allocation0], 14
    %s358 = smov 3
    %v359 = vld [vmem:[%s357] ss:$16 sm:%s358]
    %s360 = scalar_lea.vmem [#allocation0], 14
    %s361 = smov 12
    %v362 = vld [vmem:[%s360] ss:$16 sm:%s361]
    %vm363 = vcmask 1043458
    %v364 = vsel %vm363, %v362, %v359
    %s365 = scalar_lea.vmem [#allocation0], 14
    %s366 = smov 48
    %v367 = vld [vmem:[%s365] ss:$16 sm:%s366]
    %vm368 = vcmask 1045508
    %v369 = vsel %vm368, %v367, %v364
    %s370 = scalar_lea.vmem [#allocation0], 14
    %s371 = smov 192
    %v372 = vld [vmem:[%s370] ss:$16 sm:%s371]
    %vm373 = vcmask 1047558
    %v374 = vsel %vm373, %v372, %v369
    %375 = vrot.lane.b32.xlu0 %v374, 96
    %v376 = vpop.permute.xlu0 %375
    %vm377 = vcmask 917248
    %s378 = scalar_lea.vmem %s1, 8
    %379 = vst.msk [vmem:[%s378] sm:$0xff] %vm377, %v376
    %s380 = scalar_lea.vmem [#allocation0], 270
    %s381 = smov 3
    %v382 = vld [vmem:[%s380] ss:$16 sm:%s381]
    %s383 = scalar_lea.vmem [#allocation0], 270
    %s384 = smov 12
    %v385 = vld [vmem:[%s383] ss:$16 sm:%s384]
    %vm386 = vcmask 1043458
    %v387 = vsel %vm386, %v385, %v382
    %s388 = scalar_lea.vmem [#allocation0], 270
    %s389 = smov 48
    %v390 = vld [vmem:[%s388] ss:$16 sm:%s389]
    %vm391 = vcmask 1045508
    %v392 = vsel %vm391, %v390, %v387
    %s393 = scalar_lea.vmem [#allocation0], 270
    %s394 = smov 192
    %v395 = vld [vmem:[%s393] ss:$16 sm:%s394]
    %vm396 = vcmask 1047558
    %v397 = vsel %vm396, %v395, %v392
    %398 = vrot.lane.b32.xlu0 %v397, 96
    %v399 = vpop.permute.xlu0 %398
    %vm400 = vcmask 917248
    %s401 = scalar_lea.vmem %s1, 40
    %402 = vst.msk [vmem:[%s401] sm:$0xff] %vm400, %v399
    %s403 = scalar_lea.vmem [#allocation0], 134
    %s404 = smov 3
    %v405 = vld [vmem:[%s403] ss:$16 sm:%s404]
    %s406 = scalar_lea.vmem [#allocation0], 134
    %s407 = smov 12
    %v408 = vld [vmem:[%s406] ss:$16 sm:%s407]
    %vm409 = vcmask 1043458
    %v410 = vsel %vm409, %v408, %v405
    %s411 = scalar_lea.vmem [#allocation0], 134
    %s412 = smov 48
    %v413 = vld [vmem:[%s411] ss:$16 sm:%s412]
    %vm414 = vcmask 1045508
    %v415 = vsel %vm414, %v413, %v410
    %s416 = scalar_lea.vmem [#allocation0], 134
    %s417 = smov 192
    %v418 = vld [vmem:[%s416] ss:$16 sm:%s417]
    %vm419 = vcmask 1047558
    %v420 = vsel %vm419, %v418, %v415
    %421 = vrot.lane.b32.xlu0 %v420, 96
    %v422 = vpop.permute.xlu0 %421
    %vm423 = vcmask 917248
    %s424 = scalar_lea.vmem %s1, 16
    %425 = vst.msk [vmem:[%s424] sm:$0xff] %vm423, %v422
    %s426 = scalar_lea.vmem [#allocation0], 390
    %s427 = smov 3
    %v428 = vld [vmem:[%s426] ss:$16 sm:%s427]
    %s429 = scalar_lea.vmem [#allocation0], 390
    %s430 = smov 12
    %v431 = vld [vmem:[%s429] ss:$16 sm:%s430]
    %vm432 = vcmask 1043458
    %v433 = vsel %vm432, %v431, %v428
    %s434 = scalar_lea.vmem [#allocation0], 390
    %s435 = smov 48
    %v436 = vld [vmem:[%s434] ss:$16 sm:%s435]
    %vm437 = vcmask 1045508
    %v438 = vsel %vm437, %v436, %v433
    %s439 = scalar_lea.vmem [#allocation0], 390
    %s440 = smov 192
    %v441 = vld [vmem:[%s439] ss:$16 sm:%s440]
    %vm442 = vcmask 1047558
    %v443 = vsel %vm442, %v441, %v438
    %444 = vrot.lane.b32.xlu0 %v443, 96
    %v445 = vpop.permute.xlu0 %444
    %vm446 = vcmask 917248
    %s447 = scalar_lea.vmem %s1, 48
    %448 = vst.msk [vmem:[%s447] sm:$0xff] %vm446, %v445
    %s449 = scalar_lea.vmem [#allocation0], 142
    %s450 = smov 3
    %v451 = vld [vmem:[%s449] ss:$16 sm:%s450]
    %s452 = scalar_lea.vmem [#allocation0], 142
    %s453 = smov 12
    %v454 = vld [vmem:[%s452] ss:$16 sm:%s453]
    %vm455 = vcmask 1043458
    %v456 = vsel %vm455, %v454, %v451
    %s457 = scalar_lea.vmem [#allocation0], 142
    %s458 = smov 48
    %v459 = vld [vmem:[%s457] ss:$16 sm:%s458]
    %vm460 = vcmask 1045508
    %v461 = vsel %vm460, %v459, %v456
    %s462 = scalar_lea.vmem [#allocation0], 142
    %s463 = smov 192
    %v464 = vld [vmem:[%s462] ss:$16 sm:%s463]
    %vm465 = vcmask 1047558
    %v466 = vsel %vm465, %v464, %v461
    %467 = vrot.lane.b32.xlu0 %v466, 96
    %v468 = vpop.permute.xlu0 %467
    %vm469 = vcmask 917248
    %s470 = scalar_lea.vmem %s1, 24
    %471 = vst.msk [vmem:[%s470] sm:$0xff] %vm469, %v468
    %s472 = scalar_lea.vmem [#allocation0], 398
    %s473 = smov 3
    %v474 = vld [vmem:[%s472] ss:$16 sm:%s473]
    %s475 = scalar_lea.vmem [#allocation0], 398
    %s476 = smov 12
    %v477 = vld [vmem:[%s475] ss:$16 sm:%s476]
    %vm478 = vcmask 1043458
    %v479 = vsel %vm478, %v477, %v474
    %s480 = scalar_lea.vmem [#allocation0], 398
    %s481 = smov 48
    %v482 = vld [vmem:[%s480] ss:$16 sm:%s481]
    %vm483 = vcmask 1045508
    %v484 = vsel %vm483, %v482, %v479
    %s485 = scalar_lea.vmem [#allocation0], 398
    %s486 = smov 192
    %v487 = vld [vmem:[%s485] ss:$16 sm:%s486]
    %vm488 = vcmask 1047558
    %v489 = vsel %vm488, %v487, %v484
    %490 = vrot.lane.b32.xlu0 %v489, 96
    %v491 = vpop.permute.xlu0 %490
    %vm492 = vcmask 917248
    %s493 = scalar_lea.vmem %s1, 56
    %494 = vst.msk [vmem:[%s493] sm:$0xff] %vm492, %v491
    %s495 = scalar_lea.vmem [#allocation0], 5
    %s496 = smov 3
    %v497 = vld [vmem:[%s495] ss:$16 sm:%s496]
    %s498 = scalar_lea.vmem [#allocation0], 5
    %s499 = smov 12
    %v500 = vld [vmem:[%s498] ss:$16 sm:%s499]
    %vm501 = vcmask 1043458
    %v502 = vsel %vm501, %v500, %v497
    %s503 = scalar_lea.vmem [#allocation0], 5
    %s504 = smov 48
    %v505 = vld [vmem:[%s503] ss:$16 sm:%s504]
    %vm506 = vcmask 1045508
    %v507 = vsel %vm506, %v505, %v502
    %s508 = scalar_lea.vmem [#allocation0], 5
    %s509 = smov 192
    %v510 = vld [vmem:[%s508] ss:$16 sm:%s509]
    %vm511 = vcmask 1047558
    %v512 = vsel %vm511, %v510, %v507
    %513 = vrot.lane.b32.xlu0 %v512, 80
    %v514 = vpop.permute.xlu0 %513
    %vm515 = vcmask 786048
    %516 = vst.msk [vmem:[%s1] sm:$0xff] %vm515, %v514
    %s517 = scalar_lea.vmem [#allocation0], 261
    %s518 = smov 3
    %v519 = vld [vmem:[%s517] ss:$16 sm:%s518]
    %s520 = scalar_lea.vmem [#allocation0], 261
    %s521 = smov 12
    %v522 = vld [vmem:[%s520] ss:$16 sm:%s521]
    %vm523 = vcmask 1043458
    %v524 = vsel %vm523, %v522, %v519
    %s525 = scalar_lea.vmem [#allocation0], 261
    %s526 = smov 48
    %v527 = vld [vmem:[%s525] ss:$16 sm:%s526]
    %vm528 = vcmask 1045508
    %v529 = vsel %vm528, %v527, %v524
    %s530 = scalar_lea.vmem [#allocation0], 261
    %s531 = smov 192
    %v532 = vld [vmem:[%s530] ss:$16 sm:%s531]
    %vm533 = vcmask 1047558
    %v534 = vsel %vm533, %v532, %v529
    %535 = vrot.lane.b32.xlu0 %v534, 80
    %v536 = vpop.permute.xlu0 %535
    %vm537 = vcmask 786048
    %s538 = scalar_lea.vmem %s1, 32
    %539 = vst.msk [vmem:[%s538] sm:$0xff] %vm537, %v536
    %s540 = scalar_lea.vmem [#allocation0], 13
    %s541 = smov 3
    %v542 = vld [vmem:[%s540] ss:$16 sm:%s541]
    %s543 = scalar_lea.vmem [#allocation0], 13
    %s544 = smov 12
    %v545 = vld [vmem:[%s543] ss:$16 sm:%s544]
    %vm546 = vcmask 1043458
    %v547 = vsel %vm546, %v545, %v542
    %s548 = scalar_lea.vmem [#allocation0], 13
    %s549 = smov 48
    %v550 = vld [vmem:[%s548] ss:$16 sm:%s549]
    %vm551 = vcmask 1045508
    %v552 = vsel %vm551, %v550, %v547
    %s553 = scalar_lea.vmem [#allocation0], 13
    %s554 = smov 192
    %v555 = vld [vmem:[%s553] ss:$16 sm:%s554]
    %vm556 = vcmask 1047558
    %v557 = vsel %vm556, %v555, %v552
    %558 = vrot.lane.b32.xlu0 %v557, 80
    %v559 = vpop.permute.xlu0 %558
    %vm560 = vcmask 786048
    %s561 = scalar_lea.vmem %s1, 8
    %562 = vst.msk [vmem:[%s561] sm:$0xff] %vm560, %v559
    %s563 = scalar_lea.vmem [#allocation0], 269
    %s564 = smov 3
    %v565 = vld [vmem:[%s563] ss:$16 sm:%s564]
    %s566 = scalar_lea.vmem [#allocation0], 269
    %s567 = smov 12
    %v568 = vld [vmem:[%s566] ss:$16 sm:%s567]
    %vm569 = vcmask 1043458
    %v570 = vsel %vm569, %v568, %v565
    %s571 = scalar_lea.vmem [#allocation0], 269
    %s572 = smov 48
    %v573 = vld [vmem:[%s571] ss:$16 sm:%s572]
    %vm574 = vcmask 1045508
    %v575 = vsel %vm574, %v573, %v570
    %s576 = scalar_lea.vmem [#allocation0], 269
    %s577 = smov 192
    %v578 = vld [vmem:[%s576] ss:$16 sm:%s577]
    %vm579 = vcmask 1047558
    %v580 = vsel %vm579, %v578, %v575
    %581 = vrot.lane.b32.xlu0 %v580, 80
    %v582 = vpop.permute.xlu0 %581
    %vm583 = vcmask 786048
    %s584 = scalar_lea.vmem %s1, 40
    %585 = vst.msk [vmem:[%s584] sm:$0xff] %vm583, %v582
    %s586 = scalar_lea.vmem [#allocation0], 133
    %s587 = smov 3
    %v588 = vld [vmem:[%s586] ss:$16 sm:%s587]
    %s589 = scalar_lea.vmem [#allocation0], 133
    %s590 = smov 12
    %v591 = vld [vmem:[%s589] ss:$16 sm:%s590]
    %vm592 = vcmask 1043458
    %v593 = vsel %vm592, %v591, %v588
    %s594 = scalar_lea.vmem [#allocation0], 133
    %s595 = smov 48
    %v596 = vld [vmem:[%s594] ss:$16 sm:%s595]
    %vm597 = vcmask 1045508
    %v598 = vsel %vm597, %v596, %v593
    %s599 = scalar_lea.vmem [#allocation0], 133
    %s600 = smov 192
    %v601 = vld [vmem:[%s599] ss:$16 sm:%s600]
    %vm602 = vcmask 1047558
    %v603 = vsel %vm602, %v601, %v598
    %604 = vrot.lane.b32.xlu0 %v603, 80
    %v605 = vpop.permute.xlu0 %604
    %vm606 = vcmask 786048
    %s607 = scalar_lea.vmem %s1, 16
    %608 = vst.msk [vmem:[%s607] sm:$0xff] %vm606, %v605
    %s609 = scalar_lea.vmem [#allocation0], 389
    %s610 = smov 3
    %v611 = vld [vmem:[%s609] ss:$16 sm:%s610]
    %s612 = scalar_lea.vmem [#allocation0], 389
    %s613 = smov 12
    %v614 = vld [vmem:[%s612] ss:$16 sm:%s613]
    %vm615 = vcmask 1043458
    %v616 = vsel %vm615, %v614, %v611
    %s617 = scalar_lea.vmem [#allocation0], 389
    %s618 = smov 48
    %v619 = vld [vmem:[%s617] ss:$16 sm:%s618]
    %vm620 = vcmask 1045508
    %v621 = vsel %vm620, %v619, %v616
    %s622 = scalar_lea.vmem [#allocation0], 389
    %s623 = smov 192
    %v624 = vld [vmem:[%s622] ss:$16 sm:%s623]
    %vm625 = vcmask 1047558
    %v626 = vsel %vm625, %v624, %v621
    %627 = vrot.lane.b32.xlu0 %v626, 80
    %v628 = vpop.permute.xlu0 %627
    %vm629 = vcmask 786048
    %s630 = scalar_lea.vmem %s1, 48
    %631 = vst.msk [vmem:[%s630] sm:$0xff] %vm629, %v628
    %s632 = scalar_lea.vmem [#allocation0], 141
    %s633 = smov 3
    %v634 = vld [vmem:[%s632] ss:$16 sm:%s633]
    %s635 = scalar_lea.vmem [#allocation0], 141
    %s636 = smov 12
    %v637 = vld [vmem:[%s635] ss:$16 sm:%s636]
    %vm638 = vcmask 1043458
    %v639 = vsel %vm638, %v637, %v634
    %s640 = scalar_lea.vmem [#allocation0], 141
    %s641 = smov 48
    %v642 = vld [vmem:[%s640] ss:$16 sm:%s641]
    %vm643 = vcmask 1045508
    %v644 = vsel %vm643, %v642, %v639
    %s645 = scalar_lea.vmem [#allocation0], 141
    %s646 = smov 192
    %v647 = vld [vmem:[%s645] ss:$16 sm:%s646]
    %vm648 = vcmask 1047558
    %v649 = vsel %vm648, %v647, %v644
    %650 = vrot.lane.b32.xlu0 %v649, 80
    %v651 = vpop.permute.xlu0 %650
    %vm652 = vcmask 786048
    %s653 = scalar_lea.vmem %s1, 24
    %654 = vst.msk [vmem:[%s653] sm:$0xff] %vm652, %v651
    %s655 = scalar_lea.vmem [#allocation0], 397
    %s656 = smov 3
    %v657 = vld [vmem:[%s655] ss:$16 sm:%s656]
    %s658 = scalar_lea.vmem [#allocation0], 397
    %s659 = smov 12
    %v660 = vld [vmem:[%s658] ss:$16 sm:%s659]
    %vm661 = vcmask 1043458
    %v662 = vsel %vm661, %v660, %v657
    %s663 = scalar_lea.vmem [#allocation0], 397
    %s664 = smov 48
    %v665 = vld [vmem:[%s663] ss:$16 sm:%s664]
    %vm666 = vcmask 1045508
    %v667 = vsel %vm666, %v665, %v662
    %s668 = scalar_lea.vmem [#allocation0], 397
    %s669 = smov 192
    %v670 = vld [vmem:[%s668] ss:$16 sm:%s669]
    %vm671 = vcmask 1047558
    %v672 = vsel %vm671, %v670, %v667
    %673 = vrot.lane.b32.xlu0 %v672, 80
    %v674 = vpop.permute.xlu0 %673
    %vm675 = vcmask 786048
    %s676 = scalar_lea.vmem %s1, 56
    %677 = vst.msk [vmem:[%s676] sm:$0xff] %vm675, %v674
    %s678 = scalar_lea.vmem [#allocation0], 4
    %s679 = smov 3
    %v680 = vld [vmem:[%s678] ss:$16 sm:%s679]
    %s681 = scalar_lea.vmem [#allocation0], 4
    %s682 = smov 12
    %v683 = vld [vmem:[%s681] ss:$16 sm:%s682]
    %vm684 = vcmask 1043458
    %v685 = vsel %vm684, %v683, %v680
    %s686 = scalar_lea.vmem [#allocation0], 4
    %s687 = smov 48
    %v688 = vld [vmem:[%s686] ss:$16 sm:%s687]
    %vm689 = vcmask 1045508
    %v690 = vsel %vm689, %v688, %v685
    %s691 = scalar_lea.vmem [#allocation0], 4
    %s692 = smov 192
    %v693 = vld [vmem:[%s691] ss:$16 sm:%s692]
    %vm694 = vcmask 1047558
    %v695 = vsel %vm694, %v693, %v690
    %696 = vrot.lane.b32.xlu0 %v695, 64
    %v697 = vpop.permute.xlu0 %696
    %vm698 = vcmask 654848
    %699 = vst.msk [vmem:[%s1] sm:$0xff] %vm698, %v697
    %s700 = scalar_lea.vmem [#allocation0], 260
    %s701 = smov 3
    %v702 = vld [vmem:[%s700] ss:$16 sm:%s701]
    %s703 = scalar_lea.vmem [#allocation0], 260
    %s704 = smov 12
    %v705 = vld [vmem:[%s703] ss:$16 sm:%s704]
    %vm706 = vcmask 1043458
    %v707 = vsel %vm706, %v705, %v702
    %s708 = scalar_lea.vmem [#allocation0], 260
    %s709 = smov 48
    %v710 = vld [vmem:[%s708] ss:$16 sm:%s709]
    %vm711 = vcmask 1045508
    %v712 = vsel %vm711, %v710, %v707
    %s713 = scalar_lea.vmem [#allocation0], 260
    %s714 = smov 192
    %v715 = vld [vmem:[%s713] ss:$16 sm:%s714]
    %vm716 = vcmask 1047558
    %v717 = vsel %vm716, %v715, %v712
    %718 = vrot.lane.b32.xlu0 %v717, 64
    %v719 = vpop.permute.xlu0 %718
    %vm720 = vcmask 654848
    %s721 = scalar_lea.vmem %s1, 32
    %722 = vst.msk [vmem:[%s721] sm:$0xff] %vm720, %v719
    %s723 = scalar_lea.vmem [#allocation0], 12
    %s724 = smov 3
    %v725 = vld [vmem:[%s723] ss:$16 sm:%s724]
    %s726 = scalar_lea.vmem [#allocation0], 12
    %s727 = smov 12
    %v728 = vld [vmem:[%s726] ss:$16 sm:%s727]
    %vm729 = vcmask 1043458
    %v730 = vsel %vm729, %v728, %v725
    %s731 = scalar_lea.vmem [#allocation0], 12
    %s732 = smov 48
    %v733 = vld [vmem:[%s731] ss:$16 sm:%s732]
    %vm734 = vcmask 1045508
    %v735 = vsel %vm734, %v733, %v730
    %s736 = scalar_lea.vmem [#allocation0], 12
    %s737 = smov 192
    %v738 = vld [vmem:[%s736] ss:$16 sm:%s737]
    %vm739 = vcmask 1047558
    %v740 = vsel %vm739, %v738, %v735
    %741 = vrot.lane.b32.xlu0 %v740, 64
    %v742 = vpop.permute.xlu0 %741
    %vm743 = vcmask 654848
    %s744 = scalar_lea.vmem %s1, 8
    %745 = vst.msk [vmem:[%s744] sm:$0xff] %vm743, %v742
    %s746 = scalar_lea.vmem [#allocation0], 268
    %s747 = smov 3
    %v748 = vld [vmem:[%s746] ss:$16 sm:%s747]
    %s749 = scalar_lea.vmem [#allocation0], 268
    %s750 = smov 12
    %v751 = vld [vmem:[%s749] ss:$16 sm:%s750]
    %vm752 = vcmask 1043458
    %v753 = vsel %vm752, %v751, %v748
    %s754 = scalar_lea.vmem [#allocation0], 268
    %s755 = smov 48
    %v756 = vld [vmem:[%s754] ss:$16 sm:%s755]
    %vm757 = vcmask 1045508
    %v758 = vsel %vm757, %v756, %v753
    %s759 = scalar_lea.vmem [#allocation0], 268
    %s760 = smov 192
    %v761 = vld [vmem:[%s759] ss:$16 sm:%s760]
    %vm762 = vcmask 1047558
    %v763 = vsel %vm762, %v761, %v758
    %764 = vrot.lane.b32.xlu0 %v763, 64
    %v765 = vpop.permute.xlu0 %764
    %vm766 = vcmask 654848
    %s767 = scalar_lea.vmem %s1, 40
    %768 = vst.msk [vmem:[%s767] sm:$0xff] %vm766, %v765
    %s769 = scalar_lea.vmem [#allocation0], 132
    %s770 = smov 3
    %v771 = vld [vmem:[%s769] ss:$16 sm:%s770]
    %s772 = scalar_lea.vmem [#allocation0], 132
    %s773 = smov 12
    %v774 = vld [vmem:[%s772] ss:$16 sm:%s773]
    %vm775 = vcmask 1043458
    %v776 = vsel %vm775, %v774, %v771
    %s777 = scalar_lea.vmem [#allocation0], 132
    %s778 = smov 48
    %v779 = vld [vmem:[%s777] ss:$16 sm:%s778]
    %vm780 = vcmask 1045508
    %v781 = vsel %vm780, %v779, %v776
    %s782 = scalar_lea.vmem [#allocation0], 132
    %s783 = smov 192
    %v784 = vld [vmem:[%s782] ss:$16 sm:%s783]
    %vm785 = vcmask 1047558
    %v786 = vsel %vm785, %v784, %v781
    %787 = vrot.lane.b32.xlu0 %v786, 64
    %v788 = vpop.permute.xlu0 %787
    %vm789 = vcmask 654848
    %s790 = scalar_lea.vmem %s1, 16
    %791 = vst.msk [vmem:[%s790] sm:$0xff] %vm789, %v788
    %s792 = scalar_lea.vmem [#allocation0], 388
    %s793 = smov 3
    %v794 = vld [vmem:[%s792] ss:$16 sm:%s793]
    %s795 = scalar_lea.vmem [#allocation0], 388
    %s796 = smov 12
    %v797 = vld [vmem:[%s795] ss:$16 sm:%s796]
    %vm798 = vcmask 1043458
    %v799 = vsel %vm798, %v797, %v794
    %s800 = scalar_lea.vmem [#allocation0], 388
    %s801 = smov 48
    %v802 = vld [vmem:[%s800] ss:$16 sm:%s801]
    %vm803 = vcmask 1045508
    %v804 = vsel %vm803, %v802, %v799
    %s805 = scalar_lea.vmem [#allocation0], 388
    %s806 = smov 192
    %v807 = vld [vmem:[%s805] ss:$16 sm:%s806]
    %vm808 = vcmask 1047558
    %v809 = vsel %vm808, %v807, %v804
    %810 = vrot.lane.b32.xlu0 %v809, 64
    %v811 = vpop.permute.xlu0 %810
    %vm812 = vcmask 654848
    %s813 = scalar_lea.vmem %s1, 48
    %814 = vst.msk [vmem:[%s813] sm:$0xff] %vm812, %v811
    %s815 = scalar_lea.vmem [#allocation0], 140
    %s816 = smov 3
    %v817 = vld [vmem:[%s815] ss:$16 sm:%s816]
    %s818 = scalar_lea.vmem [#allocation0], 140
    %s819 = smov 12
    %v820 = vld [vmem:[%s818] ss:$16 sm:%s819]
    %vm821 = vcmask 1043458
    %v822 = vsel %vm821, %v820, %v817
    %s823 = scalar_lea.vmem [#allocation0], 140
    %s824 = smov 48
    %v825 = vld [vmem:[%s823] ss:$16 sm:%s824]
    %vm826 = vcmask 1045508
    %v827 = vsel %vm826, %v825, %v822
    %s828 = scalar_lea.vmem [#allocation0], 140
    %s829 = smov 192
    %v830 = vld [vmem:[%s828] ss:$16 sm:%s829]
    %vm831 = vcmask 1047558
    %v832 = vsel %vm831, %v830, %v827
    %833 = vrot.lane.b32.xlu0 %v832, 64
    %v834 = vpop.permute.xlu0 %833
    %vm835 = vcmask 654848
    %s836 = scalar_lea.vmem %s1, 24
    %837 = vst.msk [vmem:[%s836] sm:$0xff] %vm835, %v834
    %s838 = scalar_lea.vmem [#allocation0], 396
    %s839 = smov 3
    %v840 = vld [vmem:[%s838] ss:$16 sm:%s839]
    %s841 = scalar_lea.vmem [#allocation0], 396
    %s842 = smov 12
    %v843 = vld [vmem:[%s841] ss:$16 sm:%s842]
    %vm844 = vcmask 1043458
    %v845 = vsel %vm844, %v843, %v840
    %s846 = scalar_lea.vmem [#allocation0], 396
    %s847 = smov 48
    %v848 = vld [vmem:[%s846] ss:$16 sm:%s847]
    %vm849 = vcmask 1045508
    %v850 = vsel %vm849, %v848, %v845
    %s851 = scalar_lea.vmem [#allocation0], 396
    %s852 = smov 192
    %v853 = vld [vmem:[%s851] ss:$16 sm:%s852]
    %vm854 = vcmask 1047558
    %v855 = vsel %vm854, %v853, %v850
    %856 = vrot.lane.b32.xlu0 %v855, 64
    %v857 = vpop.permute.xlu0 %856
    %vm858 = vcmask 654848
    %s859 = scalar_lea.vmem %s1, 56
    %860 = vst.msk [vmem:[%s859] sm:$0xff] %vm858, %v857
    %s861 = scalar_lea.vmem [#allocation0], 3
    %s862 = smov 3
    %v863 = vld [vmem:[%s861] ss:$16 sm:%s862]
    %s864 = scalar_lea.vmem [#allocation0], 3
    %s865 = smov 12
    %v866 = vld [vmem:[%s864] ss:$16 sm:%s865]
    %vm867 = vcmask 1043458
    %v868 = vsel %vm867, %v866, %v863
    %s869 = scalar_lea.vmem [#allocation0], 3
    %s870 = smov 48
    %v871 = vld [vmem:[%s869] ss:$16 sm:%s870]
    %vm872 = vcmask 1045508
    %v873 = vsel %vm872, %v871, %v868
    %s874 = scalar_lea.vmem [#allocation0], 3
    %s875 = smov 192
    %v876 = vld [vmem:[%s874] ss:$16 sm:%s875]
    %vm877 = vcmask 1047558
    %v878 = vsel %vm877, %v876, %v873
    %879 = vrot.lane.b32.xlu0 %v878, 48
    %v880 = vpop.permute.xlu0 %879
    %vm881 = vcmask 523648
    %882 = vst.msk [vmem:[%s1] sm:$0xff] %vm881, %v880
    %s883 = scalar_lea.vmem [#allocation0], 259
    %s884 = smov 3
    %v885 = vld [vmem:[%s883] ss:$16 sm:%s884]
    %s886 = scalar_lea.vmem [#allocation0], 259
    %s887 = smov 12
    %v888 = vld [vmem:[%s886] ss:$16 sm:%s887]
    %vm889 = vcmask 1043458
    %v890 = vsel %vm889, %v888, %v885
    %s891 = scalar_lea.vmem [#allocation0], 259
    %s892 = smov 48
    %v893 = vld [vmem:[%s891] ss:$16 sm:%s892]
    %vm894 = vcmask 1045508
    %v895 = vsel %vm894, %v893, %v890
    %s896 = scalar_lea.vmem [#allocation0], 259
    %s897 = smov 192
    %v898 = vld [vmem:[%s896] ss:$16 sm:%s897]
    %vm899 = vcmask 1047558
    %v900 = vsel %vm899, %v898, %v895
    %901 = vrot.lane.b32.xlu0 %v900, 48
    %v902 = vpop.permute.xlu0 %901
    %vm903 = vcmask 523648
    %s904 = scalar_lea.vmem %s1, 32
    %905 = vst.msk [vmem:[%s904] sm:$0xff] %vm903, %v902
    %s906 = scalar_lea.vmem [#allocation0], 11
    %s907 = smov 3
    %v908 = vld [vmem:[%s906] ss:$16 sm:%s907]
    %s909 = scalar_lea.vmem [#allocation0], 11
    %s910 = smov 12
    %v911 = vld [vmem:[%s909] ss:$16 sm:%s910]
    %vm912 = vcmask 1043458
    %v913 = vsel %vm912, %v911, %v908
    %s914 = scalar_lea.vmem [#allocation0], 11
    %s915 = smov 48
    %v916 = vld [vmem:[%s914] ss:$16 sm:%s915]
    %vm917 = vcmask 1045508
    %v918 = vsel %vm917, %v916, %v913
    %s919 = scalar_lea.vmem [#allocation0], 11
    %s920 = smov 192
    %v921 = vld [vmem:[%s919] ss:$16 sm:%s920]
    %vm922 = vcmask 1047558
    %v923 = vsel %vm922, %v921, %v918
    %924 = vrot.lane.b32.xlu0 %v923, 48
    %v925 = vpop.permute.xlu0 %924
    %vm926 = vcmask 523648
    %s927 = scalar_lea.vmem %s1, 8
    %928 = vst.msk [vmem:[%s927] sm:$0xff] %vm926, %v925
    %s929 = scalar_lea.vmem [#allocation0], 267
    %s930 = smov 3
    %v931 = vld [vmem:[%s929] ss:$16 sm:%s930]
    %s932 = scalar_lea.vmem [#allocation0], 267
    %s933 = smov 12
    %v934 = vld [vmem:[%s932] ss:$16 sm:%s933]
    %vm935 = vcmask 1043458
    %v936 = vsel %vm935, %v934, %v931
    %s937 = scalar_lea.vmem [#allocation0], 267
    %s938 = smov 48
    %v939 = vld [vmem:[%s937] ss:$16 sm:%s938]
    %vm940 = vcmask 1045508
    %v941 = vsel %vm940, %v939, %v936
    %s942 = scalar_lea.vmem [#allocation0], 267
    %s943 = smov 192
    %v944 = vld [vmem:[%s942] ss:$16 sm:%s943]
    %vm945 = vcmask 1047558
    %v946 = vsel %vm945, %v944, %v941
    %947 = vrot.lane.b32.xlu0 %v946, 48
    %v948 = vpop.permute.xlu0 %947
    %vm949 = vcmask 523648
    %s950 = scalar_lea.vmem %s1, 40
    %951 = vst.msk [vmem:[%s950] sm:$0xff] %vm949, %v948
    %s952 = scalar_lea.vmem [#allocation0], 131
    %s953 = smov 3
    %v954 = vld [vmem:[%s952] ss:$16 sm:%s953]
    %s955 = scalar_lea.vmem [#allocation0], 131
    %s956 = smov 12
    %v957 = vld [vmem:[%s955] ss:$16 sm:%s956]
    %vm958 = vcmask 1043458
    %v959 = vsel %vm958, %v957, %v954
    %s960 = scalar_lea.vmem [#allocation0], 131
    %s961 = smov 48
    %v962 = vld [vmem:[%s960] ss:$16 sm:%s961]
    %vm963 = vcmask 1045508
    %v964 = vsel %vm963, %v962, %v959
    %s965 = scalar_lea.vmem [#allocation0], 131
    %s966 = smov 192
    %v967 = vld [vmem:[%s965] ss:$16 sm:%s966]
    %vm968 = vcmask 1047558
    %v969 = vsel %vm968, %v967, %v964
    %970 = vrot.lane.b32.xlu0 %v969, 48
    %v971 = vpop.permute.xlu0 %970
    %vm972 = vcmask 523648
    %s973 = scalar_lea.vmem %s1, 16
    %974 = vst.msk [vmem:[%s973] sm:$0xff] %vm972, %v971
    %s975 = scalar_lea.vmem [#allocation0], 387
    %s976 = smov 3
    %v977 = vld [vmem:[%s975] ss:$16 sm:%s976]
    %s978 = scalar_lea.vmem [#allocation0], 387
    %s979 = smov 12
    %v980 = vld [vmem:[%s978] ss:$16 sm:%s979]
    %vm981 = vcmask 1043458
    %v982 = vsel %vm981, %v980, %v977
    %s983 = scalar_lea.vmem [#allocation0], 387
    %s984 = smov 48
    %v985 = vld [vmem:[%s983] ss:$16 sm:%s984]
    %vm986 = vcmask 1045508
    %v987 = vsel %vm986, %v985, %v982
    %s988 = scalar_lea.vmem [#allocation0], 387
    %s989 = smov 192
    %v990 = vld [vmem:[%s988] ss:$16 sm:%s989]
    %vm991 = vcmask 1047558
    %v992 = vsel %vm991, %v990, %v987
    %993 = vrot.lane.b32.xlu0 %v992, 48
    %v994 = vpop.permute.xlu0 %993
    %vm995 = vcmask 523648
    %s996 = scalar_lea.vmem %s1, 48
    %997 = vst.msk [vmem:[%s996] sm:$0xff] %vm995, %v994
    %s998 = scalar_lea.vmem [#allocation0], 139
    %s999 = smov 3
    %v1000 = vld [vmem:[%s998] ss:$16 sm:%s999]
    %s1001 = scalar_lea.vmem [#allocation0], 139
    %s1002 = smov 12
    %v1003 = vld [vmem:[%s1001] ss:$16 sm:%s1002]
    %vm1004 = vcmask 1043458
    %v1005 = vsel %vm1004, %v1003, %v1000
    %s1006 = scalar_lea.vmem [#allocation0], 139
    %s1007 = smov 48
    %v1008 = vld [vmem:[%s1006] ss:$16 sm:%s1007]
    %vm1009 = vcmask 1045508
    %v1010 = vsel %vm1009, %v1008, %v1005
    %s1011 = scalar_lea.vmem [#allocation0], 139
    %s1012 = smov 192
    %v1013 = vld [vmem:[%s1011] ss:$16 sm:%s1012]
    %vm1014 = vcmask 1047558
    %v1015 = vsel %vm1014, %v1013, %v1010
    %1016 = vrot.lane.b32.xlu0 %v1015, 48
    %v1017 = vpop.permute.xlu0 %1016
    %vm1018 = vcmask 523648
    %s1019 = scalar_lea.vmem %s1, 24
    %1020 = vst.msk [vmem:[%s1019] sm:$0xff] %vm1018, %v1017
    %s1021 = scalar_lea.vmem [#allocation0], 395
    %s1022 = smov 3
    %v1023 = vld [vmem:[%s1021] ss:$16 sm:%s1022]
    %s1024 = scalar_lea.vmem [#allocation0], 395
    %s1025 = smov 12
    %v1026 = vld [vmem:[%s1024] ss:$16 sm:%s1025]
    %vm1027 = vcmask 1043458
    %v1028 = vsel %vm1027, %v1026, %v1023
    %s1029 = scalar_lea.vmem [#allocation0], 395
    %s1030 = smov 48
    %v1031 = vld [vmem:[%s1029] ss:$16 sm:%s1030]
    %vm1032 = vcmask 1045508
    %v1033 = vsel %vm1032, %v1031, %v1028
    %s1034 = scalar_lea.vmem [#allocation0], 395
    %s1035 = smov 192
    %v1036 = vld [vmem:[%s1034] ss:$16 sm:%s1035]
    %vm1037 = vcmask 1047558
    %v1038 = vsel %vm1037, %v1036, %v1033
    %1039 = vrot.lane.b32.xlu0 %v1038, 48
    %v1040 = vpop.permute.xlu0 %1039
    %vm1041 = vcmask 523648
    %s1042 = scalar_lea.vmem %s1, 56
    %1043 = vst.msk [vmem:[%s1042] sm:$0xff] %vm1041, %v1040
    %s1044 = scalar_lea.vmem [#allocation0], 2
    %s1045 = smov 3
    %v1046 = vld [vmem:[%s1044] ss:$16 sm:%s1045]
    %s1047 = scalar_lea.vmem [#allocation0], 2
    %s1048 = smov 12
    %v1049 = vld [vmem:[%s1047] ss:$16 sm:%s1048]
    %vm1050 = vcmask 1043458
    %v1051 = vsel %vm1050, %v1049, %v1046
    %s1052 = scalar_lea.vmem [#allocation0], 2
    %s1053 = smov 48
    %v1054 = vld [vmem:[%s1052] ss:$16 sm:%s1053]
    %vm1055 = vcmask 1045508
    %v1056 = vsel %vm1055, %v1054, %v1051
    %s1057 = scalar_lea.vmem [#allocation0], 2
    %s1058 = smov 192
    %v1059 = vld [vmem:[%s1057] ss:$16 sm:%s1058]
    %vm1060 = vcmask 1047558
    %v1061 = vsel %vm1060, %v1059, %v1056
    %1062 = vrot.lane.b32.xlu0 %v1061, 32
    %v1063 = vpop.permute.xlu0 %1062
    %vm1064 = vcmask 392448
    %1065 = vst.msk [vmem:[%s1] sm:$0xff] %vm1064, %v1063
    %s1066 = scalar_lea.vmem [#allocation0], 258
    %s1067 = smov 3
    %v1068 = vld [vmem:[%s1066] ss:$16 sm:%s1067]
    %s1069 = scalar_lea.vmem [#allocation0], 258
    %s1070 = smov 12
    %v1071 = vld [vmem:[%s1069] ss:$16 sm:%s1070]
    %vm1072 = vcmask 1043458
    %v1073 = vsel %vm1072, %v1071, %v1068
    %s1074 = scalar_lea.vmem [#allocation0], 258
    %s1075 = smov 48
    %v1076 = vld [vmem:[%s1074] ss:$16 sm:%s1075]
    %vm1077 = vcmask 1045508
    %v1078 = vsel %vm1077, %v1076, %v1073
    %s1079 = scalar_lea.vmem [#allocation0], 258
    %s1080 = smov 192
    %v1081 = vld [vmem:[%s1079] ss:$16 sm:%s1080]
    %vm1082 = vcmask 1047558
    %v1083 = vsel %vm1082, %v1081, %v1078
    %1084 = vrot.lane.b32.xlu0 %v1083, 32
    %v1085 = vpop.permute.xlu0 %1084
    %vm1086 = vcmask 392448
    %s1087 = scalar_lea.vmem %s1, 32
    %1088 = vst.msk [vmem:[%s1087] sm:$0xff] %vm1086, %v1085
    %s1089 = scalar_lea.vmem [#allocation0], 10
    %s1090 = smov 3
    %v1091 = vld [vmem:[%s1089] ss:$16 sm:%s1090]
    %s1092 = scalar_lea.vmem [#allocation0], 10
    %s1093 = smov 12
    %v1094 = vld [vmem:[%s1092] ss:$16 sm:%s1093]
    %vm1095 = vcmask 1043458
    %v1096 = vsel %vm1095, %v1094, %v1091
    %s1097 = scalar_lea.vmem [#allocation0], 10
    %s1098 = smov 48
    %v1099 = vld [vmem:[%s1097] ss:$16 sm:%s1098]
    %vm1100 = vcmask 1045508
    %v1101 = vsel %vm1100, %v1099, %v1096
    %s1102 = scalar_lea.vmem [#allocation0], 10
    %s1103 = smov 192
    %v1104 = vld [vmem:[%s1102] ss:$16 sm:%s1103]
    %vm1105 = vcmask 1047558
    %v1106 = vsel %vm1105, %v1104, %v1101
    %1107 = vrot.lane.b32.xlu0 %v1106, 32
    %v1108 = vpop.permute.xlu0 %1107
    %vm1109 = vcmask 392448
    %s1110 = scalar_lea.vmem %s1, 8
    %1111 = vst.msk [vmem:[%s1110] sm:$0xff] %vm1109, %v1108
    %s1112 = scalar_lea.vmem [#allocation0], 266
    %s1113 = smov 3
    %v1114 = vld [vmem:[%s1112] ss:$16 sm:%s1113]
    %s1115 = scalar_lea.vmem [#allocation0], 266
    %s1116 = smov 12
    %v1117 = vld [vmem:[%s1115] ss:$16 sm:%s1116]
    %vm1118 = vcmask 1043458
    %v1119 = vsel %vm1118, %v1117, %v1114
    %s1120 = scalar_lea.vmem [#allocation0], 266
    %s1121 = smov 48
    %v1122 = vld [vmem:[%s1120] ss:$16 sm:%s1121]
    %vm1123 = vcmask 1045508
    %v1124 = vsel %vm1123, %v1122, %v1119
    %s1125 = scalar_lea.vmem [#allocation0], 266
    %s1126 = smov 192
    %v1127 = vld [vmem:[%s1125] ss:$16 sm:%s1126]
    %vm1128 = vcmask 1047558
    %v1129 = vsel %vm1128, %v1127, %v1124
    %1130 = vrot.lane.b32.xlu0 %v1129, 32
    %v1131 = vpop.permute.xlu0 %1130
    %vm1132 = vcmask 392448
    %s1133 = scalar_lea.vmem %s1, 40
    %1134 = vst.msk [vmem:[%s1133] sm:$0xff] %vm1132, %v1131
    %s1135 = scalar_lea.vmem [#allocation0], 130
    %s1136 = smov 3
    %v1137 = vld [vmem:[%s1135] ss:$16 sm:%s1136]
    %s1138 = scalar_lea.vmem [#allocation0], 130
    %s1139 = smov 12
    %v1140 = vld [vmem:[%s1138] ss:$16 sm:%s1139]
    %vm1141 = vcmask 1043458
    %v1142 = vsel %vm1141, %v1140, %v1137
    %s1143 = scalar_lea.vmem [#allocation0], 130
    %s1144 = smov 48
    %v1145 = vld [vmem:[%s1143] ss:$16 sm:%s1144]
    %vm1146 = vcmask 1045508
    %v1147 = vsel %vm1146, %v1145, %v1142
    %s1148 = scalar_lea.vmem [#allocation0], 130
    %s1149 = smov 192
    %v1150 = vld [vmem:[%s1148] ss:$16 sm:%s1149]
    %vm1151 = vcmask 1047558
    %v1152 = vsel %vm1151, %v1150, %v1147
    %1153 = vrot.lane.b32.xlu0 %v1152, 32
    %v1154 = vpop.permute.xlu0 %1153
    %vm1155 = vcmask 392448
    %s1156 = scalar_lea.vmem %s1, 16
    %1157 = vst.msk [vmem:[%s1156] sm:$0xff] %vm1155, %v1154
    %s1158 = scalar_lea.vmem [#allocation0], 386
    %s1159 = smov 3
    %v1160 = vld [vmem:[%s1158] ss:$16 sm:%s1159]
    %s1161 = scalar_lea.vmem [#allocation0], 386
    %s1162 = smov 12
    %v1163 = vld [vmem:[%s1161] ss:$16 sm:%s1162]
    %vm1164 = vcmask 1043458
    %v1165 = vsel %vm1164, %v1163, %v1160
    %s1166 = scalar_lea.vmem [#allocation0], 386
    %s1167 = smov 48
    %v1168 = vld [vmem:[%s1166] ss:$16 sm:%s1167]
    %vm1169 = vcmask 1045508
    %v1170 = vsel %vm1169, %v1168, %v1165
    %s1171 = scalar_lea.vmem [#allocation0], 386
    %s1172 = smov 192
    %v1173 = vld [vmem:[%s1171] ss:$16 sm:%s1172]
    %vm1174 = vcmask 1047558
    %v1175 = vsel %vm1174, %v1173, %v1170
    %1176 = vrot.lane.b32.xlu0 %v1175, 32
    %v1177 = vpop.permute.xlu0 %1176
    %vm1178 = vcmask 392448
    %s1179 = scalar_lea.vmem %s1, 48
    %1180 = vst.msk [vmem:[%s1179] sm:$0xff] %vm1178, %v1177
    %s1181 = scalar_lea.vmem [#allocation0], 138
    %s1182 = smov 3
    %v1183 = vld [vmem:[%s1181] ss:$16 sm:%s1182]
    %s1184 = scalar_lea.vmem [#allocation0], 138
    %s1185 = smov 12
    %v1186 = vld [vmem:[%s1184] ss:$16 sm:%s1185]
    %vm1187 = vcmask 1043458
    %v1188 = vsel %vm1187, %v1186, %v1183
    %s1189 = scalar_lea.vmem [#allocation0], 138
    %s1190 = smov 48
    %v1191 = vld [vmem:[%s1189] ss:$16 sm:%s1190]
    %vm1192 = vcmask 1045508
    %v1193 = vsel %vm1192, %v1191, %v1188
    %s1194 = scalar_lea.vmem [#allocation0], 138
    %s1195 = smov 192
    %v1196 = vld [vmem:[%s1194] ss:$16 sm:%s1195]
    %vm1197 = vcmask 1047558
    %v1198 = vsel %vm1197, %v1196, %v1193
    %1199 = vrot.lane.b32.xlu0 %v1198, 32
    %v1200 = vpop.permute.xlu0 %1199
    %vm1201 = vcmask 392448
    %s1202 = scalar_lea.vmem %s1, 24
    %1203 = vst.msk [vmem:[%s1202] sm:$0xff] %vm1201, %v1200
    %s1204 = scalar_lea.vmem [#allocation0], 394
    %s1205 = smov 3
    %v1206 = vld [vmem:[%s1204] ss:$16 sm:%s1205]
    %s1207 = scalar_lea.vmem [#allocation0], 394
    %s1208 = smov 12
    %v1209 = vld [vmem:[%s1207] ss:$16 sm:%s1208]
    %vm1210 = vcmask 1043458
    %v1211 = vsel %vm1210, %v1209, %v1206
    %s1212 = scalar_lea.vmem [#allocation0], 394
    %s1213 = smov 48
    %v1214 = vld [vmem:[%s1212] ss:$16 sm:%s1213]
    %vm1215 = vcmask 1045508
    %v1216 = vsel %vm1215, %v1214, %v1211
    %s1217 = scalar_lea.vmem [#allocation0], 394
    %s1218 = smov 192
    %v1219 = vld [vmem:[%s1217] ss:$16 sm:%s1218]
    %vm1220 = vcmask 1047558
    %v1221 = vsel %vm1220, %v1219, %v1216
    %1222 = vrot.lane.b32.xlu0 %v1221, 32
    %v1223 = vpop.permute.xlu0 %1222
    %vm1224 = vcmask 392448
    %s1225 = scalar_lea.vmem %s1, 56
    %1226 = vst.msk [vmem:[%s1225] sm:$0xff] %vm1224, %v1223
    %s1227 = scalar_lea.vmem [#allocation0], 1
    %s1228 = smov 3
    %v1229 = vld [vmem:[%s1227] ss:$16 sm:%s1228]
    %s1230 = scalar_lea.vmem [#allocation0], 1
    %s1231 = smov 12
    %v1232 = vld [vmem:[%s1230] ss:$16 sm:%s1231]
    %vm1233 = vcmask 1043458
    %v1234 = vsel %vm1233, %v1232, %v1229
    %s1235 = scalar_lea.vmem [#allocation0], 1
    %s1236 = smov 48
    %v1237 = vld [vmem:[%s1235] ss:$16 sm:%s1236]
    %vm1238 = vcmask 1045508
    %v1239 = vsel %vm1238, %v1237, %v1234
    %s1240 = scalar_lea.vmem [#allocation0], 1
    %s1241 = smov 192
    %v1242 = vld [vmem:[%s1240] ss:$16 sm:%s1241]
    %vm1243 = vcmask 1047558
    %v1244 = vsel %vm1243, %v1242, %v1239
    %1245 = vrot.lane.b32.xlu0 %v1244, 16
    %v1246 = vpop.permute.xlu0 %1245
    %vm1247 = vcmask 261248
    %1248 = vst.msk [vmem:[%s1] sm:$0xff] %vm1247, %v1246
    %s1249 = scalar_lea.vmem [#allocation0], 257
    %s1250 = smov 3
    %v1251 = vld [vmem:[%s1249] ss:$16 sm:%s1250]
    %s1252 = scalar_lea.vmem [#allocation0], 257
    %s1253 = smov 12
    %v1254 = vld [vmem:[%s1252] ss:$16 sm:%s1253]
    %vm1255 = vcmask 1043458
    %v1256 = vsel %vm1255, %v1254, %v1251
    %s1257 = scalar_lea.vmem [#allocation0], 257
    %s1258 = smov 48
    %v1259 = vld [vmem:[%s1257] ss:$16 sm:%s1258]
    %vm1260 = vcmask 1045508
    %v1261 = vsel %vm1260, %v1259, %v1256
    %s1262 = scalar_lea.vmem [#allocation0], 257
    %s1263 = smov 192
    %v1264 = vld [vmem:[%s1262] ss:$16 sm:%s1263]
    %vm1265 = vcmask 1047558
    %v1266 = vsel %vm1265, %v1264, %v1261
    %1267 = vrot.lane.b32.xlu0 %v1266, 16
    %v1268 = vpop.permute.xlu0 %1267
    %vm1269 = vcmask 261248
    %s1270 = scalar_lea.vmem %s1, 32
    %1271 = vst.msk [vmem:[%s1270] sm:$0xff] %vm1269, %v1268
    %s1272 = scalar_lea.vmem [#allocation0], 9
    %s1273 = smov 3
    %v1274 = vld [vmem:[%s1272] ss:$16 sm:%s1273]
    %s1275 = scalar_lea.vmem [#allocation0], 9
    %s1276 = smov 12
    %v1277 = vld [vmem:[%s1275] ss:$16 sm:%s1276]
    %vm1278 = vcmask 1043458
    %v1279 = vsel %vm1278, %v1277, %v1274
    %s1280 = scalar_lea.vmem [#allocation0], 9
    %s1281 = smov 48
    %v1282 = vld [vmem:[%s1280] ss:$16 sm:%s1281]
    %vm1283 = vcmask 1045508
    %v1284 = vsel %vm1283, %v1282, %v1279
    %s1285 = scalar_lea.vmem [#allocation0], 9
    %s1286 = smov 192
    %v1287 = vld [vmem:[%s1285] ss:$16 sm:%s1286]
    %vm1288 = vcmask 1047558
    %v1289 = vsel %vm1288, %v1287, %v1284
    %1290 = vrot.lane.b32.xlu0 %v1289, 16
    %v1291 = vpop.permute.xlu0 %1290
    %vm1292 = vcmask 261248
    %s1293 = scalar_lea.vmem %s1, 8
    %1294 = vst.msk [vmem:[%s1293] sm:$0xff] %vm1292, %v1291
    %s1295 = scalar_lea.vmem [#allocation0], 265
    %s1296 = smov 3
    %v1297 = vld [vmem:[%s1295] ss:$16 sm:%s1296]
    %s1298 = scalar_lea.vmem [#allocation0], 265
    %s1299 = smov 12
    %v1300 = vld [vmem:[%s1298] ss:$16 sm:%s1299]
    %vm1301 = vcmask 1043458
    %v1302 = vsel %vm1301, %v1300, %v1297
    %s1303 = scalar_lea.vmem [#allocation0], 265
    %s1304 = smov 48
    %v1305 = vld [vmem:[%s1303] ss:$16 sm:%s1304]
    %vm1306 = vcmask 1045508
    %v1307 = vsel %vm1306, %v1305, %v1302
    %s1308 = scalar_lea.vmem [#allocation0], 265
    %s1309 = smov 192
    %v1310 = vld [vmem:[%s1308] ss:$16 sm:%s1309]
    %vm1311 = vcmask 1047558
    %v1312 = vsel %vm1311, %v1310, %v1307
    %1313 = vrot.lane.b32.xlu0 %v1312, 16
    %v1314 = vpop.permute.xlu0 %1313
    %vm1315 = vcmask 261248
    %s1316 = scalar_lea.vmem %s1, 40
    %1317 = vst.msk [vmem:[%s1316] sm:$0xff] %vm1315, %v1314
    %s1318 = scalar_lea.vmem [#allocation0], 129
    %s1319 = smov 3
    %v1320 = vld [vmem:[%s1318] ss:$16 sm:%s1319]
    %s1321 = scalar_lea.vmem [#allocation0], 129
    %s1322 = smov 12
    %v1323 = vld [vmem:[%s1321] ss:$16 sm:%s1322]
    %vm1324 = vcmask 1043458
    %v1325 = vsel %vm1324, %v1323, %v1320
    %s1326 = scalar_lea.vmem [#allocation0], 129
    %s1327 = smov 48
    %v1328 = vld [vmem:[%s1326] ss:$16 sm:%s1327]
    %vm1329 = vcmask 1045508
    %v1330 = vsel %vm1329, %v1328, %v1325
    %s1331 = scalar_lea.vmem [#allocation0], 129
    %s1332 = smov 192
    %v1333 = vld [vmem:[%s1331] ss:$16 sm:%s1332]
    %vm1334 = vcmask 1047558
    %v1335 = vsel %vm1334, %v1333, %v1330
    %1336 = vrot.lane.b32.xlu0 %v1335, 16
    %v1337 = vpop.permute.xlu0 %1336
    %vm1338 = vcmask 261248
    %s1339 = scalar_lea.vmem %s1, 16
    %1340 = vst.msk [vmem:[%s1339] sm:$0xff] %vm1338, %v1337
    %s1341 = scalar_lea.vmem [#allocation0], 385
    %s1342 = smov 3
    %v1343 = vld [vmem:[%s1341] ss:$16 sm:%s1342]
    %s1344 = scalar_lea.vmem [#allocation0], 385
    %s1345 = smov 12
    %v1346 = vld [vmem:[%s1344] ss:$16 sm:%s1345]
    %vm1347 = vcmask 1043458
    %v1348 = vsel %vm1347, %v1346, %v1343
    %s1349 = scalar_lea.vmem [#allocation0], 385
    %s1350 = smov 48
    %v1351 = vld [vmem:[%s1349] ss:$16 sm:%s1350]
    %vm1352 = vcmask 1045508
    %v1353 = vsel %vm1352, %v1351, %v1348
    %s1354 = scalar_lea.vmem [#allocation0], 385
    %s1355 = smov 192
    %v1356 = vld [vmem:[%s1354] ss:$16 sm:%s1355]
    %vm1357 = vcmask 1047558
    %v1358 = vsel %vm1357, %v1356, %v1353
    %1359 = vrot.lane.b32.xlu0 %v1358, 16
    %v1360 = vpop.permute.xlu0 %1359
    %vm1361 = vcmask 261248
    %s1362 = scalar_lea.vmem %s1, 48
    %1363 = vst.msk [vmem:[%s1362] sm:$0xff] %vm1361, %v1360
    %s1364 = scalar_lea.vmem [#allocation0], 137
    %s1365 = smov 3
    %v1366 = vld [vmem:[%s1364] ss:$16 sm:%s1365]
    %s1367 = scalar_lea.vmem [#allocation0], 137
    %s1368 = smov 12
    %v1369 = vld [vmem:[%s1367] ss:$16 sm:%s1368]
    %vm1370 = vcmask 1043458
    %v1371 = vsel %vm1370, %v1369, %v1366
    %s1372 = scalar_lea.vmem [#allocation0], 137
    %s1373 = smov 48
    %v1374 = vld [vmem:[%s1372] ss:$16 sm:%s1373]
    %vm1375 = vcmask 1045508
    %v1376 = vsel %vm1375, %v1374, %v1371
    %s1377 = scalar_lea.vmem [#allocation0], 137
    %s1378 = smov 192
    %v1379 = vld [vmem:[%s1377] ss:$16 sm:%s1378]
    %vm1380 = vcmask 1047558
    %v1381 = vsel %vm1380, %v1379, %v1376
    %1382 = vrot.lane.b32.xlu0 %v1381, 16
    %v1383 = vpop.permute.xlu0 %1382
    %vm1384 = vcmask 261248
    %s1385 = scalar_lea.vmem %s1, 24
    %1386 = vst.msk [vmem:[%s1385] sm:$0xff] %vm1384, %v1383
    %s1387 = scalar_lea.vmem [#allocation0], 393
    %s1388 = smov 3
    %v1389 = vld [vmem:[%s1387] ss:$16 sm:%s1388]
    %s1390 = scalar_lea.vmem [#allocation0], 393
    %s1391 = smov 12
    %v1392 = vld [vmem:[%s1390] ss:$16 sm:%s1391]
    %vm1393 = vcmask 1043458
    %v1394 = vsel %vm1393, %v1392, %v1389
    %s1395 = scalar_lea.vmem [#allocation0], 393
    %s1396 = smov 48
    %v1397 = vld [vmem:[%s1395] ss:$16 sm:%s1396]
    %vm1398 = vcmask 1045508
    %v1399 = vsel %vm1398, %v1397, %v1394
    %s1400 = scalar_lea.vmem [#allocation0], 393
    %s1401 = smov 192
    %v1402 = vld [vmem:[%s1400] ss:$16 sm:%s1401]
    %vm1403 = vcmask 1047558
    %v1404 = vsel %vm1403, %v1402, %v1399
    %1405 = vrot.lane.b32.xlu0 %v1404, 16
    %v1406 = vpop.permute.xlu0 %1405
    %vm1407 = vcmask 261248
    %s1408 = scalar_lea.vmem %s1, 56
    %1409 = vst.msk [vmem:[%s1408] sm:$0xff] %vm1407, %v1406
    %1410 = vsyncpa [#allocation1], 1

// kernel: run.2
$region0: #{run.2}
  #allocation0 [shape = 'u32[]', space=smem, size = 0x4, offset = 0x4, fixed_abs, tag = 'smem constant byte address 0x4 - core index']
  #allocation1 [shape = 'u32[144,128]{1,0:T(1,128)}', space=vmem, size = 0x12000, scoped, tag = 'internal scratch']
  #allocation2 [shape = 'f32[72,512]{1,0:T(8,128)}', space=vmem, size = 0x24000, scoped, tag = 'scratch operand']
  #allocation3 [shape = 'f32[64,256]{1,0:T(8,128)}', space=vmem, size = 0x10000, scoped, tag = 'scratch operand']
  %s0 = inlined_call_operand.vmem [shape: f32[9,16,72], index: 0, kind: input, shape index: {}]
  %s1 = inlined_call_operand.vmem [shape: f32[2,256], index: 1, kind: input, shape index: {}]
  %s2 = inlined_call_operand.vmem [shape: f32[2,4,256], index: 2, kind: input, shape index: {}]
  %s3 = inlined_call_operand.vmem [shape: f32[2,64,256], index: 3, kind: input, shape index: {}, may-alias: {3,4}]
  %s4 = inlined_call_operand.vmem [shape: f32[2,64,256], index: 4, kind: input, shape index: {}, may-alias: {3,4}]
  %s5 = inlined_call_operand.vmem [shape: f32[2,16,256], index: 5, kind: output, shape index: {}]
  %s6 = sld [smem:[#allocation0]]
  $region61: #{run.2} parent=0
    _
  %s8 = ssub.s32 1, %s6
  %s9 = scalar_select 0, %s8, %s6
  loop: start=0, step=1, limit=4
  $region2: #{run.2} parent=0 // loop_pre_header
    _
  $region3: #{run.2} parent=0 // loop_header
    %s11 = sphi 0, %s15
    %p12 = scmp.ge.s32.totalorder %s11, 4
    %s18 = sphi 0, %s37
    %s19 = sphi 0, %s33
    %s20 = sphi 0, %s29
    %s21 = sphi 0, %s18
    %s22 = sphi 0, %s19
    %s23 = sphi 0, %s20
    %s24 = sphi 0, %s21
    %s25 = sphi 0, %s22
    %s26 = sphi 0, %s23
    %s38 = sphi 0, %s38
    %s40 = sphi 0, %s38
    %s41 = sphi 0, %s40
    %s55 = sphi 0, %s41
    %s59 = sphi 0, %s59
    %s61 = sphi 0, %s59
    %s62 = sphi 0, %s61
    %s76 = sphi 0, %s62
    %s82 = sphi 0, %s84
    %s85 = sphi 0, %s82
    %s86 = sphi 0, %s85
    %s102 = sphi 0, %s86
    %s112 = sphi 0, %s114
    %s115 = sphi 0, %s112
    %s116 = sphi 0, %s115
    %s132 = sphi 0, %s116
    %s150 = sphi 0, %s152
    %s153 = sphi 0, %s150
    %s154 = sphi 0, %s153
    %s170 = sphi 0, %s154
    %s180 = sphi 0, %s182
    %s183 = sphi 0, %s180
    %s184 = sphi 0, %s183
    %s200 = sphi 0, %s184
  $region4: #{run.2} parent=0 // loop_header_branch
    %14 = sbr.rel (%p12) target = $region8
  $region5: #{run.2} parent=0 // loop_body
    %s16 = ssub.s32 %s11, 1
    %s17 = ssub.s32 %s11, 2
    %s27 = sadd.s32 1, %s20
    %p28 = scmp.ge.s32.totalorder %s27, 1
    %s29 = scalar_select %p28, 0, %s27
    %s30 = sadd.s32 1, %s19
    %s31 = scalar_select %p28, %s30, %s19
    %p32 = scmp.ge.s32.totalorder %s31, 1
    %s33 = scalar_select %p32, 0, %s31
    %s34 = sadd.s32 1, %s18
    %s35 = scalar_select %p32, %s34, %s18
    %p36 = scmp.ge.s32.totalorder %s35, 2
    %s37 = scalar_select %p36, 0, %s35
    %s39 = sadd.s32 %s38, 1
    %p42 = scmp.eq.s32.totalorder %s11, 1
    %p43 = scmp.ne.s32.totalorder %s38, %s40
    %p44 = scmp.eq.s32.totalorder %s11, 0
    %p45 = por %p43, %p44
    %p46 = scmp.ne.s32.totalorder %s38, %s40
    %p47 = scmp.eq.s32.totalorder %s16, 1
    %p48 = por %p46, %p47
    %p49 = scmp.ne.s32.totalorder %s40, %s41
    %p50 = scmp.eq.s32.totalorder %s16, 0
    %p51 = por %p49, %p50
    %p52 = scmp.ne.s32.totalorder %s40, %s41
    %p53 = scmp.eq.s32.totalorder %s17, 1
    %p54 = por %p52, %p53
    %p56 = scmp.ne.s32.totalorder %s41, %s55
    %p57 = scmp.eq.s32.totalorder %s17, 0
    %p58 = por %p56, %p57
    %s60 = sadd.s32 %s59, 1
    %p63 = scmp.eq.s32.totalorder %s11, 1
    %p64 = scmp.ne.s32.totalorder %s59, %s61
    %p65 = scmp.eq.s32.totalorder %s11, 0
    %p66 = por %p64, %p65
    %p67 = scmp.ne.s32.totalorder %s59, %s61
    %p68 = scmp.eq.s32.totalorder %s16, 1
    %p69 = por %p67, %p68
    %p70 = scmp.ne.s32.totalorder %s61, %s62
    %p71 = scmp.eq.s32.totalorder %s16, 0
    %p72 = por %p70, %p71
    %p73 = scmp.ne.s32.totalorder %s61, %s62
    %p74 = scmp.eq.s32.totalorder %s17, 1
    %p75 = por %p73, %p74
    %p77 = scmp.ne.s32.totalorder %s62, %s76
    %p78 = scmp.eq.s32.totalorder %s17, 0
    %p79 = por %p77, %p78
    %s80 = ssub.s32 %s18, %s37
    %p81 = scmp.eq.s32.totalorder %s80, 0
    %s83 = sadd.s32 %s82, 1
    %s84 = scalar_select %p81, %s82, %s83
    %p87 = pneg %p81
    %p88 = scmp.eq.s32.totalorder %s11, 1
    %p89 = por %p87, %p88
    %p90 = scmp.ne.s32.totalorder %s82, %s85
    %p91 = scmp.eq.s32.totalorder %s11, 0
    %p92 = por %p90, %p91
    %p93 = scmp.ne.s32.totalorder %s82, %s85
    %p94 = scmp.eq.s32.totalorder %s16, 1
    %p95 = por %p93, %p94
    %p96 = scmp.ne.s32.totalorder %s85, %s86
    %p97 = scmp.eq.s32.totalorder %s16, 0
    %p98 = por %p96, %p97
    %p99 = scmp.ne.s32.totalorder %s85, %s86
    %p100 = scmp.eq.s32.totalorder %s17, 1
    %p101 = por %p99, %p100
    %p103 = scmp.ne.s32.totalorder %s86, %s102
    %p104 = scmp.eq.s32.totalorder %s17, 0
    %p105 = por %p103, %p104
    %s106 = sadd.s32 %s18, %s19
    %s107 = sadd.s32 %s37, %s33
    %s108 = ssub.s32 %s106, %s107
    %s109 = ssub.s32 %s20, %s29
    %s110 = sor.u32 %s108, %s109
    %p111 = scmp.eq.s32.totalorder %s110, 0
    %s113 = sadd.s32 %s112, 1
    %s114 = scalar_select %p111, %s112, %s113
    %p117 = pneg %p111
    %p118 = scmp.eq.s32.totalorder %s11, 1
    %p119 = por %p117, %p118
    %p120 = scmp.ne.s32.totalorder %s112, %s115
    %p121 = scmp.eq.s32.totalorder %s11, 0
    %p122 = por %p120, %p121
    %p123 = scmp.ne.s32.totalorder %s112, %s115
    %p124 = scmp.eq.s32.totalorder %s16, 1
    %p125 = por %p123, %p124
    %p126 = scmp.ne.s32.totalorder %s115, %s116
    %p127 = scmp.eq.s32.totalorder %s16, 0
    %p128 = por %p126, %p127
    %p129 = scmp.ne.s32.totalorder %s115, %s116
    %p130 = scmp.eq.s32.totalorder %s17, 1
    %p131 = por %p129, %p130
    %p133 = scmp.ne.s32.totalorder %s116, %s132
    %p134 = scmp.eq.s32.totalorder %s17, 0
    %p135 = por %p133, %p134
    %s136 = sadd.s32 %s18, %s19
    %s137 = sadd.s32 %s20, 1
    %s138 = smul.u32 %s137, 8
    %p139 = scmp.lt.s32.totalorder %s138, 7
    %s140 = scalar_select %p139, %s138, 7
    %s141 = sadd.s32 %s37, %s33
    %s142 = sadd.s32 %s29, 1
    %s143 = smul.u32 %s142, 8
    %p144 = scmp.lt.s32.totalorder %s143, 7
    %s145 = scalar_select %p144, %s143, 7
    %s146 = ssub.s32 %s136, %s141
    %s147 = ssub.s32 %s140, %s145
    %s148 = sor.u32 %s146, %s147
    %p149 = scmp.eq.s32.totalorder %s148, 0
    %s151 = sadd.s32 %s150, 1
    %s152 = scalar_select %p149, %s150, %s151
    %p155 = pneg %p149
    %p156 = scmp.eq.s32.totalorder %s11, 1
    %p157 = por %p155, %p156
    %p158 = scmp.ne.s32.totalorder %s150, %s153
    %p159 = scmp.eq.s32.totalorder %s11, 0
    %p160 = por %p158, %p159
    %p161 = scmp.ne.s32.totalorder %s150, %s153
    %p162 = scmp.eq.s32.totalorder %s16, 1
    %p163 = por %p161, %p162
    %p164 = scmp.ne.s32.totalorder %s153, %s154
    %p165 = scmp.eq.s32.totalorder %s16, 0
    %p166 = por %p164, %p165
    %p167 = scmp.ne.s32.totalorder %s153, %s154
    %p168 = scmp.eq.s32.totalorder %s17, 1
    %p169 = por %p167, %p168
    %p171 = scmp.ne.s32.totalorder %s154, %s170
    %p172 = scmp.eq.s32.totalorder %s17, 0
    %p173 = por %p171, %p172
    %s174 = sadd.s32 %s18, %s19
    %s175 = sadd.s32 %s37, %s33
    %s176 = ssub.s32 %s174, %s175
    %s177 = ssub.s32 %s20, %s29
    %s178 = sor.u32 %s176, %s177
    %p179 = scmp.eq.s32.totalorder %s178, 0
    %s181 = sadd.s32 %s180, 1
    %s182 = scalar_select %p179, %s180, %s181
    %p185 = pneg %p179
    %p186 = scmp.eq.s32.totalorder %s11, 1
    %p187 = por %p185, %p186
    %p188 = scmp.ne.s32.totalorder %s180, %s183
    %p189 = scmp.eq.s32.totalorder %s11, 0
    %p190 = por %p188, %p189
    %p191 = scmp.ne.s32.totalorder %s180, %s183
    %p192 = scmp.eq.s32.totalorder %s16, 1
    %p193 = por %p191, %p192
    %p194 = scmp.ne.s32.totalorder %s183, %s184
    %p195 = scmp.eq.s32.totalorder %s16, 0
    %p196 = por %p194, %p195
    %p197 = scmp.ne.s32.totalorder %s183, %s184
    %p198 = scmp.eq.s32.totalorder %s17, 1
    %p199 = por %p197, %p198
    %p201 = scmp.ne.s32.totalorder %s184, %s200
    %p202 = scmp.eq.s32.totalorder %s17, 0
    %p203 = por %p201, %p202
    %p204 = scmp.le.s32.totalorder 1, %s11
    %p205 = scmp.lt.s32.totalorder %s11, 3
    %p206 = pnand %p204, %p205
    %p207 = pneg %p206
    // Predicated region
    $region9: #{run.2} parent=5 // pred_check
      _
    $region10: #{run.2} parent=5 // pred_check_branch
      %209 = sbr.rel (%p206) target = $region12
    $region11: #{run.2} parent=5 // pred_region
      %s210 = ssub.s32 %s11, 1
      // Predicated region
      $region13: #{run.2} parent=11 // pred_check
        %p211 = pneg %p51
      $region14: #{run.2} parent=11 // pred_check_branch
        %213 = sbr.rel (%p211) target = $region16
      $region15: #{run.2} parent=11 // pred_region
        _
      $region16: #{run.2} parent=11 // pred_fallthru
        _
      // Predicated region
      $region17: #{run.2} parent=11 // pred_check
        %p214 = pneg %p72
      $region18: #{run.2} parent=11 // pred_check_branch
        %216 = sbr.rel (%p214) target = $region20
      $region19: #{run.2} parent=11 // pred_region
        _
      $region20: #{run.2} parent=11 // pred_fallthru
        _
    $region12: #{run.2} parent=5 // pred_fallthru
      _
    %p217 = scmp.lt.s32.totalorder %s11, 2
    // Predicated region
    $region21: #{run.2} parent=5 // pred_check
      %p218 = pneg %p217
    $region22: #{run.2} parent=5 // pred_check_branch
      %220 = sbr.rel (%p218) target = $region24
    $region23: #{run.2} parent=5 // pred_region
      // Predicated region
      $region25: #{run.2} parent=23 // pred_check
        %p221 = pneg %p92
      $region26: #{run.2} parent=23 // pred_check_branch
        %223 = sbr.rel (%p221) target = $region28
      $region27: #{run.2} parent=23 // pred_region
        %p224 = scmp.lt.s32.totalorder %s18, 1
        %s225 = scalar_select %p224, %s18, 1
        %s226 = smul.addr %s225, 2
        %s227 = smul.addr %s226, 4
        %s228 = scalar_lea.vmem %s2, %s227
      $region28: #{run.2} parent=23 // pred_fallthru
        _
      // Predicated region
      $region29: #{run.2} parent=23 // pred_check
        %p229 = pneg %p122
      $region30: #{run.2} parent=23 // pred_check_branch
        %231 = sbr.rel (%p229) target = $region32
      $region31: #{run.2} parent=23 // pred_region
        %s232 = sadd.s32 %s18, %s19
        %s233 = smul.u32 8, %s20
        %p234 = scmp.lt.s32.totalorder %s232, 1
        %s235 = scalar_select %p234, %s232, 1
        %p236 = scmp.lt.s32.totalorder %s233, 7
        %s237 = scalar_select %p236, %s233, 7
        %s238 = smul.addr %s237, 2
        %s239 = smul.addr %s235, 16
        %s240 = sadd.s32 %s238, %s239
        %s241 = smul.addr %s240, 8
        %s242 = scalar_lea.vmem %s3, %s241
        %s243 = sadd.s32 %s18, %s19
        %s244 = smul.u32 8, %s20
      $region32: #{run.2} parent=23 // pred_fallthru
        _
      // Predicated region
      $region33: #{run.2} parent=23 // pred_check
        %p245 = pneg %p160
      $region34: #{run.2} parent=23 // pred_check_branch
        %247 = sbr.rel (%p245) target = $region36
      $region35: #{run.2} parent=23 // pred_region
        %s248 = sadd.s32 %s18, %s19
        %s249 = sadd.s32 %s20, 1
        %s250 = smul.u32 %s249, 8
        %p251 = scmp.lt.s32.totalorder %s250, 7
        %s252 = scalar_select %p251, %s250, 7
        %p253 = scmp.lt.s32.totalorder %s248, 1
        %s254 = scalar_select %p253, %s248, 1
        %p255 = scmp.lt.s32.totalorder %s252, 7
        %s256 = scalar_select %p255, %s252, 7
        %s257 = smul.addr %s256, 2
        %s258 = smul.addr %s254, 16
        %s259 = sadd.s32 %s257, %s258
        %s260 = smul.addr %s259, 8
        %s261 = scalar_lea.vmem %s4, %s260
        %s262 = sadd.s32 %s18, %s19
        %s263 = sadd.s32 %s20, 1
        %s264 = smul.u32 %s263, 8
        %p265 = scmp.lt.s32.totalorder %s264, 7
        %s266 = scalar_select %p265, %s264, 7
      $region36: #{run.2} parent=23 // pred_fallthru
        _
    $region24: #{run.2} parent=5 // pred_fallthru
      _
    %p267 = scmp.le.s32.totalorder 1, %s11
    %p268 = scmp.lt.s32.totalorder %s11, 3
    %p269 = pnand %p267, %p268
    %p270 = pneg %p269
    // Predicated region
    $region37: #{run.2} parent=5 // pred_check
      _
    $region38: #{run.2} parent=5 // pred_check_branch
      %272 = sbr.rel (%p269) target = $region40
    $region39: #{run.2} parent=5 // pred_region
      %s273 = ssub.s32 %s11, 1
      %p274 = pneg %p51
      %p275 = pneg %p48
      %p276 = pneg %p72
      %p277 = pneg %p69
      %p278 = scmp.lt.s32.totalorder %s21, 1
      %s279 = scalar_select %p278, %s21, 1
      %s280 = smul.addr %s279, 2
      %s281 = smul.addr %s280, 4
      %s282 = scalar_lea.vmem %s2, %s281
      %p283 = pneg %p98
      %p284 = pneg %p95
      %s285 = sadd.s32 %s21, %s22
      %s286 = smul.u32 8, %s23
      %p287 = scmp.lt.s32.totalorder %s285, 1
      %s288 = scalar_select %p287, %s285, 1
      %p289 = scmp.lt.s32.totalorder %s286, 7
      %s290 = scalar_select %p289, %s286, 7
      %s291 = smul.addr %s290, 2
      %s292 = smul.addr %s288, 16
      %s293 = sadd.s32 %s291, %s292
      %s294 = smul.addr %s293, 8
      %s295 = scalar_lea.vmem %s3, %s294
      %p296 = pneg %p128
      %p297 = pneg %p125
      %s298 = sadd.s32 %s21, %s22
      %s299 = sadd.s32 %s23, 1
      %s300 = smul.u32 %s299, 8
      %p301 = scmp.lt.s32.totalorder %s300, 7
      %s302 = scalar_select %p301, %s300, 7
      %p303 = scmp.lt.s32.totalorder %s298, 1
      %s304 = scalar_select %p303, %s298, 1
      %p305 = scmp.lt.s32.totalorder %s302, 7
      %s306 = scalar_select %p305, %s302, 7
      %s307 = smul.addr %s306, 2
      %s308 = smul.addr %s304, 16
      %s309 = sadd.s32 %s307, %s308
      %s310 = smul.addr %s309, 8
      %s311 = scalar_lea.vmem %s4, %s310
      %p312 = pneg %p166
      %p313 = pneg %p163
      %p314 = pneg %p196
      %p315 = pneg %p193
      %s316 = sadd.s32 %s21, %s22
      %s317 = smul.u32 2, %s23
      %p318 = scmp.lt.s32.totalorder %s316, 1
      %s319 = scalar_select %p318, %s316, 1
      %p320 = scmp.lt.s32.totalorder %s317, 1
      %s321 = scalar_select %p320, %s317, 1
      %s322 = smul.addr %s321, 2
      %s323 = smul.addr %s319, 4
      %s324 = sadd.s32 %s322, %s323
      %s325 = smul.addr %s324, 8
      %s326 = scalar_lea.vmem %s5, %s325
      %p327 = scmp.lt.s32.totalorder %s21, 1
      %s328 = scalar_select %p327, %s21, 1
      %s329 = smul.addr %s328, 2
      %s330 = smul.addr %s329, 4
      %s331 = scalar_lea.vmem %s2, %s330
      %s332 = sadd.s32 %s21, %s22
      %s333 = smul.u32 8, %s23
      %p334 = scmp.lt.s32.totalorder %s332, 1
      %s335 = scalar_select %p334, %s332, 1
      %p336 = scmp.lt.s32.totalorder %s333, 7
      %s337 = scalar_select %p336, %s333, 7
      %s338 = smul.addr %s337, 2
      %s339 = smul.addr %s335, 16
      %s340 = sadd.s32 %s338, %s339
      %s341 = smul.addr %s340, 8
      %s342 = scalar_lea.vmem %s3, %s341
      %s343 = sadd.s32 %s21, %s22
      %s344 = smul.u32 8, %s23
      %s345 = sadd.s32 %s21, %s22
      %s346 = sadd.s32 %s23, 1
      %s347 = smul.u32 %s346, 8
      %p348 = scmp.lt.s32.totalorder %s347, 7
      %s349 = scalar_select %p348, %s347, 7
      %p350 = scmp.lt.s32.totalorder %s345, 1
      %s351 = scalar_select %p350, %s345, 1
      %p352 = scmp.lt.s32.totalorder %s349, 7
      %s353 = scalar_select %p352, %s349, 7
      %s354 = smul.addr %s353, 2
      %s355 = smul.addr %s351, 16
      %s356 = sadd.s32 %s354, %s355
      %s357 = smul.addr %s356, 8
      %s358 = scalar_lea.vmem %s4, %s357
      %s359 = sadd.s32 %s21, %s22
      %s360 = sadd.s32 %s23, 1
      %s361 = smul.u32 %s360, 8
      %p362 = scmp.lt.s32.totalorder %s361, 7
      %s363 = scalar_select %p362, %s361, 7
      %s364 = sadd.s32 %s21, %s22
      %s365 = smul.u32 2, %s23
      %p366 = scmp.lt.s32.totalorder %s364, 1
      %s367 = scalar_select %p366, %s364, 1
      %p368 = scmp.lt.s32.totalorder %s365, 1
      %s369 = scalar_select %p368, %s365, 1
      %s370 = smul.addr %s369, 2
      %s371 = smul.addr %s367, 4
      %s372 = sadd.s32 %s370, %s371
      %s373 = smul.addr %s372, 8
      %s374 = scalar_lea.vmem %s5, %s373
      %s375 = sadd.s32 %s21, %s22
      %s376 = smul.u32 2, %s23
      %p377 = scmp.eq.s32.totalorder %s23, 0
      // Predicated region
      $region41: #{run.2} parent=39 // pred_check
        %p378 = pneg %p377
      $region42: #{run.2} parent=39 // pred_check_branch
        %380 = sbr.rel (%p378) target = $region44
      $region43: #{run.2} parent=39 // pred_region
        %381 = vst [vmem:[#allocation2] sm:$0xff] 0.0
        %382 = vst [vmem:[#allocation2 + $0x8] sm:$0xff] 0.0
        %383 = vst [vmem:[#allocation2 + $0x10] sm:$0xff] 0.0
        %384 = vst [vmem:[#allocation2 + $0x18] sm:$0xff] 0.0
        %385 = vst [vmem:[#allocation2 + $0x20] sm:$0xff] 0.0
        %386 = vst [vmem:[#allocation2 + $0x28] sm:$0xff] 0.0
        %387 = vst [vmem:[#allocation2 + $0x30] sm:$0xff] 0.0
        %388 = vst [vmem:[#allocation2 + $0x38] sm:$0xff] 0.0
        %389 = vst [vmem:[#allocation2 + $0x40] sm:$0xff] 0.0
        %390 = vst [vmem:[#allocation2 + $0x48] sm:$0xff] 0.0
        %391 = vst [vmem:[#allocation2 + $0x50] sm:$0xff] 0.0
        %392 = vst [vmem:[#allocation2 + $0x58] sm:$0xff] 0.0
        %393 = vst [vmem:[#allocation2 + $0x60] sm:$0xff] 0.0
        %394 = vst [vmem:[#allocation2 + $0x68] sm:$0xff] 0.0
        %395 = vst [vmem:[#allocation2 + $0x70] sm:$0xff] 0.0
        %396 = vst [vmem:[#allocation2 + $0x78] sm:$0xff] 0.0
        %397 = vst [vmem:[#allocation2 + $0x80] sm:$0xff] 0.0
        %398 = vst [vmem:[#allocation2 + $0x88] sm:$0xff] 0.0
        %399 = vst [vmem:[#allocation2 + $0x90] sm:$0xff] 0.0
        %400 = vst [vmem:[#allocation2 + $0x98] sm:$0xff] 0.0
        %401 = vst [vmem:[#allocation2 + $0xa0] sm:$0xff] 0.0
        %402 = vst [vmem:[#allocation2 + $0xa8] sm:$0xff] 0.0
        %403 = vst [vmem:[#allocation2 + $0xb0] sm:$0xff] 0.0
        %404 = vst [vmem:[#allocation2 + $0xb8] sm:$0xff] 0.0
        %405 = vst [vmem:[#allocation2 + $0xc0] sm:$0xff] 0.0
        %406 = vst [vmem:[#allocation2 + $0xc8] sm:$0xff] 0.0
        %407 = vst [vmem:[#allocation2 + $0xd0] sm:$0xff] 0.0
        %408 = vst [vmem:[#allocation2 + $0xd8] sm:$0xff] 0.0
        %409 = vst [vmem:[#allocation2 + $0xe0] sm:$0xff] 0.0
        %410 = vst [vmem:[#allocation2 + $0xe8] sm:$0xff] 0.0
        %411 = vst [vmem:[#allocation2 + $0xf0] sm:$0xff] 0.0
        %412 = vst [vmem:[#allocation2 + $0xf8] sm:$0xff] 0.0
        %413 = vst [vmem:[#allocation2 + $0x100] sm:$0xff] 0.0
        %414 = vst [vmem:[#allocation2 + $0x108] sm:$0xff] 0.0
        %415 = vst [vmem:[#allocation2 + $0x110] sm:$0xff] 0.0
        %416 = vst [vmem:[#allocation2 + $0x118] sm:$0xff] 0.0
        %v417 = vld [vmem:[%s331] sm:$0xff]
        %v419 = vcombine.high %v417, %v417
        %421 = vst [vmem:[#allocation3] sm:$0xf] %v417
        %422 = vst [vmem:[#allocation3 + $0x8] sm:$0xf] %v419
        %v423 = vcombine.low %v417, %v417
        %425 = vst [vmem:[#allocation3] sm:$0xf0] %v423
        %426 = vst [vmem:[#allocation3 + $0x8] sm:$0xf0] %v417
        %427 = vst [vmem:[#allocation3 + $0x10] sm:$0xf] %v417
        %428 = vst [vmem:[#allocation3 + $0x18] sm:$0xf] %v419
        %429 = vst [vmem:[#allocation3 + $0x10] sm:$0xf0] %v423
        %430 = vst [vmem:[#allocation3 + $0x18] sm:$0xf0] %v417
        %431 = vst [vmem:[#allocation3 + $0x20] sm:$0xf] %v417
        %432 = vst [vmem:[#allocation3 + $0x28] sm:$0xf] %v419
        %433 = vst [vmem:[#allocation3 + $0x20] sm:$0xf0] %v423
        %434 = vst [vmem:[#allocation3 + $0x28] sm:$0xf0] %v417
        %435 = vst [vmem:[#allocation3 + $0x30] sm:$0xf] %v417
        %436 = vst [vmem:[#allocation3 + $0x38] sm:$0xf] %v419
        %437 = vst [vmem:[#allocation3 + $0x30] sm:$0xf0] %v423
        %438 = vst [vmem:[#allocation3 + $0x38] sm:$0xf0] %v417
        %439 = vst [vmem:[#allocation3 + $0x40] sm:$0xf] %v417
        %440 = vst [vmem:[#allocation3 + $0x48] sm:$0xf] %v419
        %441 = vst [vmem:[#allocation3 + $0x40] sm:$0xf0] %v423
        %442 = vst [vmem:[#allocation3 + $0x48] sm:$0xf0] %v417
        %443 = vst [vmem:[#allocation3 + $0x50] sm:$0xf] %v417
        %444 = vst [vmem:[#allocation3 + $0x58] sm:$0xf] %v419
        %445 = vst [vmem:[#allocation3 + $0x50] sm:$0xf0] %v423
        %446 = vst [vmem:[#allocation3 + $0x58] sm:$0xf0] %v417
        %447 = vst [vmem:[#allocation3 + $0x60] sm:$0xf] %v417
        %448 = vst [vmem:[#allocation3 + $0x68] sm:$0xf] %v419
        %449 = vst [vmem:[#allocation3 + $0x60] sm:$0xf0] %v423
        %450 = vst [vmem:[#allocation3 + $0x68] sm:$0xf0] %v417
        %451 = vst [vmem:[#allocation3 + $0x70] sm:$0xf] %v417
        %452 = vst [vmem:[#allocation3 + $0x78] sm:$0xf] %v419
        %453 = vst [vmem:[#allocation3 + $0x70] sm:$0xf0] %v423
        %454 = vst [vmem:[#allocation3 + $0x78] sm:$0xf0] %v417
      $region44: #{run.2} parent=39 // pred_fallthru
        _
      %p455 = scmp.gt.s32.totalorder %s23, 0
      // Predicated region
      $region45: #{run.2} parent=39 // pred_check
        %p456 = pneg %p455
      $region46: #{run.2} parent=39 // pred_check_branch
        %458 = sbr.rel (%p456) target = $region48
      $region47: #{run.2} parent=39 // pred_region
        %v459 = vld [vmem:[#allocation2 + $0xe8] sm:$0xf0]
        %v460 = vld [vmem:[#allocation2 + $0xf0] sm:$0xf0]
        %v463 = vrot.slane %v459, 4
        %v464 = vrot.slane %v460, 4
        %467 = vst [vmem:[#allocation2 + $0x108] sm:$0xf] %v463
        %468 = vst [vmem:[#allocation2 + $0x110] sm:$0xf] %v464
      $region48: #{run.2} parent=39 // pred_fallthru
        _
      %v469 = vld [vmem:[#allocation3] sm:$0xff]
      %v470 = vld [vmem:[#allocation3 + $0x8] sm:$0xff]
      %v471 = vld [vmem:[#allocation3 + $0x10] sm:$0xff]
      %v472 = vld [vmem:[#allocation3 + $0x18] sm:$0xff]
      %v473 = vld [vmem:[#allocation3 + $0x20] sm:$0xff]
      %v474 = vld [vmem:[#allocation3 + $0x28] sm:$0xff]
      %v475 = vld [vmem:[#allocation3 + $0x30] sm:$0xff]
      %v476 = vld [vmem:[#allocation3 + $0x38] sm:$0xff]
      %v477 = vld [vmem:[#allocation3 + $0x40] sm:$0xff]
      %v478 = vld [vmem:[#allocation3 + $0x48] sm:$0xff]
      %v479 = vld [vmem:[#allocation3 + $0x50] sm:$0xff]
      %v480 = vld [vmem:[#allocation3 + $0x58] sm:$0xff]
      %v481 = vld [vmem:[#allocation3 + $0x60] sm:$0xff]
      %v482 = vld [vmem:[#allocation3 + $0x68] sm:$0xff]
      %v483 = vld [vmem:[#allocation3 + $0x70] sm:$0xff]
      %v484 = vld [vmem:[#allocation3 + $0x78] sm:$0xff]
      %v485 = vld [vmem:[%s342] sm:$0xff]
      %v486 = vld [vmem:[%s342 + $0x8] sm:$0xff]
      %v487 = vld [vmem:[%s342 + $0x10] sm:$0xff]
      %v488 = vld [vmem:[%s342 + $0x18] sm:$0xff]
      %v489 = vld [vmem:[%s342 + $0x20] sm:$0xff]
      %v490 = vld [vmem:[%s342 + $0x28] sm:$0xff]
      %v491 = vld [vmem:[%s342 + $0x30] sm:$0xff]
      %v492 = vld [vmem:[%s342 + $0x38] sm:$0xff]
      %v493 = vld [vmem:[%s342 + $0x40] sm:$0xff]
      %v494 = vld [vmem:[%s342 + $0x48] sm:$0xff]
      %v495 = vld [vmem:[%s342 + $0x50] sm:$0xff]
      %v496 = vld [vmem:[%s342 + $0x58] sm:$0xff]
      %v497 = vld [vmem:[%s342 + $0x60] sm:$0xff]
      %v498 = vld [vmem:[%s342 + $0x68] sm:$0xff]
      %v499 = vld [vmem:[%s342 + $0x70] sm:$0xff]
      %v500 = vld [vmem:[%s342 + $0x78] sm:$0xff]
      %v501 = vmul.f32 %v469, %v485
      %v502 = vmul.f32 %v470, %v486
      %v503 = vmul.f32 %v471, %v487
      %v504 = vmul.f32 %v472, %v488
      %v505 = vmul.f32 %v473, %v489
      %v506 = vmul.f32 %v474, %v490
      %v507 = vmul.f32 %v475, %v491
      %v508 = vmul.f32 %v476, %v492
      %v509 = vmul.f32 %v477, %v493
      %v510 = vmul.f32 %v478, %v494
      %v511 = vmul.f32 %v479, %v495
      %v512 = vmul.f32 %v480, %v496
      %v513 = vmul.f32 %v481, %v497
      %v514 = vmul.f32 %v482, %v498
      %v515 = vmul.f32 %v483, %v499
      %v516 = vmul.f32 %v484, %v500
      %517 = vst [vmem:[#allocation2 + $0x8] sm:$0xff] %v501
      %518 = vst [vmem:[#allocation2 + $0x10] sm:$0xff] %v502
      %519 = vst [vmem:[#allocation2 + $0x28] sm:$0xff] %v503
      %520 = vst [vmem:[#allocation2 + $0x30] sm:$0xff] %v504
      %521 = vst [vmem:[#allocation2 + $0x48] sm:$0xff] %v505
      %522 = vst [vmem:[#allocation2 + $0x50] sm:$0xff] %v506
      %523 = vst [vmem:[#allocation2 + $0x68] sm:$0xff] %v507
      %524 = vst [vmem:[#allocation2 + $0x70] sm:$0xff] %v508
      %525 = vst [vmem:[#allocation2 + $0x88] sm:$0xff] %v509
      %526 = vst [vmem:[#allocation2 + $0x90] sm:$0xff] %v510
      %527 = vst [vmem:[#allocation2 + $0xa8] sm:$0xff] %v511
      %528 = vst [vmem:[#allocation2 + $0xb0] sm:$0xff] %v512
      %529 = vst [vmem:[#allocation2 + $0xc8] sm:$0xff] %v513
      %530 = vst [vmem:[#allocation2 + $0xd0] sm:$0xff] %v514
      %531 = vst [vmem:[#allocation2 + $0xe8] sm:$0xff] %v515
      %532 = vst [vmem:[#allocation2 + $0xf0] sm:$0xff] %v516
      %s533 = scalar_select %p377, 0.0, 1.0
      %v534 = vld [vmem:[%s331] sm:$0xff]
      %v535 = vld [vmem:[%s358] sm:$0xf]
      %v536 = vld [vmem:[%s358 + $0x8] sm:$0xf]
      %v539 = vcombine.low %v535, %v536
      %v541 = vmul.f32 %v534, %v539
      %v542 = vstv %s533
      %v543 = vmul.f32 %v541, %v542
      %v545 = vcombine.low %v543, %v543
      %547 = vst [vmem:[#allocation2 + $0x108] sm:$0xf0] %v545
      %548 = vst [vmem:[#allocation2 + $0x110] sm:$0xf0] %v543
      %v549 = vld [vmem:[#allocation2] sm:$0xff]
      %v550 = vld [vmem:[#allocation2 + $0x8] sm:$0xff]
      %v551 = vld [vmem:[#allocation2 + $0x10] sm:$0xff]
      %v552 = vld [vmem:[#allocation2 + $0x18] sm:$0xff]
      %v553 = vld [vmem:[#allocation2 + $0x20] sm:$0xff]
      %v554 = vld [vmem:[#allocation2 + $0x28] sm:$0xff]
      %v555 = vld [vmem:[#allocation2 + $0x30] sm:$0xff]
      %v556 = vld [vmem:[#allocation2 + $0x38] sm:$0xff]
      %v557 = vld [vmem:[#allocation2 + $0x40] sm:$0xff]
      %v558 = vld [vmem:[#allocation2 + $0x48] sm:$0xff]
      %v559 = vld [vmem:[#allocation2 + $0x50] sm:$0xff]
      %v560 = vld [vmem:[#allocation2 + $0x58] sm:$0xff]
      %v561 = vld [vmem:[#allocation2 + $0x60] sm:$0xff]
      %v562 = vld [vmem:[#allocation2 + $0x68] sm:$0xff]
      %v563 = vld [vmem:[#allocation2 + $0x70] sm:$0xff]
      %v564 = vld [vmem:[#allocation2 + $0x78] sm:$0xff]
      %v565 = vld [vmem:[#allocation2 + $0x80] sm:$0xff]
      %v566 = vld [vmem:[#allocation2 + $0x88] sm:$0xff]
      %v567 = vld [vmem:[#allocation2 + $0x90] sm:$0xff]
      %v568 = vld [vmem:[#allocation2 + $0x98] sm:$0xff]
      %v569 = vld [vmem:[#allocation2 + $0xa0] sm:$0xff]
      %v570 = vld [vmem:[#allocation2 + $0xa8] sm:$0xff]
      %v571 = vld [vmem:[#allocation2 + $0xb0] sm:$0xff]
      %v572 = vld [vmem:[#allocation2 + $0xb8] sm:$0xff]
      %v573 = vld [vmem:[#allocation2 + $0xc0] sm:$0xff]
      %v574 = vld [vmem:[#allocation2 + $0xc8] sm:$0xff]
      %v575 = vld [vmem:[#allocation2 + $0xd0] sm:$0xff]
      %v576 = vld [vmem:[#allocation2 + $0xd8] sm:$0xff]
      %v577 = vld [vmem:[#allocation2 + $0xe0] sm:$0xff]
      %v578 = vld [vmem:[#allocation2 + $0xe8] sm:$0xff]
      %v579 = vld [vmem:[#allocation2 + $0xf0] sm:$0xff]
      %v580 = vld [vmem:[#allocation2 + $0xf8] sm:$0xff]
      %v581 = vld [vmem:[#allocation2 + $0x100] sm:$0xff]
      %v582 = vld [vmem:[#allocation2 + $0x108] sm:$0xff]
      %v583 = vld [vmem:[#allocation2 + $0x110] sm:$0xff]
      %v584 = vld [vmem:[#allocation2 + $0x118] sm:$0xff]
      %v585 = vld [vmem:[%s1] ss:$2 sm:$0x3]
      %v587 = vlaneseq
      %v588 = vshrl.u32 %v587, 7
      %v589 = vsub.s32 0, %v588
      %v590 = vrot.slane %v585, %v589
      %v591 = vlaneseq
      %v592 = vshrl.u32 %v591, 7
      %v593 = vsub.s32 1, %v592
      %v594 = vrot.slane %v585, %v593
      %s595 = scalar_lea.vmem %s1, 1
      %v596 = vld [vmem:[%s595] ss:$2 sm:$0x3]
      %v598 = vlaneseq
      %v599 = vshrl.u32 %v598, 7
      %v600 = vsub.s32 0, %v599
      %v601 = vrot.slane %v596, %v600
      %v602 = vlaneseq
      %v603 = vshrl.u32 %v602, 7
      %v604 = vsub.s32 1, %v603
      %v605 = vrot.slane %v596, %v604
      %v606 = vld [vmem:[%s0] sm:$0xff]
      %v607 = vld [vmem:[%s0 + $0x8] sm:$0xff]
      %vm608 = vcmask 588800
      %v610 = vsel %vm608, %v606, 0
      %v613 = vsel %vm608, %v607, 0
      %615 = vmatprep.subr.mxu0 %v550
      %616 = vmatpush1.msra.mxu0 %v549
      %617 = vmatprep.subr.mxu0 %v554
      %618 = vmatpush1.msra.mxu0 %v553
      %619 = vmatprep.subr.mxu0 %v558
      %620 = vmatpush1.msra.mxu0 %v557
      %621 = vmatprep.subr.mxu0 %v562
      %622 = vmatpush1.msra.mxu0 %v561
      %623 = vmatprep.subr.mxu0 %v566
      %624 = vmatpush1.msra.mxu0 %v565
      %625 = vmatprep.subr.mxu0 %v570
      %626 = vmatpush1.msra.mxu0 %v569
      %627 = vmatprep.subr.mxu0 %v574
      %628 = vmatpush1.msra.mxu0 %v573
      %629 = vmatprep.subr.mxu0 %v578
      %630 = vmatpush1.msra.mxu0 %v577
      %631 = vmatprep.subr.mxu0 %v582
      %632 = vmatpush1.msra.mxu0 %v581
      %633 = vmatprep.subr.mxu0 0.0
      %634 = vmatpush1.msra.mxu0 0.0
      %635 = vmatprep.subr.mxu0 0.0
      %636 = vmatpush1.msra.mxu0 0.0
      %637 = vmatprep.subr.mxu0 0.0
      %638 = vmatpush1.msra.mxu0 0.0
      %639 = vmatprep.subr.mxu0 0.0
      %640 = vmatpush1.msra.mxu0 0.0
      %641 = vmatprep.subr.mxu0 0.0
      %642 = vmatpush1.msra.mxu0 0.0
      %643 = vmatprep.subr.mxu0 0.0
      %644 = vmatpush1.msra.mxu0 0.0
      %645 = vmatprep.subr.mxu0 0.0
      %646 = vmatpush1.msra.mxu0 0.0
      %647 = vmatprep.subr.mxu0 0.0
      %648 = vmatpush1.msra.mxu0 0.0
      %649 = vmatprep.subr.mxu0 0.0
      %650 = vmatpush1.msra.mxu0 0.0
      %651 = vmatprep.subr.mxu0 0.0
      %652 = vmatpush1.msra.mxu0 0.0
      %653 = vmatprep.subr.mxu0 0.0
      %654 = vmatpush1.msra.mxu0 0.0
      %655 = vmatprep.subr.mxu0 0.0
      %656 = vmatpush1.msra.mxu0 0.0
      %657 = vmatprep.subr.mxu0 0.0
      %658 = vmatpush1.msra.mxu0 0.0
      %659 = vmatprep.subr.mxu0 0.0
      %660 = vmatpush1.msra.mxu0 0.0
      %661 = vmatprep.subr.mxu0 0.0
      %662 = vmatpush1.msra.mxu0 0.0
      %663 = vmatprep.subr.mxu0 0.0
      %664 = vmatpush1.msra.mxu0 0.0
      %665 = vmatprep.subr.mxu0 0.0
      %666 = vmatpush1.msra.mxu0 0.0
      %667 = vmatprep.subr.mxu0 0.0
      %668 = vmatpush1.msra.mxu0 0.0
      %669 = vmatprep.subr.mxu0 0.0
      %670 = vmatpush1.msra.mxu0 0.0
      %671 = vmatprep.subr.mxu0 0.0
      %672 = vmatpush1.msra.mxu0 0.0
      %673 = vmatprep.subr.mxu0 0.0
      %674 = vmatpush1.msra.mxu0 0.0
      %675 = vmatprep.subr.mxu0 0.0
      %676 = vmatpush1.msra.mxu0 0.0
      %677 = vmatprep.subr.mxu0 0.0
      %678 = vmatpush1.msra.mxu0 0.0
      %679 = vmatprep.mubr.f32.mxu0 0.0
      %680 = vmatmul.mubr.f32.gmra.mrb[0].mxu0 %v610
      %v681 = vpop.f32.mrb[0].mxu0
      %v682 = vadd.f32 0.0, %v681
      %v683 = vpop.f32.mrb[0].mxu0
      %v684 = vadd.f32 0.0, %v683
      %685 = vmatprep.mubr.f32.mxu0 0.0
      %686 = vmatmul.mubr.f32.gmra.mrb[0].mxu0 %v613
      %v687 = vpop.f32.mrb[0].mxu0
      %v688 = vadd.f32 0.0, %v687
      %v689 = vpop.f32.mrb[0].mxu0
      %v690 = vadd.f32 0.0, %v689
      %691 = vdwg.mxu0
      %692 = vmatprep.subr.mxu0 %v552
      %693 = vmatpush1.msra.mxu0 %v551
      %694 = vmatprep.subr.mxu0 %v556
      %695 = vmatpush1.msra.mxu0 %v555
      %696 = vmatprep.subr.mxu0 %v560
      %697 = vmatpush1.msra.mxu0 %v559
      %698 = vmatprep.subr.mxu0 %v564
      %699 = vmatpush1.msra.mxu0 %v563
      %700 = vmatprep.subr.mxu0 %v568
      %701 = vmatpush1.msra.mxu0 %v567
      %702 = vmatprep.subr.mxu0 %v572
      %703 = vmatpush1.msra.mxu0 %v571
      %704 = vmatprep.subr.mxu0 %v576
      %705 = vmatpush1.msra.mxu0 %v575
      %706 = vmatprep.subr.mxu0 %v580
      %707 = vmatpush1.msra.mxu0 %v579
      %708 = vmatprep.subr.mxu0 %v584
      %709 = vmatpush1.msra.mxu0 %v583
      %710 = vmatprep.subr.mxu0 0.0
      %711 = vmatpush1.msra.mxu0 0.0
      %712 = vmatprep.subr.mxu0 0.0
      %713 = vmatpush1.msra.mxu0 0.0
      %714 = vmatprep.subr.mxu0 0.0
      %715 = vmatpush1.msra.mxu0 0.0
      %716 = vmatprep.subr.mxu0 0.0
      %717 = vmatpush1.msra.mxu0 0.0
      %718 = vmatprep.subr.mxu0 0.0
      %719 = vmatpush1.msra.mxu0 0.0
      %720 = vmatprep.subr.mxu0 0.0
      %721 = vmatpush1.msra.mxu0 0.0
      %722 = vmatprep.subr.mxu0 0.0
      %723 = vmatpush1.msra.mxu0 0.0
      %724 = vmatprep.subr.mxu0 0.0
      %725 = vmatpush1.msra.mxu0 0.0
      %726 = vmatprep.subr.mxu0 0.0
      %727 = vmatpush1.msra.mxu0 0.0
      %728 = vmatprep.subr.mxu0 0.0
      %729 = vmatpush1.msra.mxu0 0.0
      %730 = vmatprep.subr.mxu0 0.0
      %731 = vmatpush1.msra.mxu0 0.0
      %732 = vmatprep.subr.mxu0 0.0
      %733 = vmatpush1.msra.mxu0 0.0
      %734 = vmatprep.subr.mxu0 0.0
      %735 = vmatpush1.msra.mxu0 0.0
      %736 = vmatprep.subr.mxu0 0.0
      %737 = vmatpush1.msra.mxu0 0.0
      %738 = vmatprep.subr.mxu0 0.0
      %739 = vmatpush1.msra.mxu0 0.0
      %740 = vmatprep.subr.mxu0 0.0
      %741 = vmatpush1.msra.mxu0 0.0
      %742 = vmatprep.subr.mxu0 0.0
      %743 = vmatpush1.msra.mxu0 0.0
      %744 = vmatprep.subr.mxu0 0.0
      %745 = vmatpush1.msra.mxu0 0.0
      %746 = vmatprep.subr.mxu0 0.0
      %747 = vmatpush1.msra.mxu0 0.0
      %748 = vmatprep.subr.mxu0 0.0
      %749 = vmatpush1.msra.mxu0 0.0
      %750 = vmatprep.subr.mxu0 0.0
      %751 = vmatpush1.msra.mxu0 0.0
      %752 = vmatprep.subr.mxu0 0.0
      %753 = vmatpush1.msra.mxu0 0.0
      %754 = vmatprep.subr.mxu0 0.0
      %755 = vmatpush1.msra.mxu0 0.0
      %756 = vmatprep.mubr.f32.mxu0 0.0
      %757 = vmatmul.mubr.f32.gmra.mrb[0].mxu0 %v610
      %v758 = vpop.f32.mrb[0].mxu0
      %v759 = vadd.f32 0.0, %v758
      %v760 = vpop.f32.mrb[0].mxu0
      %761 = vmatprep.mubr.f32.mxu0 0.0
      %762 = vmatmul.mubr.f32.gmra.mrb[0].mxu0 %v613
      %v763 = vpop.f32.mrb[0].mxu0
      %v764 = vadd.f32 0.0, %v763
      %v765 = vpop.f32.mrb[0].mxu0
      %766 = vdwg.mxu0
      %767 = vrot.lane.b32.xlu0 %v590, 111
      %v768 = vpop.permute.xlu0 %767
      %769 = vrot.lane.b32.xlu0 %v594, 111
      %v770 = vpop.permute.xlu0 %769
      %vm771 = vcmask 908288
      %v772 = vsel %vm771, %v768, %v770
      %v776 = vmul.f32 %v682, %v768
      %v777 = vmul.f32 %v684, %v772
      %v778 = vmul.f32 %v759, %v770
      %v779 = vmul.f32 %v688, %v768
      %v780 = vmul.f32 %v690, %v772
      %v781 = vmul.f32 %v764, %v770
      %s782 = scalar_lea.vmem %s0, 16
      %v783 = vld [vmem:[%s782] sm:$0xff]
      %v784 = vld [vmem:[%s782 + $0x8] sm:$0xff]
      %v786 = vsel %vm608, %v783, 0
      %v789 = vsel %vm608, %v784, 0
      %791 = vmatprep.subr.mxu0 %v550
      %792 = vmatpush1.msra.mxu0 %v549
      %793 = vmatprep.subr.mxu0 %v554
      %794 = vmatpush1.msra.mxu0 %v553
      %795 = vmatprep.subr.mxu0 %v558
      %796 = vmatpush1.msra.mxu0 %v557
      %797 = vmatprep.subr.mxu0 %v562
      %798 = vmatpush1.msra.mxu0 %v561
      %799 = vmatprep.subr.mxu0 %v566
      %800 = vmatpush1.msra.mxu0 %v565
      %801 = vmatprep.subr.mxu0 %v570
      %802 = vmatpush1.msra.mxu0 %v569
      %803 = vmatprep.subr.mxu0 %v574
      %804 = vmatpush1.msra.mxu0 %v573
      %805 = vmatprep.subr.mxu0 %v578
      %806 = vmatpush1.msra.mxu0 %v577
      %807 = vmatprep.subr.mxu0 %v582
      %808 = vmatpush1.msra.mxu0 %v581
      %809 = vmatprep.subr.mxu0 0.0
      %810 = vmatpush1.msra.mxu0 0.0
      %811 = vmatprep.subr.mxu0 0.0
      %812 = vmatpush1.msra.mxu0 0.0
      %813 = vmatprep.subr.mxu0 0.0
      %814 = vmatpush1.msra.mxu0 0.0
      %815 = vmatprep.subr.mxu0 0.0
      %816 = vmatpush1.msra.mxu0 0.0
      %817 = vmatprep.subr.mxu0 0.0
      %818 = vmatpush1.msra.mxu0 0.0
      %819 = vmatprep.subr.mxu0 0.0
      %820 = vmatpush1.msra.mxu0 0.0
      %821 = vmatprep.subr.mxu0 0.0
      %822 = vmatpush1.msra.mxu0 0.0
      %823 = vmatprep.subr.mxu0 0.0
      %824 = vmatpush1.msra.mxu0 0.0
      %825 = vmatprep.subr.mxu0 0.0
      %826 = vmatpush1.msra.mxu0 0.0
      %827 = vmatprep.subr.mxu0 0.0
      %828 = vmatpush1.msra.mxu0 0.0
      %829 = vmatprep.subr.mxu0 0.0
      %830 = vmatpush1.msra.mxu0 0.0
      %831 = vmatprep.subr.mxu0 0.0
      %832 = vmatpush1.msra.mxu0 0.0
      %833 = vmatprep.subr.mxu0 0.0
      %834 = vmatpush1.msra.mxu0 0.0
      %835 = vmatprep.subr.mxu0 0.0
      %836 = vmatpush1.msra.mxu0 0.0
      %837 = vmatprep.subr.mxu0 0.0
      %838 = vmatpush1.msra.mxu0 0.0
      %839 = vmatprep.subr.mxu0 0.0
      %840 = vmatpush1.msra.mxu0 0.0
      %841 = vmatprep.subr.mxu0 0.0
      %842 = vmatpush1.msra.mxu0 0.0
      %843 = vmatprep.subr.mxu0 0.0
      %844 = vmatpush1.msra.mxu0 0.0
      %845 = vmatprep.subr.mxu0 0.0
      %846 = vmatpush1.msra.mxu0 0.0
      %847 = vmatprep.subr.mxu0 0.0
      %848 = vmatpush1.msra.mxu0 0.0
      %849 = vmatprep.subr.mxu0 0.0
      %850 = vmatpush1.msra.mxu0 0.0
      %851 = vmatprep.subr.mxu0 0.0
      %852 = vmatpush1.msra.mxu0 0.0
      %853 = vmatprep.subr.mxu0 0.0
      %854 = vmatpush1.msra.mxu0 0.0
      %855 = vmatprep.mubr.f32.mxu0 0.0
      %856 = vmatmul.mubr.f32.gmra.mrb[0].mxu0 %v786
      %v857 = vpop.f32.mrb[0].mxu0
      %v858 = vadd.f32 0.0, %v857
      %v859 = vpop.f32.mrb[0].mxu0
      %v860 = vadd.f32 0.0, %v859
      %861 = vmatprep.mubr.f32.mxu0 0.0
      %862 = vmatmul.mubr.f32.gmra.mrb[0].mxu0 %v789
      %v863 = vpop.f32.mrb[0].mxu0
      %v864 = vadd.f32 0.0, %v863
      %v865 = vpop.f32.mrb[0].mxu0
      %v866 = vadd.f32 0.0, %v865
      %867 = vdwg.mxu0
      %868 = vmatprep.subr.mxu0 %v552
      %869 = vmatpush1.msra.mxu0 %v551
      %870 = vmatprep.subr.mxu0 %v556
      %871 = vmatpush1.msra.mxu0 %v555
      %872 = vmatprep.subr.mxu0 %v560
      %873 = vmatpush1.msra.mxu0 %v559
      %874 = vmatprep.subr.mxu0 %v564
      %875 = vmatpush1.msra.mxu0 %v563
      %876 = vmatprep.subr.mxu0 %v568
      %877 = vmatpush1.msra.mxu0 %v567
      %878 = vmatprep.subr.mxu0 %v572
      %879 = vmatpush1.msra.mxu0 %v571
      %880 = vmatprep.subr.mxu0 %v576
      %881 = vmatpush1.msra.mxu0 %v575
      %882 = vmatprep.subr.mxu0 %v580
      %883 = vmatpush1.msra.mxu0 %v579
      %884 = vmatprep.subr.mxu0 %v584
      %885 = vmatpush1.msra.mxu0 %v583
      %886 = vmatprep.subr.mxu0 0.0
      %887 = vmatpush1.msra.mxu0 0.0
      %888 = vmatprep.subr.mxu0 0.0
      %889 = vmatpush1.msra.mxu0 0.0
      %890 = vmatprep.subr.mxu0 0.0
      %891 = vmatpush1.msra.mxu0 0.0
      %892 = vmatprep.subr.mxu0 0.0
      %893 = vmatpush1.msra.mxu0 0.0
      %894 = vmatprep.subr.mxu0 0.0
      %895 = vmatpush1.msra.mxu0 0.0
      %896 = vmatprep.subr.mxu0 0.0
      %897 = vmatpush1.msra.mxu0 0.0
      %898 = vmatprep.subr.mxu0 0.0
      %899 = vmatpush1.msra.mxu0 0.0
      %900 = vmatprep.subr.mxu0 0.0
      %901 = vmatpush1.msra.mxu0 0.0
      %902 = vmatprep.subr.mxu0 0.0
      %903 = vmatpush1.msra.mxu0 0.0
      %904 = vmatprep.subr.mxu0 0.0
      %905 = vmatpush1.msra.mxu0 0.0
      %906 = vmatprep.subr.mxu0 0.0
      %907 = vmatpush1.msra.mxu0 0.0
      %908 = vmatprep.subr.mxu0 0.0
      %909 = vmatpush1.msra.mxu0 0.0
      %910 = vmatprep.subr.mxu0 0.0
      %911 = vmatpush1.msra.mxu0 0.0
      %912 = vmatprep.subr.mxu0 0.0
      %913 = vmatpush1.msra.mxu0 0.0
      %914 = vmatprep.subr.mxu0 0.0
      %915 = vmatpush1.msra.mxu0 0.0
      %916 = vmatprep.subr.mxu0 0.0
      %917 = vmatpush1.msra.mxu0 0.0
      %918 = vmatprep.subr.mxu0 0.0
      %919 = vmatpush1.msra.mxu0 0.0
      %920 = vmatprep.subr.mxu0 0.0
      %921 = vmatpush1.msra.mxu0 0.0
      %922 = vmatprep.subr.mxu0 0.0
      %923 = vmatpush1.msra.mxu0 0.0
      %924 = vmatprep.subr.mxu0 0.0
      %925 = vmatpush1.msra.mxu0 0.0
      %926 = vmatprep.subr.mxu0 0.0
      %927 = vmatpush1.msra.mxu0 0.0
      %928 = vmatprep.subr.mxu0 0.0
      %929 = vmatpush1.msra.mxu0 0.0
      %930 = vmatprep.subr.mxu0 0.0
      %931 = vmatpush1.msra.mxu0 0.0
      %932 = vmatprep.mubr.f32.mxu0 0.0
      %933 = vmatmul.mubr.f32.gmra.mrb[0].mxu0 %v786
      %v934 = vpop.f32.mrb[0].mxu0
      %v935 = vadd.f32 0.0, %v934
      %v936 = vpop.f32.mrb[0].mxu0
      %937 = vmatprep.mubr.f32.mxu0 0.0
      %938 = vmatmul.mubr.f32.gmra.mrb[0].mxu0 %v789
      %v939 = vpop.f32.mrb[0].mxu0
      %v940 = vadd.f32 0.0, %v939
      %v941 = vpop.f32.mrb[0].mxu0
      %942 = vdwg.mxu0
      %949 = vrot.lane.b32.xlu0 %v858, 127
      %v950 = vpop.permute.xlu0 %949
      %951 = vrot.lane.b32.xlu0 %v860, 127
      %v952 = vpop.permute.xlu0 %951
      %953 = vrot.lane.b32.xlu0 %v935, 127
      %v954 = vpop.permute.xlu0 %953
      %955 = vrot.lane.b32.xlu0 %v864, 127
      %v956 = vpop.permute.xlu0 %955
      %957 = vrot.lane.b32.xlu0 %v866, 127
      %v958 = vpop.permute.xlu0 %957
      %959 = vrot.lane.b32.xlu0 %v940, 127
      %v960 = vpop.permute.xlu0 %959
      %vm961 = vcmask 1039360
      %v962 = vsel %vm961, %v950, %v952
      %v963 = vsel %vm961, %v952, %v954
      %v964 = vsel %vm961, %v956, %v958
      %v965 = vsel %vm961, %v958, %v960
      %v972 = vadd.f32 %v776, %v962
      %v973 = vadd.f32 %v777, %v963
      %v974 = vadd.f32 %v778, %v954
      %v975 = vadd.f32 %v779, %v964
      %v976 = vadd.f32 %v780, %v965
      %v977 = vadd.f32 %v781, %v960
      %s978 = scalar_lea.vmem %s0, 32
      %v979 = vld [vmem:[%s978] sm:$0xff]
      %v980 = vld [vmem:[%s978 + $0x8] sm:$0xff]
      %v982 = vsel %vm608, %v979, 0
      %v985 = vsel %vm608, %v980, 0
      %987 = vmatprep.subr.mxu0 %v550
      %988 = vmatpush1.msra.mxu0 %v549
      %989 = vmatprep.subr.mxu0 %v554
      %990 = vmatpush1.msra.mxu0 %v553
      %991 = vmatprep.subr.mxu0 %v558
      %992 = vmatpush1.msra.mxu0 %v557
      %993 = vmatprep.subr.mxu0 %v562
      %994 = vmatpush1.msra.mxu0 %v561
      %995 = vmatprep.subr.mxu0 %v566
      %996 = vmatpush1.msra.mxu0 %v565
      %997 = vmatprep.subr.mxu0 %v570
      %998 = vmatpush1.msra.mxu0 %v569
      %999 = vmatprep.subr.mxu0 %v574
      %1000 = vmatpush1.msra.mxu0 %v573
      %1001 = vmatprep.subr.mxu0 %v578
      %1002 = vmatpush1.msra.mxu0 %v577
      %1003 = vmatprep.subr.mxu0 %v582
      %1004 = vmatpush1.msra.mxu0 %v581
      %1005 = vmatprep.subr.mxu0 0.0
      %1006 = vmatpush1.msra.mxu0 0.0
      %1007 = vmatprep.subr.mxu0 0.0
      %1008 = vmatpush1.msra.mxu0 0.0
      %1009 = vmatprep.subr.mxu0 0.0
      %1010 = vmatpush1.msra.mxu0 0.0
      %1011 = vmatprep.subr.mxu0 0.0
      %1012 = vmatpush1.msra.mxu0 0.0
      %1013 = vmatprep.subr.mxu0 0.0
      %1014 = vmatpush1.msra.mxu0 0.0
      %1015 = vmatprep.subr.mxu0 0.0
      %1016 = vmatpush1.msra.mxu0 0.0
      %1017 = vmatprep.subr.mxu0 0.0
      %1018 = vmatpush1.msra.mxu0 0.0
      %1019 = vmatprep.subr.mxu0 0.0
      %1020 = vmatpush1.msra.mxu0 0.0
      %1021 = vmatprep.subr.mxu0 0.0
      %1022 = vmatpush1.msra.mxu0 0.0
      %1023 = vmatprep.subr.mxu0 0.0
      %1024 = vmatpush1.msra.mxu0 0.0
      %1025 = vmatprep.subr.mxu0 0.0
      %1026 = vmatpush1.msra.mxu0 0.0
      %1027 = vmatprep.subr.mxu0 0.0
      %1028 = vmatpush1.msra.mxu0 0.0
      %1029 = vmatprep.subr.mxu0 0.0
      %1030 = vmatpush1.msra.mxu0 0.0
      %1031 = vmatprep.subr.mxu0 0.0
      %1032 = vmatpush1.msra.mxu0 0.0
      %1033 = vmatprep.subr.mxu0 0.0
      %1034 = vmatpush1.msra.mxu0 0.0
      %1035 = vmatprep.subr.mxu0 0.0
      %1036 = vmatpush1.msra.mxu0 0.0
      %1037 = vmatprep.subr.mxu0 0.0
      %1038 = vmatpush1.msra.mxu0 0.0
      %1039 = vmatprep.subr.mxu0 0.0
      %1040 = vmatpush1.msra.mxu0 0.0
      %1041 = vmatprep.subr.mxu0 0.0
      %1042 = vmatpush1.msra.mxu0 0.0
      %1043 = vmatprep.subr.mxu0 0.0
      %1044 = vmatpush1.msra.mxu0 0.0
      %1045 = vmatprep.subr.mxu0 0.0
      %1046 = vmatpush1.msra.mxu0 0.0
      %1047 = vmatprep.subr.mxu0 0.0
      %1048 = vmatpush1.msra.mxu0 0.0
      %1049 = vmatprep.subr.mxu0 0.0
      %1050 = vmatpush1.msra.mxu0 0.0
      %1051 = vmatprep.mubr.f32.mxu0 0.0
      %1052 = vmatmul.mubr.f32.gmra.mrb[0].mxu0 %v982
      %v1053 = vpop.f32.mrb[0].mxu0
      %v1054 = vadd.f32 0.0, %v1053
      %v1055 = vpop.f32.mrb[0].mxu0
      %v1056 = vadd.f32 0.0, %v1055
      %1057 = vmatprep.mubr.f32.mxu0 0.0
      %1058 = vmatmul.mubr.f32.gmra.mrb[0].mxu0 %v985
      %v1059 = vpop.f32.mrb[0].mxu0
      %v1060 = vadd.f32 0.0, %v1059
      %v1061 = vpop.f32.mrb[0].mxu0
      %v1062 = vadd.f32 0.0, %v1061
      %1063 = vdwg.mxu0
      %1064 = vmatprep.subr.mxu0 %v552
      %1065 = vmatpush1.msra.mxu0 %v551
      %1066 = vmatprep.subr.mxu0 %v556
      %1067 = vmatpush1.msra.mxu0 %v555
      %1068 = vmatprep.subr.mxu0 %v560
      %1069 = vmatpush1.msra.mxu0 %v559
      %1070 = vmatprep.subr.mxu0 %v564
      %1071 = vmatpush1.msra.mxu0 %v563
      %1072 = vmatprep.subr.mxu0 %v568
      %1073 = vmatpush1.msra.mxu0 %v567
      %1074 = vmatprep.subr.mxu0 %v572
      %1075 = vmatpush1.msra.mxu0 %v571
      %1076 = vmatprep.subr.mxu0 %v576
      %1077 = vmatpush1.msra.mxu0 %v575
      %1078 = vmatprep.subr.mxu0 %v580
      %1079 = vmatpush1.msra.mxu0 %v579
      %1080 = vmatprep.subr.mxu0 %v584
      %1081 = vmatpush1.msra.mxu0 %v583
      %1082 = vmatprep.subr.mxu0 0.0
      %1083 = vmatpush1.msra.mxu0 0.0
      %1084 = vmatprep.subr.mxu0 0.0
      %1085 = vmatpush1.msra.mxu0 0.0
      %1086 = vmatprep.subr.mxu0 0.0
      %1087 = vmatpush1.msra.mxu0 0.0
      %1088 = vmatprep.subr.mxu0 0.0
      %1089 = vmatpush1.msra.mxu0 0.0
      %1090 = vmatprep.subr.mxu0 0.0
      %1091 = vmatpush1.msra.mxu0 0.0
      %1092 = vmatprep.subr.mxu0 0.0
      %1093 = vmatpush1.msra.mxu0 0.0
      %1094 = vmatprep.subr.mxu0 0.0
      %1095 = vmatpush1.msra.mxu0 0.0
      %1096 = vmatprep.subr.mxu0 0.0
      %1097 = vmatpush1.msra.mxu0 0.0
      %1098 = vmatprep.subr.mxu0 0.0
      %1099 = vmatpush1.msra.mxu0 0.0
      %1100 = vmatprep.subr.mxu0 0.0
      %1101 = vmatpush1.msra.mxu0 0.0
      %1102 = vmatprep.subr.mxu0 0.0
      %1103 = vmatpush1.msra.mxu0 0.0
      %1104 = vmatprep.subr.mxu0 0.0
      %1105 = vmatpush1.msra.mxu0 0.0
      %1106 = vmatprep.subr.mxu0 0.0
      %1107 = vmatpush1.msra.mxu0 0.0
      %1108 = vmatprep.subr.mxu0 0.0
      %1109 = vmatpush1.msra.mxu0 0.0
      %1110 = vmatprep.subr.mxu0 0.0
      %1111 = vmatpush1.msra.mxu0 0.0
      %1112 = vmatprep.subr.mxu0 0.0
      %1113 = vmatpush1.msra.mxu0 0.0
      %1114 = vmatprep.subr.mxu0 0.0
      %1115 = vmatpush1.msra.mxu0 0.0
      %1116 = vmatprep.subr.mxu0 0.0
      %1117 = vmatpush1.msra.mxu0 0.0
      %1118 = vmatprep.subr.mxu0 0.0
      %1119 = vmatpush1.msra.mxu0 0.0
      %1120 = vmatprep.subr.mxu0 0.0
      %1121 = vmatpush1.msra.mxu0 0.0
      %1122 = vmatprep.subr.mxu0 0.0
      %1123 = vmatpush1.msra.mxu0 0.0
      %1124 = vmatprep.subr.mxu0 0.0
      %1125 = vmatpush1.msra.mxu0 0.0
      %1126 = vmatprep.subr.mxu0 0.0
      %1127 = vmatpush1.msra.mxu0 0.0
      %1128 = vmatprep.mubr.f32.mxu0 0.0
      %1129 = vmatmul.mubr.f32.gmra.mrb[0].mxu0 %v982
      %v1130 = vpop.f32.mrb[0].mxu0
      %v1131 = vadd.f32 0.0, %v1130
      %v1132 = vpop.f32.mrb[0].mxu0
      %1133 = vmatprep.mubr.f32.mxu0 0.0
      %1134 = vmatmul.mubr.f32.gmra.mrb[0].mxu0 %v985
      %v1135 = vpop.f32.mrb[0].mxu0
      %v1136 = vadd.f32 0.0, %v1135
      %v1137 = vpop.f32.mrb[0].mxu0
      %1138 = vdwg.mxu0
      %1139 = vrot.lane.b32.xlu0 %v601, 113
      %v1140 = vpop.permute.xlu0 %1139
      %1141 = vrot.lane.b32.xlu0 %v605, 113
      %v1142 = vpop.permute.xlu0 %1141
      %vm1143 = vcmask 924672
      %v1144 = vsel %vm1143, %v1140, %v1142
      %v1148 = vmul.f32 %v1054, %v1140
      %v1149 = vmul.f32 %v1056, %v1144
      %v1150 = vmul.f32 %v1131, %v1142
      %v1151 = vmul.f32 %v1060, %v1140
      %v1152 = vmul.f32 %v1062, %v1144
      %v1153 = vmul.f32 %v1136, %v1142
      %1160 = vrot.lane.b32.xlu0 %v1148, 126
      %v1161 = vpop.permute.xlu0 %1160
      %1162 = vrot.lane.b32.xlu0 %v1149, 126
      %v1163 = vpop.permute.xlu0 %1162
      %1164 = vrot.lane.b32.xlu0 %v1150, 126
      %v1165 = vpop.permute.xlu0 %1164
      %1166 = vrot.lane.b32.xlu0 %v1151, 126
      %v1167 = vpop.permute.xlu0 %1166
      %1168 = vrot.lane.b32.xlu0 %v1152, 126
      %v1169 = vpop.permute.xlu0 %1168
      %1170 = vrot.lane.b32.xlu0 %v1153, 126
      %v1171 = vpop.permute.xlu0 %1170
      %vm1172 = vcmask 1031168
      %v1173 = vsel %vm1172, %v1161, %v1163
      %v1174 = vsel %vm1172, %v1163, %v1165
      %v1175 = vsel %vm1172, %v1167, %v1169
      %v1176 = vsel %vm1172, %v1169, %v1171
      %v1183 = vadd.f32 %v972, %v1173
      %v1184 = vadd.f32 %v973, %v1174
      %v1185 = vadd.f32 %v974, %v1165
      %v1186 = vadd.f32 %v975, %v1175
      %v1187 = vadd.f32 %v976, %v1176
      %v1188 = vadd.f32 %v977, %v1171
      %s1189 = scalar_lea.vmem %s0, 48
      %v1190 = vld [vmem:[%s1189] sm:$0xff]
      %v1191 = vld [vmem:[%s1189 + $0x8] sm:$0xff]
      %v1193 = vsel %vm608, %v1190, 0
      %v1196 = vsel %vm608, %v1191, 0
      %1198 = vmatprep.subr.mxu0 %v550
      %1199 = vmatpush1.msra.mxu0 %v549
      %1200 = vmatprep.subr.mxu0 %v554
      %1201 = vmatpush1.msra.mxu0 %v553
      %1202 = vmatprep.subr.mxu0 %v558
      %1203 = vmatpush1.msra.mxu0 %v557
      %1204 = vmatprep.subr.mxu0 %v562
      %1205 = vmatpush1.msra.mxu0 %v561
      %1206 = vmatprep.subr.mxu0 %v566
      %1207 = vmatpush1.msra.mxu0 %v565
      %1208 = vmatprep.subr.mxu0 %v570
      %1209 = vmatpush1.msra.mxu0 %v569
      %1210 = vmatprep.subr.mxu0 %v574
      %1211 = vmatpush1.msra.mxu0 %v573
      %1212 = vmatprep.subr.mxu0 %v578
      %1213 = vmatpush1.msra.mxu0 %v577
      %1214 = vmatprep.subr.mxu0 %v582
      %1215 = vmatpush1.msra.mxu0 %v581
      %1216 = vmatprep.subr.mxu0 0.0
      %1217 = vmatpush1.msra.mxu0 0.0
      %1218 = vmatprep.subr.mxu0 0.0
      %1219 = vmatpush1.msra.mxu0 0.0
      %1220 = vmatprep.subr.mxu0 0.0
      %1221 = vmatpush1.msra.mxu0 0.0
      %1222 = vmatprep.subr.mxu0 0.0
      %1223 = vmatpush1.msra.mxu0 0.0
      %1224 = vmatprep.subr.mxu0 0.0
      %1225 = vmatpush1.msra.mxu0 0.0
      %1226 = vmatprep.subr.mxu0 0.0
      %1227 = vmatpush1.msra.mxu0 0.0
      %1228 = vmatprep.subr.mxu0 0.0
      %1229 = vmatpush1.msra.mxu0 0.0
      %1230 = vmatprep.subr.mxu0 0.0
      %1231 = vmatpush1.msra.mxu0 0.0
      %1232 = vmatprep.subr.mxu0 0.0
      %1233 = vmatpush1.msra.mxu0 0.0
      %1234 = vmatprep.subr.mxu0 0.0
      %1235 = vmatpush1.msra.mxu0 0.0
      %1236 = vmatprep.subr.mxu0 0.0
      %1237 = vmatpush1.msra.mxu0 0.0
      %1238 = vmatprep.subr.mxu0 0.0
      %1239 = vmatpush1.msra.mxu0 0.0
      %1240 = vmatprep.subr.mxu0 0.0
      %1241 = vmatpush1.msra.mxu0 0.0
      %1242 = vmatprep.subr.mxu0 0.0
      %1243 = vmatpush1.msra.mxu0 0.0
      %1244 = vmatprep.subr.mxu0 0.0
      %1245 = vmatpush1.msra.mxu0 0.0
      %1246 = vmatprep.subr.mxu0 0.0
      %1247 = vmatpush1.msra.mxu0 0.0
      %1248 = vmatprep.subr.mxu0 0.0
      %1249 = vmatpush1.msra.mxu0 0.0
      %1250 = vmatprep.subr.mxu0 0.0
      %1251 = vmatpush1.msra.mxu0 0.0
      %1252 = vmatprep.subr.mxu0 0.0
      %1253 = vmatpush1.msra.mxu0 0.0
      %1254 = vmatprep.subr.mxu0 0.0
      %1255 = vmatpush1.msra.mxu0 0.0
      %1256 = vmatprep.subr.mxu0 0.0
      %1257 = vmatpush1.msra.mxu0 0.0
      %1258 = vmatprep.subr.mxu0 0.0
      %1259 = vmatpush1.msra.mxu0 0.0
      %1260 = vmatprep.subr.mxu0 0.0
      %1261 = vmatpush1.msra.mxu0 0.0
      %1262 = vmatprep.mubr.f32.mxu0 0.0
      %1263 = vmatmul.mubr.f32.gmra.mrb[0].mxu0 %v1193
      %v1264 = vpop.f32.mrb[0].mxu0
      %v1265 = vadd.f32 0.0, %v1264
      %v1266 = vpop.f32.mrb[0].mxu0
      %v1267 = vadd.f32 0.0, %v1266
      %1268 = vmatprep.mubr.f32.mxu0 0.0
      %1269 = vmatmul.mubr.f32.gmra.mrb[0].mxu0 %v1196
      %v1270 = vpop.f32.mrb[0].mxu0
      %v1271 = vadd.f32 0.0, %v1270
      %v1272 = vpop.f32.mrb[0].mxu0
      %v1273 = vadd.f32 0.0, %v1272
      %1274 = vdwg.mxu0
      %1275 = vmatprep.subr.mxu0 %v552
      %1276 = vmatpush1.msra.mxu0 %v551
      %1277 = vmatprep.subr.mxu0 %v556
      %1278 = vmatpush1.msra.mxu0 %v555
      %1279 = vmatprep.subr.mxu0 %v560
      %1280 = vmatpush1.msra.mxu0 %v559
      %1281 = vmatprep.subr.mxu0 %v564
      %1282 = vmatpush1.msra.mxu0 %v563
      %1283 = vmatprep.subr.mxu0 %v568
      %1284 = vmatpush1.msra.mxu0 %v567
      %1285 = vmatprep.subr.mxu0 %v572
      %1286 = vmatpush1.msra.mxu0 %v571
      %1287 = vmatprep.subr.mxu0 %v576
      %1288 = vmatpush1.msra.mxu0 %v575
      %1289 = vmatprep.subr.mxu0 %v580
      %1290 = vmatpush1.msra.mxu0 %v579
      %1291 = vmatprep.subr.mxu0 %v584
      %1292 = vmatpush1.msra.mxu0 %v583
      %1293 = vmatprep.subr.mxu0 0.0
      %1294 = vmatpush1.msra.mxu0 0.0
      %1295 = vmatprep.subr.mxu0 0.0
      %1296 = vmatpush1.msra.mxu0 0.0
      %1297 = vmatprep.subr.mxu0 0.0
      %1298 = vmatpush1.msra.mxu0 0.0
      %1299 = vmatprep.subr.mxu0 0.0
      %1300 = vmatpush1.msra.mxu0 0.0
      %1301 = vmatprep.subr.mxu0 0.0
      %1302 = vmatpush1.msra.mxu0 0.0
      %1303 = vmatprep.subr.mxu0 0.0
      %1304 = vmatpush1.msra.mxu0 0.0
      %1305 = vmatprep.subr.mxu0 0.0
      %1306 = vmatpush1.msra.mxu0 0.0
      %1307 = vmatprep.subr.mxu0 0.0
      %1308 = vmatpush1.msra.mxu0 0.0
      %1309 = vmatprep.subr.mxu0 0.0
      %1310 = vmatpush1.msra.mxu0 0.0
      %1311 = vmatprep.subr.mxu0 0.0
      %1312 = vmatpush1.msra.mxu0 0.0
      %1313 = vmatprep.subr.mxu0 0.0
      %1314 = vmatpush1.msra.mxu0 0.0
      %1315 = vmatprep.subr.mxu0 0.0
      %1316 = vmatpush1.msra.mxu0 0.0
      %1317 = vmatprep.subr.mxu0 0.0
      %1318 = vmatpush1.msra.mxu0 0.0
      %1319 = vmatprep.subr.mxu0 0.0
      %1320 = vmatpush1.msra.mxu0 0.0
      %1321 = vmatprep.subr.mxu0 0.0
      %1322 = vmatpush1.msra.mxu0 0.0
      %1323 = vmatprep.subr.mxu0 0.0
      %1324 = vmatpush1.msra.mxu0 0.0
      %1325 = vmatprep.subr.mxu0 0.0
      %1326 = vmatpush1.msra.mxu0 0.0
      %1327 = vmatprep.subr.mxu0 0.0
      %1328 = vmatpush1.msra.mxu0 0.0
      %1329 = vmatprep.subr.mxu0 0.0
      %1330 = vmatpush1.msra.mxu0 0.0
      %1331 = vmatprep.subr.mxu0 0.0
      %1332 = vmatpush1.msra.mxu0 0.0
      %1333 = vmatprep.subr.mxu0 0.0
      %1334 = vmatpush1.msra.mxu0 0.0
      %1335 = vmatprep.subr.mxu0 0.0
      %1336 = vmatpush1.msra.mxu0 0.0
      %1337 = vmatprep.subr.mxu0 0.0
      %1338 = vmatpush1.msra.mxu0 0.0
      %1339 = vmatprep.mubr.f32.mxu0 0.0
      %1340 = vmatmul.mubr.f32.gmra.mrb[0].mxu0 %v1193
      %v1341 = vpop.f32.mrb[0].mxu0
      %v1342 = vadd.f32 0.0, %v1341
      %v1343 = vpop.f32.mrb[0].mxu0
      %1344 = vmatprep.mubr.f32.mxu0 0.0
      %1345 = vmatmul.mubr.f32.gmra.mrb[0].mxu0 %v1196
      %v1346 = vpop.f32.mrb[0].mxu0
      %v1347 = vadd.f32 0.0, %v1346
      %v1348 = vpop.f32.mrb[0].mxu0
      %1349 = vdwg.mxu0
      %1350 = vrot.lane.b32.xlu0 %v590, 127
      %v1351 = vpop.permute.xlu0 %1350
      %1352 = vrot.lane.b32.xlu0 %v594, 127
      %v1353 = vpop.permute.xlu0 %1352
      %v1354 = vsel %vm961, %v1351, %v1353
      %v1358 = vmul.f32 %v1265, %v1351
      %v1359 = vmul.f32 %v1267, %v1354
      %v1360 = vmul.f32 %v1342, %v1353
      %v1361 = vmul.f32 %v1271, %v1351
      %v1362 = vmul.f32 %v1273, %v1354
      %v1363 = vmul.f32 %v1347, %v1353
      %1370 = vrot.lane.b32.xlu0 %v1358, 112
      %v1371 = vpop.permute.xlu0 %1370
      %1372 = vrot.lane.b32.xlu0 %v1359, 112
      %v1373 = vpop.permute.xlu0 %1372
      %1374 = vrot.lane.b32.xlu0 %v1360, 112
      %v1375 = vpop.permute.xlu0 %1374
      %1376 = vrot.lane.b32.xlu0 %v1361, 112
      %v1377 = vpop.permute.xlu0 %1376
      %1378 = vrot.lane.b32.xlu0 %v1362, 112
      %v1379 = vpop.permute.xlu0 %1378
      %1380 = vrot.lane.b32.xlu0 %v1363, 112
      %v1381 = vpop.permute.xlu0 %1380
      %vm1382 = vcmask 916480
      %v1383 = vsel %vm1382, %v1371, %v1373
      %v1384 = vsel %vm1382, %v1373, %v1375
      %v1385 = vsel %vm1382, %v1377, %v1379
      %v1386 = vsel %vm1382, %v1379, %v1381
      %v1393 = vadd.f32 %v1183, %v1383
      %v1394 = vadd.f32 %v1184, %v1384
      %v1395 = vadd.f32 %v1185, %v1375
      %v1396 = vadd.f32 %v1186, %v1385
      %v1397 = vadd.f32 %v1187, %v1386
      %v1398 = vadd.f32 %v1188, %v1381
      %s1399 = scalar_lea.vmem %s0, 64
      %v1400 = vld [vmem:[%s1399] sm:$0xff]
      %v1401 = vld [vmem:[%s1399 + $0x8] sm:$0xff]
      %v1403 = vsel %vm608, %v1400, 0
      %v1406 = vsel %vm608, %v1401, 0
      %1408 = vmatprep.subr.mxu0 %v550
      %1409 = vmatpush1.msra.mxu0 %v549
      %1410 = vmatprep.subr.mxu0 %v554
      %1411 = vmatpush1.msra.mxu0 %v553
      %1412 = vmatprep.subr.mxu0 %v558
      %1413 = vmatpush1.msra.mxu0 %v557
      %1414 = vmatprep.subr.mxu0 %v562
      %1415 = vmatpush1.msra.mxu0 %v561
      %1416 = vmatprep.subr.mxu0 %v566
      %1417 = vmatpush1.msra.mxu0 %v565
      %1418 = vmatprep.subr.mxu0 %v570
      %1419 = vmatpush1.msra.mxu0 %v569
      %1420 = vmatprep.subr.mxu0 %v574
      %1421 = vmatpush1.msra.mxu0 %v573
      %1422 = vmatprep.subr.mxu0 %v578
      %1423 = vmatpush1.msra.mxu0 %v577
      %1424 = vmatprep.subr.mxu0 %v582
      %1425 = vmatpush1.msra.mxu0 %v581
      %1426 = vmatprep.subr.mxu0 0.0
      %1427 = vmatpush1.msra.mxu0 0.0
      %1428 = vmatprep.subr.mxu0 0.0
      %1429 = vmatpush1.msra.mxu0 0.0
      %1430 = vmatprep.subr.mxu0 0.0
      %1431 = vmatpush1.msra.mxu0 0.0
      %1432 = vmatprep.subr.mxu0 0.0
      %1433 = vmatpush1.msra.mxu0 0.0
      %1434 = vmatprep.subr.mxu0 0.0
      %1435 = vmatpush1.msra.mxu0 0.0
      %1436 = vmatprep.subr.mxu0 0.0
      %1437 = vmatpush1.msra.mxu0 0.0
      %1438 = vmatprep.subr.mxu0 0.0
      %1439 = vmatpush1.msra.mxu0 0.0
      %1440 = vmatprep.subr.mxu0 0.0
      %1441 = vmatpush1.msra.mxu0 0.0
      %1442 = vmatprep.subr.mxu0 0.0
      %1443 = vmatpush1.msra.mxu0 0.0
      %1444 = vmatprep.subr.mxu0 0.0
      %1445 = vmatpush1.msra.mxu0 0.0
      %1446 = vmatprep.subr.mxu0 0.0
      %1447 = vmatpush1.msra.mxu0 0.0
      %1448 = vmatprep.subr.mxu0 0.0
      %1449 = vmatpush1.msra.mxu0 0.0
      %1450 = vmatprep.subr.mxu0 0.0
      %1451 = vmatpush1.msra.mxu0 0.0
      %1452 = vmatprep.subr.mxu0 0.0
      %1453 = vmatpush1.msra.mxu0 0.0
      %1454 = vmatprep.subr.mxu0 0.0
      %1455 = vmatpush1.msra.mxu0 0.0
      %1456 = vmatprep.subr.mxu0 0.0
      %1457 = vmatpush1.msra.mxu0 0.0
      %1458 = vmatprep.subr.mxu0 0.0
      %1459 = vmatpush1.msra.mxu0 0.0
      %1460 = vmatprep.subr.mxu0 0.0
      %1461 = vmatpush1.msra.mxu0 0.0
      %1462 = vmatprep.subr.mxu0 0.0
      %1463 = vmatpush1.msra.mxu0 0.0
      %1464 = vmatprep.subr.mxu0 0.0
      %1465 = vmatpush1.msra.mxu0 0.0
      %1466 = vmatprep.subr.mxu0 0.0
      %1467 = vmatpush1.msra.mxu0 0.0
      %1468 = vmatprep.subr.mxu0 0.0
      %1469 = vmatpush1.msra.mxu0 0.0
      %1470 = vmatprep.subr.mxu0 0.0
      %1471 = vmatpush1.msra.mxu0 0.0
      %1472 = vmatprep.mubr.f32.mxu0 0.0
      %1473 = vmatmul.mubr.f32.gmra.mrb[0].mxu0 %v1403
      %v1474 = vpop.f32.mrb[0].mxu0
      %v1475 = vpop.f32.mrb[0].mxu0
      %v1476 = vadd.f32 0.0, %v1475
      %1477 = vmatprep.mubr.f32.mxu0 0.0
      %1478 = vmatmul.mubr.f32.gmra.mrb[0].mxu0 %v1406
      %v1479 = vpop.f32.mrb[0].mxu0
      %v1480 = vpop.f32.mrb[0].mxu0
      %v1481 = vadd.f32 0.0, %v1480
      %1482 = vdwg.mxu0
      %1483 = vmatprep.subr.mxu0 %v552
      %1484 = vmatpush1.msra.mxu0 %v551
      %1485 = vmatprep.subr.mxu0 %v556
      %1486 = vmatpush1.msra.mxu0 %v555
      %1487 = vmatprep.subr.mxu0 %v560
      %1488 = vmatpush1.msra.mxu0 %v559
      %1489 = vmatprep.subr.mxu0 %v564
      %1490 = vmatpush1.msra.mxu0 %v563
      %1491 = vmatprep.subr.mxu0 %v568
      %1492 = vmatpush1.msra.mxu0 %v567
      %1493 = vmatprep.subr.mxu0 %v572
      %1494 = vmatpush1.msra.mxu0 %v571
      %1495 = vmatprep.subr.mxu0 %v576
      %1496 = vmatpush1.msra.mxu0 %v575
      %1497 = vmatprep.subr.mxu0 %v580
      %1498 = vmatpush1.msra.mxu0 %v579
      %1499 = vmatprep.subr.mxu0 %v584
      %1500 = vmatpush1.msra.mxu0 %v583
      %1501 = vmatprep.subr.mxu0 0.0
      %1502 = vmatpush1.msra.mxu0 0.0
      %1503 = vmatprep.subr.mxu0 0.0
      %1504 = vmatpush1.msra.mxu0 0.0
      %1505 = vmatprep.subr.mxu0 0.0
      %1506 = vmatpush1.msra.mxu0 0.0
      %1507 = vmatprep.subr.mxu0 0.0
      %1508 = vmatpush1.msra.mxu0 0.0
      %1509 = vmatprep.subr.mxu0 0.0
      %1510 = vmatpush1.msra.mxu0 0.0
      %1511 = vmatprep.subr.mxu0 0.0
      %1512 = vmatpush1.msra.mxu0 0.0
      %1513 = vmatprep.subr.mxu0 0.0
      %1514 = vmatpush1.msra.mxu0 0.0
      %1515 = vmatprep.subr.mxu0 0.0
      %1516 = vmatpush1.msra.mxu0 0.0
      %1517 = vmatprep.subr.mxu0 0.0
      %1518 = vmatpush1.msra.mxu0 0.0
      %1519 = vmatprep.subr.mxu0 0.0
      %1520 = vmatpush1.msra.mxu0 0.0
      %1521 = vmatprep.subr.mxu0 0.0
      %1522 = vmatpush1.msra.mxu0 0.0
      %1523 = vmatprep.subr.mxu0 0.0
      %1524 = vmatpush1.msra.mxu0 0.0
      %1525 = vmatprep.subr.mxu0 0.0
      %1526 = vmatpush1.msra.mxu0 0.0
      %1527 = vmatprep.subr.mxu0 0.0
      %1528 = vmatpush1.msra.mxu0 0.0
      %1529 = vmatprep.subr.mxu0 0.0
      %1530 = vmatpush1.msra.mxu0 0.0
      %1531 = vmatprep.subr.mxu0 0.0
      %1532 = vmatpush1.msra.mxu0 0.0
      %1533 = vmatprep.subr.mxu0 0.0
      %1534 = vmatpush1.msra.mxu0 0.0
      %1535 = vmatprep.subr.mxu0 0.0
      %1536 = vmatpush1.msra.mxu0 0.0
      %1537 = vmatprep.subr.mxu0 0.0
      %1538 = vmatpush1.msra.mxu0 0.0
      %1539 = vmatprep.subr.mxu0 0.0
      %1540 = vmatpush1.msra.mxu0 0.0
      %1541 = vmatprep.subr.mxu0 0.0
      %1542 = vmatpush1.msra.mxu0 0.0
      %1543 = vmatprep.subr.mxu0 0.0
      %1544 = vmatpush1.msra.mxu0 0.0
      %1545 = vmatprep.subr.mxu0 0.0
      %1546 = vmatpush1.msra.mxu0 0.0
      %1547 = vmatprep.mubr.f32.mxu0 0.0
      %1548 = vmatmul.mubr.f32.gmra.mrb[0].mxu0 %v1403
      %v1549 = vpop.f32.mrb[0].mxu0
      %v1550 = vadd.f32 0.0, %v1549
      %v1551 = vpop.f32.mrb[0].mxu0
      %1552 = vmatprep.mubr.f32.mxu0 0.0
      %1553 = vmatmul.mubr.f32.gmra.mrb[0].mxu0 %v1406
      %v1554 = vpop.f32.mrb[0].mxu0
      %v1555 = vadd.f32 0.0, %v1554
      %v1556 = vpop.f32.mrb[0].mxu0
      %1557 = vdwg.mxu0
      %1562 = vrot.lane.b32.xlu0 %v1476, 111
      %v1563 = vpop.permute.xlu0 %1562
      %1564 = vrot.lane.b32.xlu0 %v1550, 111
      %v1565 = vpop.permute.xlu0 %1564
      %1566 = vrot.lane.b32.xlu0 %v1481, 111
      %v1567 = vpop.permute.xlu0 %1566
      %1568 = vrot.lane.b32.xlu0 %v1555, 111
      %v1569 = vpop.permute.xlu0 %1568
      %v1570 = vsel %vm771, %v1563, %v1565
      %v1571 = vsel %vm771, %v1567, %v1569
      %v1578 = vadd.f32 %v1393, %v1563
      %v1579 = vadd.f32 %v1394, %v1570
      %v1580 = vadd.f32 %v1395, %v1565
      %v1581 = vadd.f32 %v1396, %v1567
      %v1582 = vadd.f32 %v1397, %v1571
      %v1583 = vadd.f32 %v1398, %v1569
      %s1584 = scalar_lea.vmem %s0, 80
      %v1585 = vld [vmem:[%s1584] sm:$0xff]
      %v1586 = vld [vmem:[%s1584 + $0x8] sm:$0xff]
      %v1588 = vsel %vm608, %v1585, 0
      %v1591 = vsel %vm608, %v1586, 0
      %1593 = vmatprep.subr.mxu0 %v550
      %1594 = vmatpush1.msra.mxu0 %v549
      %1595 = vmatprep.subr.mxu0 %v554
      %1596 = vmatpush1.msra.mxu0 %v553
      %1597 = vmatprep.subr.mxu0 %v558
      %1598 = vmatpush1.msra.mxu0 %v557
      %1599 = vmatprep.subr.mxu0 %v562
      %1600 = vmatpush1.msra.mxu0 %v561
      %1601 = vmatprep.subr.mxu0 %v566
      %1602 = vmatpush1.msra.mxu0 %v565
      %1603 = vmatprep.subr.mxu0 %v570
      %1604 = vmatpush1.msra.mxu0 %v569
      %1605 = vmatprep.subr.mxu0 %v574
      %1606 = vmatpush1.msra.mxu0 %v573
      %1607 = vmatprep.subr.mxu0 %v578
      %1608 = vmatpush1.msra.mxu0 %v577
      %1609 = vmatprep.subr.mxu0 %v582
      %1610 = vmatpush1.msra.mxu0 %v581
      %1611 = vmatprep.subr.mxu0 0.0
      %1612 = vmatpush1.msra.mxu0 0.0
      %1613 = vmatprep.subr.mxu0 0.0
      %1614 = vmatpush1.msra.mxu0 0.0
      %1615 = vmatprep.subr.mxu0 0.0
      %1616 = vmatpush1.msra.mxu0 0.0
      %1617 = vmatprep.subr.mxu0 0.0
      %1618 = vmatpush1.msra.mxu0 0.0
      %1619 = vmatprep.subr.mxu0 0.0
      %1620 = vmatpush1.msra.mxu0 0.0
      %1621 = vmatprep.subr.mxu0 0.0
      %1622 = vmatpush1.msra.mxu0 0.0
      %1623 = vmatprep.subr.mxu0 0.0
      %1624 = vmatpush1.msra.mxu0 0.0
      %1625 = vmatprep.subr.mxu0 0.0
      %1626 = vmatpush1.msra.mxu0 0.0
      %1627 = vmatprep.subr.mxu0 0.0
      %1628 = vmatpush1.msra.mxu0 0.0
      %1629 = vmatprep.subr.mxu0 0.0
      %1630 = vmatpush1.msra.mxu0 0.0
      %1631 = vmatprep.subr.mxu0 0.0
      %1632 = vmatpush1.msra.mxu0 0.0
      %1633 = vmatprep.subr.mxu0 0.0
      %1634 = vmatpush1.msra.mxu0 0.0
      %1635 = vmatprep.subr.mxu0 0.0
      %1636 = vmatpush1.msra.mxu0 0.0
      %1637 = vmatprep.subr.mxu0 0.0
      %1638 = vmatpush1.msra.mxu0 0.0
      %1639 = vmatprep.subr.mxu0 0.0
      %1640 = vmatpush1.msra.mxu0 0.0
      %1641 = vmatprep.subr.mxu0 0.0
      %1642 = vmatpush1.msra.mxu0 0.0
      %1643 = vmatprep.subr.mxu0 0.0
      %1644 = vmatpush1.msra.mxu0 0.0
      %1645 = vmatprep.subr.mxu0 0.0
      %1646 = vmatpush1.msra.mxu0 0.0
      %1647 = vmatprep.subr.mxu0 0.0
      %1648 = vmatpush1.msra.mxu0 0.0
      %1649 = vmatprep.subr.mxu0 0.0
      %1650 = vmatpush1.msra.mxu0 0.0
      %1651 = vmatprep.subr.mxu0 0.0
      %1652 = vmatpush1.msra.mxu0 0.0
      %1653 = vmatprep.subr.mxu0 0.0
      %1654 = vmatpush1.msra.mxu0 0.0
      %1655 = vmatprep.subr.mxu0 0.0
      %1656 = vmatpush1.msra.mxu0 0.0
      %1657 = vmatprep.mubr.f32.mxu0 0.0
      %1658 = vmatmul.mubr.f32.gmra.mrb[0].mxu0 %v1588
      %v1659 = vpop.f32.mrb[0].mxu0
      %v1660 = vpop.f32.mrb[0].mxu0
      %v1661 = vadd.f32 0.0, %v1660
      %1662 = vmatprep.mubr.f32.mxu0 0.0
      %1663 = vmatmul.mubr.f32.gmra.mrb[0].mxu0 %v1591
      %v1664 = vpop.f32.mrb[0].mxu0
      %v1665 = vpop.f32.mrb[0].mxu0
      %v1666 = vadd.f32 0.0, %v1665
      %1667 = vdwg.mxu0
      %1668 = vmatprep.subr.mxu0 %v552
      %1669 = vmatpush1.msra.mxu0 %v551
      %1670 = vmatprep.subr.mxu0 %v556
      %1671 = vmatpush1.msra.mxu0 %v555
      %1672 = vmatprep.subr.mxu0 %v560
      %1673 = vmatpush1.msra.mxu0 %v559
      %1674 = vmatprep.subr.mxu0 %v564
      %1675 = vmatpush1.msra.mxu0 %v563
      %1676 = vmatprep.subr.mxu0 %v568
      %1677 = vmatpush1.msra.mxu0 %v567
      %1678 = vmatprep.subr.mxu0 %v572
      %1679 = vmatpush1.msra.mxu0 %v571
      %1680 = vmatprep.subr.mxu0 %v576
      %1681 = vmatpush1.msra.mxu0 %v575
      %1682 = vmatprep.subr.mxu0 %v580
      %1683 = vmatpush1.msra.mxu0 %v579
      %1684 = vmatprep.subr.mxu0 %v584
      %1685 = vmatpush1.msra.mxu0 %v583
      %1686 = vmatprep.subr.mxu0 0.0
      %1687 = vmatpush1.msra.mxu0 0.0
      %1688 = vmatprep.subr.mxu0 0.0
      %1689 = vmatpush1.msra.mxu0 0.0
      %1690 = vmatprep.subr.mxu0 0.0
      %1691 = vmatpush1.msra.mxu0 0.0
      %1692 = vmatprep.subr.mxu0 0.0
      %1693 = vmatpush1.msra.mxu0 0.0
      %1694 = vmatprep.subr.mxu0 0.0
      %1695 = vmatpush1.msra.mxu0 0.0
      %1696 = vmatprep.subr.mxu0 0.0
      %1697 = vmatpush1.msra.mxu0 0.0
      %1698 = vmatprep.subr.mxu0 0.0
      %1699 = vmatpush1.msra.mxu0 0.0
      %1700 = vmatprep.subr.mxu0 0.0
      %1701 = vmatpush1.msra.mxu0 0.0
      %1702 = vmatprep.subr.mxu0 0.0
      %1703 = vmatpush1.msra.mxu0 0.0
      %1704 = vmatprep.subr.mxu0 0.0
      %1705 = vmatpush1.msra.mxu0 0.0
      %1706 = vmatprep.subr.mxu0 0.0
      %1707 = vmatpush1.msra.mxu0 0.0
      %1708 = vmatprep.subr.mxu0 0.0
      %1709 = vmatpush1.msra.mxu0 0.0
      %1710 = vmatprep.subr.mxu0 0.0
      %1711 = vmatpush1.msra.mxu0 0.0
      %1712 = vmatprep.subr.mxu0 0.0
      %1713 = vmatpush1.msra.mxu0 0.0
      %1714 = vmatprep.subr.mxu0 0.0
      %1715 = vmatpush1.msra.mxu0 0.0
      %1716 = vmatprep.subr.mxu0 0.0
      %1717 = vmatpush1.msra.mxu0 0.0
      %1718 = vmatprep.subr.mxu0 0.0
      %1719 = vmatpush1.msra.mxu0 0.0
      %1720 = vmatprep.subr.mxu0 0.0
      %1721 = vmatpush1.msra.mxu0 0.0
      %1722 = vmatprep.subr.mxu0 0.0
      %1723 = vmatpush1.msra.mxu0 0.0
      %1724 = vmatprep.subr.mxu0 0.0
      %1725 = vmatpush1.msra.mxu0 0.0
      %1726 = vmatprep.subr.mxu0 0.0
      %1727 = vmatpush1.msra.mxu0 0.0
      %1728 = vmatprep.subr.mxu0 0.0
      %1729 = vmatpush1.msra.mxu0 0.0
      %1730 = vmatprep.subr.mxu0 0.0
      %1731 = vmatpush1.msra.mxu0 0.0
      %1732 = vmatprep.mubr.f32.mxu0 0.0
      %1733 = vmatmul.mubr.f32.gmra.mrb[0].mxu0 %v1588
      %v1734 = vpop.f32.mrb[0].mxu0
      %v1735 = vadd.f32 0.0, %v1734
      %v1736 = vpop.f32.mrb[0].mxu0
      %v1737 = vadd.f32 0.0, %v1736
      %1738 = vmatprep.mubr.f32.mxu0 0.0
      %1739 = vmatmul.mubr.f32.gmra.mrb[0].mxu0 %v1591
      %v1740 = vpop.f32.mrb[0].mxu0
      %v1741 = vadd.f32 0.0, %v1740
      %v1742 = vpop.f32.mrb[0].mxu0
      %v1743 = vadd.f32 0.0, %v1742
      %1744 = vdwg.mxu0
      %1745 = vrot.lane.b32.xlu0 %v601, 1
      %v1746 = vpop.permute.xlu0 %1745
      %1747 = vrot.lane.b32.xlu0 %v605, 1
      %v1748 = vpop.permute.xlu0 %1747
      %vm1749 = vcmask 7168
      %v1750 = vsel %vm1749, %v1746, %v1748
      %v1754 = vmul.f32 %v1661, %v1746
      %v1755 = vmul.f32 %v1735, %v1750
      %v1756 = vmul.f32 %v1737, %v1748
      %v1757 = vmul.f32 %v1666, %v1746
      %v1758 = vmul.f32 %v1741, %v1750
      %v1759 = vmul.f32 %v1743, %v1748
      %1766 = vrot.lane.b32.xlu0 %v1754, 110
      %v1767 = vpop.permute.xlu0 %1766
      %1768 = vrot.lane.b32.xlu0 %v1755, 110
      %v1769 = vpop.permute.xlu0 %1768
      %1770 = vrot.lane.b32.xlu0 %v1756, 110
      %v1771 = vpop.permute.xlu0 %1770
      %1772 = vrot.lane.b32.xlu0 %v1757, 110
      %v1773 = vpop.permute.xlu0 %1772
      %1774 = vrot.lane.b32.xlu0 %v1758, 110
      %v1775 = vpop.permute.xlu0 %1774
      %1776 = vrot.lane.b32.xlu0 %v1759, 110
      %v1777 = vpop.permute.xlu0 %1776
      %vm1778 = vcmask 900096
      %v1779 = vsel %vm1778, %v1767, %v1769
      %v1780 = vsel %vm1778, %v1769, %v1771
      %v1781 = vsel %vm1778, %v1773, %v1775
      %v1782 = vsel %vm1778, %v1775, %v1777
      %v1789 = vadd.f32 %v1578, %v1767
      %v1790 = vadd.f32 %v1579, %v1779
      %v1791 = vadd.f32 %v1580, %v1780
      %v1792 = vadd.f32 %v1581, %v1773
      %v1793 = vadd.f32 %v1582, %v1781
      %v1794 = vadd.f32 %v1583, %v1782
      %s1795 = scalar_lea.vmem %s0, 96
      %v1796 = vld [vmem:[%s1795] sm:$0xff]
      %v1797 = vld [vmem:[%s1795 + $0x8] sm:$0xff]
      %v1799 = vsel %vm608, %v1796, 0
      %v1802 = vsel %vm608, %v1797, 0
      %1804 = vmatprep.subr.mxu0 %v550
      %1805 = vmatpush1.msra.mxu0 %v549
      %1806 = vmatprep.subr.mxu0 %v554
      %1807 = vmatpush1.msra.mxu0 %v553
      %1808 = vmatprep.subr.mxu0 %v558
      %1809 = vmatpush1.msra.mxu0 %v557
      %1810 = vmatprep.subr.mxu0 %v562
      %1811 = vmatpush1.msra.mxu0 %v561
      %1812 = vmatprep.subr.mxu0 %v566
      %1813 = vmatpush1.msra.mxu0 %v565
      %1814 = vmatprep.subr.mxu0 %v570
      %1815 = vmatpush1.msra.mxu0 %v569
      %1816 = vmatprep.subr.mxu0 %v574
      %1817 = vmatpush1.msra.mxu0 %v573
      %1818 = vmatprep.subr.mxu0 %v578
      %1819 = vmatpush1.msra.mxu0 %v577
      %1820 = vmatprep.subr.mxu0 %v582
      %1821 = vmatpush1.msra.mxu0 %v581
      %1822 = vmatprep.subr.mxu0 0.0
      %1823 = vmatpush1.msra.mxu0 0.0
      %1824 = vmatprep.subr.mxu0 0.0
      %1825 = vmatpush1.msra.mxu0 0.0
      %1826 = vmatprep.subr.mxu0 0.0
      %1827 = vmatpush1.msra.mxu0 0.0
      %1828 = vmatprep.subr.mxu0 0.0
      %1829 = vmatpush1.msra.mxu0 0.0
      %1830 = vmatprep.subr.mxu0 0.0
      %1831 = vmatpush1.msra.mxu0 0.0
      %1832 = vmatprep.subr.mxu0 0.0
      %1833 = vmatpush1.msra.mxu0 0.0
      %1834 = vmatprep.subr.mxu0 0.0
      %1835 = vmatpush1.msra.mxu0 0.0
      %1836 = vmatprep.subr.mxu0 0.0
      %1837 = vmatpush1.msra.mxu0 0.0
      %1838 = vmatprep.subr.mxu0 0.0
      %1839 = vmatpush1.msra.mxu0 0.0
      %1840 = vmatprep.subr.mxu0 0.0
      %1841 = vmatpush1.msra.mxu0 0.0
      %1842 = vmatprep.subr.mxu0 0.0
      %1843 = vmatpush1.msra.mxu0 0.0
      %1844 = vmatprep.subr.mxu0 0.0
      %1845 = vmatpush1.msra.mxu0 0.0
      %1846 = vmatprep.subr.mxu0 0.0
      %1847 = vmatpush1.msra.mxu0 0.0
      %1848 = vmatprep.subr.mxu0 0.0
      %1849 = vmatpush1.msra.mxu0 0.0
      %1850 = vmatprep.subr.mxu0 0.0
      %1851 = vmatpush1.msra.mxu0 0.0
      %1852 = vmatprep.subr.mxu0 0.0
      %1853 = vmatpush1.msra.mxu0 0.0
      %1854 = vmatprep.subr.mxu0 0.0
      %1855 = vmatpush1.msra.mxu0 0.0
      %1856 = vmatprep.subr.mxu0 0.0
      %1857 = vmatpush1.msra.mxu0 0.0
      %1858 = vmatprep.subr.mxu0 0.0
      %1859 = vmatpush1.msra.mxu0 0.0
      %1860 = vmatprep.subr.mxu0 0.0
      %1861 = vmatpush1.msra.mxu0 0.0
      %1862 = vmatprep.subr.mxu0 0.0
      %1863 = vmatpush1.msra.mxu0 0.0
      %1864 = vmatprep.subr.mxu0 0.0
      %1865 = vmatpush1.msra.mxu0 0.0
      %1866 = vmatprep.subr.mxu0 0.0
      %1867 = vmatpush1.msra.mxu0 0.0
      %1868 = vmatprep.mubr.f32.mxu0 0.0
      %1869 = vmatmul.mubr.f32.gmra.mrb[0].mxu0 %v1799
      %v1870 = vpop.f32.mrb[0].mxu0
      %v1871 = vpop.f32.mrb[0].mxu0
      %v1872 = vadd.f32 0.0, %v1871
      %1873 = vmatprep.mubr.f32.mxu0 0.0
      %1874 = vmatmul.mubr.f32.gmra.mrb[0].mxu0 %v1802
      %v1875 = vpop.f32.mrb[0].mxu0
      %v1876 = vpop.f32.mrb[0].mxu0
      %v1877 = vadd.f32 0.0, %v1876
      %1878 = vdwg.mxu0
      %1879 = vmatprep.subr.mxu0 %v552
      %1880 = vmatpush1.msra.mxu0 %v551
      %1881 = vmatprep.subr.mxu0 %v556
      %1882 = vmatpush1.msra.mxu0 %v555
      %1883 = vmatprep.subr.mxu0 %v560
      %1884 = vmatpush1.msra.mxu0 %v559
      %1885 = vmatprep.subr.mxu0 %v564
      %1886 = vmatpush1.msra.mxu0 %v563
      %1887 = vmatprep.subr.mxu0 %v568
      %1888 = vmatpush1.msra.mxu0 %v567
      %1889 = vmatprep.subr.mxu0 %v572
      %1890 = vmatpush1.msra.mxu0 %v571
      %1891 = vmatprep.subr.mxu0 %v576
      %1892 = vmatpush1.msra.mxu0 %v575
      %1893 = vmatprep.subr.mxu0 %v580
      %1894 = vmatpush1.msra.mxu0 %v579
      %1895 = vmatprep.subr.mxu0 %v584
      %1896 = vmatpush1.msra.mxu0 %v583
      %1897 = vmatprep.subr.mxu0 0.0
      %1898 = vmatpush1.msra.mxu0 0.0
      %1899 = vmatprep.subr.mxu0 0.0
      %1900 = vmatpush1.msra.mxu0 0.0
      %1901 = vmatprep.subr.mxu0 0.0
      %1902 = vmatpush1.msra.mxu0 0.0
      %1903 = vmatprep.subr.mxu0 0.0
      %1904 = vmatpush1.msra.mxu0 0.0
      %1905 = vmatprep.subr.mxu0 0.0
      %1906 = vmatpush1.msra.mxu0 0.0
      %1907 = vmatprep.subr.mxu0 0.0
      %1908 = vmatpush1.msra.mxu0 0.0
      %1909 = vmatprep.subr.mxu0 0.0
      %1910 = vmatpush1.msra.mxu0 0.0
      %1911 = vmatprep.subr.mxu0 0.0
      %1912 = vmatpush1.msra.mxu0 0.0
      %1913 = vmatprep.subr.mxu0 0.0
      %1914 = vmatpush1.msra.mxu0 0.0
      %1915 = vmatprep.subr.mxu0 0.0
      %1916 = vmatpush1.msra.mxu0 0.0
      %1917 = vmatprep.subr.mxu0 0.0
      %1918 = vmatpush1.msra.mxu0 0.0
      %1919 = vmatprep.subr.mxu0 0.0
      %1920 = vmatpush1.msra.mxu0 0.0
      %1921 = vmatprep.subr.mxu0 0.0
      %1922 = vmatpush1.msra.mxu0 0.0
      %1923 = vmatprep.subr.mxu0 0.0
      %1924 = vmatpush1.msra.mxu0 0.0
      %1925 = vmatprep.subr.mxu0 0.0
      %1926 = vmatpush1.msra.mxu0 0.0
      %1927 = vmatprep.subr.mxu0 0.0
      %1928 = vmatpush1.msra.mxu0 0.0
      %1929 = vmatprep.subr.mxu0 0.0
      %1930 = vmatpush1.msra.mxu0 0.0
      %1931 = vmatprep.subr.mxu0 0.0
      %1932 = vmatpush1.msra.mxu0 0.0
      %1933 = vmatprep.subr.mxu0 0.0
      %1934 = vmatpush1.msra.mxu0 0.0
      %1935 = vmatprep.subr.mxu0 0.0
      %1936 = vmatpush1.msra.mxu0 0.0
      %1937 = vmatprep.subr.mxu0 0.0
      %1938 = vmatpush1.msra.mxu0 0.0
      %1939 = vmatprep.subr.mxu0 0.0
      %1940 = vmatpush1.msra.mxu0 0.0
      %1941 = vmatprep.subr.mxu0 0.0
      %1942 = vmatpush1.msra.mxu0 0.0
      %1943 = vmatprep.mubr.f32.mxu0 0.0
      %1944 = vmatmul.mubr.f32.gmra.mrb[0].mxu0 %v1799
      %v1945 = vpop.f32.mrb[0].mxu0
      %v1946 = vadd.f32 0.0, %v1945
      %v1947 = vpop.f32.mrb[0].mxu0
      %v1948 = vadd.f32 0.0, %v1947
      %1949 = vmatprep.mubr.f32.mxu0 0.0
      %1950 = vmatmul.mubr.f32.gmra.mrb[0].mxu0 %v1802
      %v1951 = vpop.f32.mrb[0].mxu0
      %v1952 = vadd.f32 0.0, %v1951
      %v1953 = vpop.f32.mrb[0].mxu0
      %v1954 = vadd.f32 0.0, %v1953
      %1955 = vdwg.mxu0
      %1956 = vrot.lane.b32.xlu0 %v590, 15
      %v1957 = vpop.permute.xlu0 %1956
      %1958 = vrot.lane.b32.xlu0 %v594, 15
      %v1959 = vpop.permute.xlu0 %1958
      %vm1960 = vcmask 121856
      %v1961 = vsel %vm1960, %v1957, %v1959
      %v1965 = vmul.f32 %v1872, %v1957
      %v1966 = vmul.f32 %v1946, %v1961
      %v1967 = vmul.f32 %v1948, %v1959
      %v1968 = vmul.f32 %v1877, %v1957
      %v1969 = vmul.f32 %v1952, %v1961
      %v1970 = vmul.f32 %v1954, %v1959
      %1977 = vrot.lane.b32.xlu0 %v1965, 96
      %v1978 = vpop.permute.xlu0 %1977
      %1979 = vrot.lane.b32.xlu0 %v1966, 96
      %v1980 = vpop.permute.xlu0 %1979
      %1981 = vrot.lane.b32.xlu0 %v1967, 96
      %v1982 = vpop.permute.xlu0 %1981
      %1983 = vrot.lane.b32.xlu0 %v1968, 96
      %v1984 = vpop.permute.xlu0 %1983
      %1985 = vrot.lane.b32.xlu0 %v1969, 96
      %v1986 = vpop.permute.xlu0 %1985
      %1987 = vrot.lane.b32.xlu0 %v1970, 96
      %v1988 = vpop.permute.xlu0 %1987
      %vm1989 = vcmask 785408
      %v1990 = vsel %vm1989, %v1978, %v1980
      %v1991 = vsel %vm1989, %v1980, %v1982
      %v1992 = vsel %vm1989, %v1984, %v1986
      %v1993 = vsel %vm1989, %v1986, %v1988
      %v2000 = vadd.f32 %v1789, %v1978
      %v2001 = vadd.f32 %v1790, %v1990
      %v2002 = vadd.f32 %v1791, %v1991
      %v2003 = vadd.f32 %v1792, %v1984
      %v2004 = vadd.f32 %v1793, %v1992
      %v2005 = vadd.f32 %v1794, %v1993
      %s2006 = scalar_lea.vmem %s0, 112
      %v2007 = vld [vmem:[%s2006] sm:$0xff]
      %v2008 = vld [vmem:[%s2006 + $0x8] sm:$0xff]
      %v2010 = vsel %vm608, %v2007, 0
      %v2013 = vsel %vm608, %v2008, 0
      %2015 = vmatprep.subr.mxu0 %v550
      %2016 = vmatpush1.msra.mxu0 %v549
      %2017 = vmatprep.subr.mxu0 %v554
      %2018 = vmatpush1.msra.mxu0 %v553
      %2019 = vmatprep.subr.mxu0 %v558
      %2020 = vmatpush1.msra.mxu0 %v557
      %2021 = vmatprep.subr.mxu0 %v562
      %2022 = vmatpush1.msra.mxu0 %v561
      %2023 = vmatprep.subr.mxu0 %v566
      %2024 = vmatpush1.msra.mxu0 %v565
      %2025 = vmatprep.subr.mxu0 %v570
      %2026 = vmatpush1.msra.mxu0 %v569
      %2027 = vmatprep.subr.mxu0 %v574
      %2028 = vmatpush1.msra.mxu0 %v573
      %2029 = vmatprep.subr.mxu0 %v578
      %2030 = vmatpush1.msra.mxu0 %v577
      %2031 = vmatprep.subr.mxu0 %v582
      %2032 = vmatpush1.msra.mxu0 %v581
      %2033 = vmatprep.subr.mxu0 0.0
      %2034 = vmatpush1.msra.mxu0 0.0
      %2035 = vmatprep.subr.mxu0 0.0
      %2036 = vmatpush1.msra.mxu0 0.0
      %2037 = vmatprep.subr.mxu0 0.0
      %2038 = vmatpush1.msra.mxu0 0.0
      %2039 = vmatprep.subr.mxu0 0.0
      %2040 = vmatpush1.msra.mxu0 0.0
      %2041 = vmatprep.subr.mxu0 0.0
      %2042 = vmatpush1.msra.mxu0 0.0
      %2043 = vmatprep.subr.mxu0 0.0
      %2044 = vmatpush1.msra.mxu0 0.0
      %2045 = vmatprep.subr.mxu0 0.0
      %2046 = vmatpush1.msra.mxu0 0.0
      %2047 = vmatprep.subr.mxu0 0.0
      %2048 = vmatpush1.msra.mxu0 0.0
      %2049 = vmatprep.subr.mxu0 0.0
      %2050 = vmatpush1.msra.mxu0 0.0
      %2051 = vmatprep.subr.mxu0 0.0
      %2052 = vmatpush1.msra.mxu0 0.0
      %2053 = vmatprep.subr.mxu0 0.0
      %2054 = vmatpush1.msra.mxu0 0.0
      %2055 = vmatprep.subr.mxu0 0.0
      %2056 = vmatpush1.msra.mxu0 0.0
      %2057 = vmatprep.subr.mxu0 0.0
      %2058 = vmatpush1.msra.mxu0 0.0
      %2059 = vmatprep.subr.mxu0 0.0
      %2060 = vmatpush1.msra.mxu0 0.0
      %2061 = vmatprep.subr.mxu0 0.0
      %2062 = vmatpush1.msra.mxu0 0.0
      %2063 = vmatprep.subr.mxu0 0.0
      %2064 = vmatpush1.msra.mxu0 0.0
      %2065 = vmatprep.subr.mxu0 0.0
      %2066 = vmatpush1.msra.mxu0 0.0
      %2067 = vmatprep.subr.mxu0 0.0
      %2068 = vmatpush1.msra.mxu0 0.0
      %2069 = vmatprep.subr.mxu0 0.0
      %2070 = vmatpush1.msra.mxu0 0.0
      %2071 = vmatprep.subr.mxu0 0.0
      %2072 = vmatpush1.msra.mxu0 0.0
      %2073 = vmatprep.subr.mxu0 0.0
      %2074 = vmatpush1.msra.mxu0 0.0
      %2075 = vmatprep.subr.mxu0 0.0
      %2076 = vmatpush1.msra.mxu0 0.0
      %2077 = vmatprep.subr.mxu0 0.0
      %2078 = vmatpush1.msra.mxu0 0.0
      %2079 = vmatprep.mubr.f32.mxu0 0.0
      %2080 = vmatmul.mubr.f32.gmra.mrb[0].mxu0 %v2010
      %v2081 = vpop.f32.mrb[0].mxu0
      %v2082 = vpop.f32.mrb[0].mxu0
      %v2083 = vadd.f32 0.0, %v2082
      %2084 = vmatprep.mubr.f32.mxu0 0.0
      %2085 = vmatmul.mubr.f32.gmra.mrb[0].mxu0 %v2013
      %v2086 = vpop.f32.mrb[0].mxu0
      %v2087 = vpop.f32.mrb[0].mxu0
      %v2088 = vadd.f32 0.0, %v2087
      %2089 = vdwg.mxu0
      %2090 = vmatprep.subr.mxu0 %v552
      %2091 = vmatpush1.msra.mxu0 %v551
      %2092 = vmatprep.subr.mxu0 %v556
      %2093 = vmatpush1.msra.mxu0 %v555
      %2094 = vmatprep.subr.mxu0 %v560
      %2095 = vmatpush1.msra.mxu0 %v559
      %2096 = vmatprep.subr.mxu0 %v564
      %2097 = vmatpush1.msra.mxu0 %v563
      %2098 = vmatprep.subr.mxu0 %v568
      %2099 = vmatpush1.msra.mxu0 %v567
      %2100 = vmatprep.subr.mxu0 %v572
      %2101 = vmatpush1.msra.mxu0 %v571
      %2102 = vmatprep.subr.mxu0 %v576
      %2103 = vmatpush1.msra.mxu0 %v575
      %2104 = vmatprep.subr.mxu0 %v580
      %2105 = vmatpush1.msra.mxu0 %v579
      %2106 = vmatprep.subr.mxu0 %v584
      %2107 = vmatpush1.msra.mxu0 %v583
      %2108 = vmatprep.subr.mxu0 0.0
      %2109 = vmatpush1.msra.mxu0 0.0
      %2110 = vmatprep.subr.mxu0 0.0
      %2111 = vmatpush1.msra.mxu0 0.0
      %2112 = vmatprep.subr.mxu0 0.0
      %2113 = vmatpush1.msra.mxu0 0.0
      %2114 = vmatprep.subr.mxu0 0.0
      %2115 = vmatpush1.msra.mxu0 0.0
      %2116 = vmatprep.subr.mxu0 0.0
      %2117 = vmatpush1.msra.mxu0 0.0
      %2118 = vmatprep.subr.mxu0 0.0
      %2119 = vmatpush1.msra.mxu0 0.0
      %2120 = vmatprep.subr.mxu0 0.0
      %2121 = vmatpush1.msra.mxu0 0.0
      %2122 = vmatprep.subr.mxu0 0.0
      %2123 = vmatpush1.msra.mxu0 0.0
      %2124 = vmatprep.subr.mxu0 0.0
      %2125 = vmatpush1.msra.mxu0 0.0
      %2126 = vmatprep.subr.mxu0 0.0
      %2127 = vmatpush1.msra.mxu0 0.0
      %2128 = vmatprep.subr.mxu0 0.0
      %2129 = vmatpush1.msra.mxu0 0.0
      %2130 = vmatprep.subr.mxu0 0.0
      %2131 = vmatpush1.msra.mxu0 0.0
      %2132 = vmatprep.subr.mxu0 0.0
      %2133 = vmatpush1.msra.mxu0 0.0
      %2134 = vmatprep.subr.mxu0 0.0
      %2135 = vmatpush1.msra.mxu0 0.0
      %2136 = vmatprep.subr.mxu0 0.0
      %2137 = vmatpush1.msra.mxu0 0.0
      %2138 = vmatprep.subr.mxu0 0.0
      %2139 = vmatpush1.msra.mxu0 0.0
      %2140 = vmatprep.subr.mxu0 0.0
      %2141 = vmatpush1.msra.mxu0 0.0
      %2142 = vmatprep.subr.mxu0 0.0
      %2143 = vmatpush1.msra.mxu0 0.0
      %2144 = vmatprep.subr.mxu0 0.0
      %2145 = vmatpush1.msra.mxu0 0.0
      %2146 = vmatprep.subr.mxu0 0.0
      %2147 = vmatpush1.msra.mxu0 0.0
      %2148 = vmatprep.subr.mxu0 0.0
      %2149 = vmatpush1.msra.mxu0 0.0
      %2150 = vmatprep.subr.mxu0 0.0
      %2151 = vmatpush1.msra.mxu0 0.0
      %2152 = vmatprep.subr.mxu0 0.0
      %2153 = vmatpush1.msra.mxu0 0.0
      %2154 = vmatprep.mubr.f32.mxu0 0.0
      %2155 = vmatmul.mubr.f32.gmra.mrb[0].mxu0 %v2010
      %v2156 = vpop.f32.mrb[0].mxu0
      %v2157 = vadd.f32 0.0, %v2156
      %v2158 = vpop.f32.mrb[0].mxu0
      %v2159 = vadd.f32 0.0, %v2158
      %2160 = vmatprep.mubr.f32.mxu0 0.0
      %2161 = vmatmul.mubr.f32.gmra.mrb[0].mxu0 %v2013
      %v2162 = vpop.f32.mrb[0].mxu0
      %v2163 = vadd.f32 0.0, %v2162
      %v2164 = vpop.f32.mrb[0].mxu0
      %v2165 = vadd.f32 0.0, %v2164
      %2166 = vdwg.mxu0
      %2173 = vrot.lane.b32.xlu0 %v2083, 95
      %v2174 = vpop.permute.xlu0 %2173
      %2175 = vrot.lane.b32.xlu0 %v2157, 95
      %v2176 = vpop.permute.xlu0 %2175
      %2177 = vrot.lane.b32.xlu0 %v2159, 95
      %v2178 = vpop.permute.xlu0 %2177
      %2179 = vrot.lane.b32.xlu0 %v2088, 95
      %v2180 = vpop.permute.xlu0 %2179
      %2181 = vrot.lane.b32.xlu0 %v2163, 95
      %v2182 = vpop.permute.xlu0 %2181
      %2183 = vrot.lane.b32.xlu0 %v2165, 95
      %v2184 = vpop.permute.xlu0 %2183
      %vm2185 = vcmask 777216
      %v2186 = vsel %vm2185, %v2174, %v2176
      %v2187 = vsel %vm2185, %v2176, %v2178
      %v2188 = vsel %vm2185, %v2180, %v2182
      %v2189 = vsel %vm2185, %v2182, %v2184
      %v2196 = vadd.f32 %v2000, %v2174
      %v2197 = vadd.f32 %v2001, %v2186
      %v2198 = vadd.f32 %v2002, %v2187
      %v2199 = vadd.f32 %v2003, %v2180
      %v2200 = vadd.f32 %v2004, %v2188
      %v2201 = vadd.f32 %v2005, %v2189
      %s2202 = scalar_lea.vmem %s0, 128
      %v2203 = vld [vmem:[%s2202] sm:$0xff]
      %v2204 = vld [vmem:[%s2202 + $0x8] sm:$0xff]
      %v2206 = vsel %vm608, %v2203, 0
      %v2209 = vsel %vm608, %v2204, 0
      %2211 = vmatprep.subr.mxu0 %v550
      %2212 = vmatpush1.msra.mxu0 %v549
      %2213 = vmatprep.subr.mxu0 %v554
      %2214 = vmatpush1.msra.mxu0 %v553
      %2215 = vmatprep.subr.mxu0 %v558
      %2216 = vmatpush1.msra.mxu0 %v557
      %2217 = vmatprep.subr.mxu0 %v562
      %2218 = vmatpush1.msra.mxu0 %v561
      %2219 = vmatprep.subr.mxu0 %v566
      %2220 = vmatpush1.msra.mxu0 %v565
      %2221 = vmatprep.subr.mxu0 %v570
      %2222 = vmatpush1.msra.mxu0 %v569
      %2223 = vmatprep.subr.mxu0 %v574
      %2224 = vmatpush1.msra.mxu0 %v573
      %2225 = vmatprep.subr.mxu0 %v578
      %2226 = vmatpush1.msra.mxu0 %v577
      %2227 = vmatprep.subr.mxu0 %v582
      %2228 = vmatpush1.msra.mxu0 %v581
      %2229 = vmatprep.subr.mxu0 0.0
      %2230 = vmatpush1.msra.mxu0 0.0
      %2231 = vmatprep.subr.mxu0 0.0
      %2232 = vmatpush1.msra.mxu0 0.0
      %2233 = vmatprep.subr.mxu0 0.0
      %2234 = vmatpush1.msra.mxu0 0.0
      %2235 = vmatprep.subr.mxu0 0.0
      %2236 = vmatpush1.msra.mxu0 0.0
      %2237 = vmatprep.subr.mxu0 0.0
      %2238 = vmatpush1.msra.mxu0 0.0
      %2239 = vmatprep.subr.mxu0 0.0
      %2240 = vmatpush1.msra.mxu0 0.0
      %2241 = vmatprep.subr.mxu0 0.0
      %2242 = vmatpush1.msra.mxu0 0.0
      %2243 = vmatprep.subr.mxu0 0.0
      %2244 = vmatpush1.msra.mxu0 0.0
      %2245 = vmatprep.subr.mxu0 0.0
      %2246 = vmatpush1.msra.mxu0 0.0
      %2247 = vmatprep.subr.mxu0 0.0
      %2248 = vmatpush1.msra.mxu0 0.0
      %2249 = vmatprep.subr.mxu0 0.0
      %2250 = vmatpush1.msra.mxu0 0.0
      %2251 = vmatprep.subr.mxu0 0.0
      %2252 = vmatpush1.msra.mxu0 0.0
      %2253 = vmatprep.subr.mxu0 0.0
      %2254 = vmatpush1.msra.mxu0 0.0
      %2255 = vmatprep.subr.mxu0 0.0
      %2256 = vmatpush1.msra.mxu0 0.0
      %2257 = vmatprep.subr.mxu0 0.0
      %2258 = vmatpush1.msra.mxu0 0.0
      %2259 = vmatprep.subr.mxu0 0.0
      %2260 = vmatpush1.msra.mxu0 0.0
      %2261 = vmatprep.subr.mxu0 0.0
      %2262 = vmatpush1.msra.mxu0 0.0
      %2263 = vmatprep.subr.mxu0 0.0
      %2264 = vmatpush1.msra.mxu0 0.0
      %2265 = vmatprep.subr.mxu0 0.0
      %2266 = vmatpush1.msra.mxu0 0.0
      %2267 = vmatprep.subr.mxu0 0.0
      %2268 = vmatpush1.msra.mxu0 0.0
      %2269 = vmatprep.subr.mxu0 0.0
      %2270 = vmatpush1.msra.mxu0 0.0
      %2271 = vmatprep.subr.mxu0 0.0
      %2272 = vmatpush1.msra.mxu0 0.0
      %2273 = vmatprep.subr.mxu0 0.0
      %2274 = vmatpush1.msra.mxu0 0.0
      %2275 = vmatprep.mubr.f32.mxu0 0.0
      %2276 = vmatmul.mubr.f32.gmra.mrb[0].mxu0 %v2206
      %v2277 = vpop.f32.mrb[0].mxu0
      %v2278 = vpop.f32.mrb[0].mxu0
      %v2279 = vadd.f32 0.0, %v2278
      %2280 = vmatprep.mubr.f32.mxu0 0.0
      %2281 = vmatmul.mubr.f32.gmra.mrb[0].mxu0 %v2209
      %v2282 = vpop.f32.mrb[0].mxu0
      %v2283 = vpop.f32.mrb[0].mxu0
      %v2284 = vadd.f32 0.0, %v2283
      %2285 = vdwg.mxu0
      %2286 = vmatprep.subr.mxu0 %v552
      %2287 = vmatpush1.msra.mxu0 %v551
      %2288 = vmatprep.subr.mxu0 %v556
      %2289 = vmatpush1.msra.mxu0 %v555
      %2290 = vmatprep.subr.mxu0 %v560
      %2291 = vmatpush1.msra.mxu0 %v559
      %2292 = vmatprep.subr.mxu0 %v564
      %2293 = vmatpush1.msra.mxu0 %v563
      %2294 = vmatprep.subr.mxu0 %v568
      %2295 = vmatpush1.msra.mxu0 %v567
      %2296 = vmatprep.subr.mxu0 %v572
      %2297 = vmatpush1.msra.mxu0 %v571
      %2298 = vmatprep.subr.mxu0 %v576
      %2299 = vmatpush1.msra.mxu0 %v575
      %2300 = vmatprep.subr.mxu0 %v580
      %2301 = vmatpush1.msra.mxu0 %v579
      %2302 = vmatprep.subr.mxu0 %v584
      %2303 = vmatpush1.msra.mxu0 %v583
      %2304 = vmatprep.subr.mxu0 0.0
      %2305 = vmatpush1.msra.mxu0 0.0
      %2306 = vmatprep.subr.mxu0 0.0
      %2307 = vmatpush1.msra.mxu0 0.0
      %2308 = vmatprep.subr.mxu0 0.0
      %2309 = vmatpush1.msra.mxu0 0.0
      %2310 = vmatprep.subr.mxu0 0.0
      %2311 = vmatpush1.msra.mxu0 0.0
      %2312 = vmatprep.subr.mxu0 0.0
      %2313 = vmatpush1.msra.mxu0 0.0
      %2314 = vmatprep.subr.mxu0 0.0
      %2315 = vmatpush1.msra.mxu0 0.0
      %2316 = vmatprep.subr.mxu0 0.0
      %2317 = vmatpush1.msra.mxu0 0.0
      %2318 = vmatprep.subr.mxu0 0.0
      %2319 = vmatpush1.msra.mxu0 0.0
      %2320 = vmatprep.subr.mxu0 0.0
      %2321 = vmatpush1.msra.mxu0 0.0
      %2322 = vmatprep.subr.mxu0 0.0
      %2323 = vmatpush1.msra.mxu0 0.0
      %2324 = vmatprep.subr.mxu0 0.0
      %2325 = vmatpush1.msra.mxu0 0.0
      %2326 = vmatprep.subr.mxu0 0.0
      %2327 = vmatpush1.msra.mxu0 0.0
      %2328 = vmatprep.subr.mxu0 0.0
      %2329 = vmatpush1.msra.mxu0 0.0
      %2330 = vmatprep.subr.mxu0 0.0
      %2331 = vmatpush1.msra.mxu0 0.0
      %2332 = vmatprep.subr.mxu0 0.0
      %2333 = vmatpush1.msra.mxu0 0.0
      %2334 = vmatprep.subr.mxu0 0.0
      %2335 = vmatpush1.msra.mxu0 0.0
      %2336 = vmatprep.subr.mxu0 0.0
      %2337 = vmatpush1.msra.mxu0 0.0
      %2338 = vmatprep.subr.mxu0 0.0
      %2339 = vmatpush1.msra.mxu0 0.0
      %2340 = vmatprep.subr.mxu0 0.0
      %2341 = vmatpush1.msra.mxu0 0.0
      %2342 = vmatprep.subr.mxu0 0.0
      %2343 = vmatpush1.msra.mxu0 0.0
      %2344 = vmatprep.subr.mxu0 0.0
      %2345 = vmatpush1.msra.mxu0 0.0
      %2346 = vmatprep.subr.mxu0 0.0
      %2347 = vmatpush1.msra.mxu0 0.0
      %2348 = vmatprep.subr.mxu0 0.0
      %2349 = vmatpush1.msra.mxu0 0.0
      %2350 = vmatprep.mubr.f32.mxu0 0.0
      %2351 = vmatmul.mubr.f32.gmra.mrb[0].mxu0 %v2206
      %v2352 = vpop.f32.mrb[0].mxu0
      %v2353 = vadd.f32 0.0, %v2352
      %v2354 = vpop.f32.mrb[0].mxu0
      %v2355 = vadd.f32 0.0, %v2354
      %2356 = vmatprep.mubr.f32.mxu0 0.0
      %2357 = vmatmul.mubr.f32.gmra.mrb[0].mxu0 %v2209
      %v2358 = vpop.f32.mrb[0].mxu0
      %v2359 = vadd.f32 0.0, %v2358
      %v2360 = vpop.f32.mrb[0].mxu0
      %v2361 = vadd.f32 0.0, %v2360
      %2362 = vdwg.mxu0
      %2363 = vrot.lane.b32.xlu0 %v601, 17
      %v2364 = vpop.permute.xlu0 %2363
      %2365 = vrot.lane.b32.xlu0 %v605, 17
      %v2366 = vpop.permute.xlu0 %2365
      %vm2367 = vcmask 138240
      %v2368 = vsel %vm2367, %v2364, %v2366
      %v2372 = vmul.f32 %v2279, %v2364
      %v2373 = vmul.f32 %v2353, %v2368
      %v2374 = vmul.f32 %v2355, %v2366
      %v2375 = vmul.f32 %v2284, %v2364
      %v2376 = vmul.f32 %v2359, %v2368
      %v2377 = vmul.f32 %v2361, %v2366
      %2384 = vrot.lane.b32.xlu0 %v2372, 94
      %v2385 = vpop.permute.xlu0 %2384
      %2386 = vrot.lane.b32.xlu0 %v2373, 94
      %v2387 = vpop.permute.xlu0 %2386
      %2388 = vrot.lane.b32.xlu0 %v2374, 94
      %v2389 = vpop.permute.xlu0 %2388
      %2390 = vrot.lane.b32.xlu0 %v2375, 94
      %v2391 = vpop.permute.xlu0 %2390
      %2392 = vrot.lane.b32.xlu0 %v2376, 94
      %v2393 = vpop.permute.xlu0 %2392
      %2394 = vrot.lane.b32.xlu0 %v2377, 94
      %v2395 = vpop.permute.xlu0 %2394
      %vm2396 = vcmask 769024
      %v2397 = vsel %vm2396, %v2385, %v2387
      %v2398 = vsel %vm2396, %v2387, %v2389
      %v2399 = vsel %vm2396, %v2391, %v2393
      %v2400 = vsel %vm2396, %v2393, %v2395
      %v2407 = vadd.f32 %v2196, %v2385
      %v2408 = vadd.f32 %v2197, %v2397
      %v2409 = vadd.f32 %v2198, %v2398
      %v2410 = vadd.f32 %v2199, %v2391
      %v2411 = vadd.f32 %v2200, %v2399
      %v2412 = vadd.f32 %v2201, %v2400
      %2419 = vrot.lane.b32.xlu0 %v2407, 17
      %v2420 = vpop.permute.xlu0 %2419
      %2421 = vrot.lane.b32.xlu0 %v2408, 17
      %v2422 = vpop.permute.xlu0 %2421
      %2423 = vrot.lane.b32.xlu0 %v2409, 17
      %v2424 = vpop.permute.xlu0 %2423
      %2425 = vrot.lane.b32.xlu0 %v2410, 17
      %v2426 = vpop.permute.xlu0 %2425
      %2427 = vrot.lane.b32.xlu0 %v2411, 17
      %v2428 = vpop.permute.xlu0 %2427
      %2429 = vrot.lane.b32.xlu0 %v2412, 17
      %v2430 = vpop.permute.xlu0 %2429
      %v2431 = vsel %vm2367, %v2420, %v2422
      %v2432 = vsel %vm2367, %v2422, %v2424
      %v2433 = vsel %vm2367, %v2426, %v2428
      %v2434 = vsel %vm2367, %v2428, %v2430
      %2439 = vst [vmem:[%s374] sm:$0xff] %v2431
      %2440 = vst [vmem:[%s374 + $0x8] sm:$0xff] %v2432
      %2441 = vst [vmem:[%s374 + $0x10] sm:$0xff] %v2433
      %2442 = vst [vmem:[%s374 + $0x18] sm:$0xff] %v2434
      %s2443 = sadd.s32 %s21, %s22
      %s2444 = smul.u32 2, %s23
      %p2445 = scmp.lt.s32.totalorder %s2443, 1
      %s2446 = scalar_select %p2445, %s2443, 1
      %p2447 = scmp.lt.s32.totalorder %s2444, 1
      %s2448 = scalar_select %p2447, %s2444, 1
      %s2449 = smul.addr %s2448, 2
      %s2450 = smul.addr %s2446, 4
      %s2451 = sadd.s32 %s2449, %s2450
      %s2452 = smul.addr %s2451, 8
      %s2453 = scalar_lea.vmem %s5, %s2452
      // Predicated region
      $region49: #{run.2} parent=39 // pred_check
        %p2454 = pneg %p193
      $region50: #{run.2} parent=39 // pred_check_branch
        %2456 = sbr.rel (%p2454) target = $region52
      $region51: #{run.2} parent=39 // pred_region
        %s2457 = sadd.s32 %s21, %s22
        %s2458 = smul.u32 2, %s23
      $region52: #{run.2} parent=39 // pred_fallthru
        _
    $region40: #{run.2} parent=5 // pred_fallthru
      _
    %p2459 = scmp.le.s32.totalorder 2, %s11
    // Predicated region
    $region53: #{run.2} parent=5 // pred_check
      %p2460 = pneg %p2459
    $region54: #{run.2} parent=5 // pred_check_branch
      %2462 = sbr.rel (%p2460) target = $region56
    $region55: #{run.2} parent=5 // pred_region
      %s2463 = ssub.s32 %s11, 2
      // Predicated region
      $region57: #{run.2} parent=55 // pred_check
        %p2464 = pneg %p199
      $region58: #{run.2} parent=55 // pred_check_branch
        %2466 = sbr.rel (%p2464) target = $region60
      $region59: #{run.2} parent=55 // pred_region
        %s2467 = sadd.s32 %s24, %s25
        %s2468 = smul.u32 2, %s26
        %p2469 = scmp.lt.s32.totalorder %s2467, 1
        %s2470 = scalar_select %p2469, %s2467, 1
        %p2471 = scmp.lt.s32.totalorder %s2468, 1
        %s2472 = scalar_select %p2471, %s2468, 1
        %s2473 = smul.addr %s2472, 2
        %s2474 = smul.addr %s2470, 4
        %s2475 = sadd.s32 %s2473, %s2474
        %s2476 = smul.addr %s2475, 8
        %s2477 = scalar_lea.vmem %s5, %s2476
      $region60: #{run.2} parent=55 // pred_fallthru
        _
    $region56: #{run.2} parent=5 // pred_fallthru
      _
  $region6: #{run.2} parent=0 // loop_footer
    %s15 = sadd.s32 1, %s11
  $region7: #{run.2} parent=0 // loop_footer_branch
    %10 = sbr.rel target = $region3
  $region8: #{run.2} parent=0 // loop_exit
    _

</llo_original>
